<compile_context>
chip_gen: v5e
topology: v5e:2x2
jax: 0.10.0
libtpu: 0.0.40
codegen_flags: <defaults>
</compile_context>

<pallas_src>
import functools

import jax
import jax.numpy as jnp
import numpy as np
from jax.experimental import pallas as pl
from jax.experimental.pallas import tpu as pltpu

HIDDEN = 40      # Net() hardcodes hidden_size=40 for encoder/decoder
GATE = 128       # lane-aligned per-gate width: gates r/z/n live at lane offsets 0/128/256
KPAD = 8         # sublane-aligned K for the (scalar-input) projection dots
EPS = 1e-5       # nn.LayerNorm default eps


# ----------------------------------------------------------------------------- kernel

def deepar_kernel(io_ref, rec_ref, small_ref, misc_ref, out_ref, h_all, gi_buf,
                  *, lin, ltgt, pb):
    G, H = GATE, HIDDEN
    ne = lin * pb
    nd = ltgt * pb

    # ---- unpack parameter slabs (static, lane/sublane-aligned slices) ------------------
    whh_e = rec_ref[:, 0:3 * G]            # (H, 384) encoder recurrent weights, K=H (no zero rows)
    whh_d = rec_ref[:, 3 * G:6 * G]        # (H, 384) decoder recurrent weights
    wih_d = rec_ref[:, 6 * G:9 * G]        # (H, 384) decoder input projection (batched use only)

    wih_e8 = small_ref[0:KPAD, :]          # (8, 384) encoder input weights (row 0 real, rest 0)
    b_gi_e = small_ref[8:9, :]             # (1, 384) folded bias: r,z = bih+bhh ; n = bih_n
    b_gi_d = small_ref[9:10, :]            # (1, 384) decoder folded bias
    bhh_e_n = small_ref[10:11, 2 * G:3 * G]   # (1, 128) encoder bhh_n (inside r*(gh_n+bhh_n))
    bhh_d_n = small_ref[11:12, 2 * G:3 * G]   # (1, 128) decoder bhh_n

    wout_pad = misc_ref[0:G, :]            # (128,128) out Linear(40,1) weight in column 0
    wemb8 = misc_ref[G:G + KPAD, 0:H]      # (8, 40) synthesized decoder embedding Linear(1,40)
    bemb = misc_ref[G + 8:G + 9, 0:H]
    gamma = misc_ref[G + 9:G + 10, 0:H]    # LayerNorm(40) affine
    beta = misc_ref[G + 10:G + 11, 0:H]
    bout = misc_ref[G + 11:G + 12, :]      # (1, 128), every lane = bout

    x = io_ref[...]                        # (ne+nd, 8): column 0 = values, columns 1..7 = 0
    xe = x[0:ne, :]
    xd = x[ne:ne + nd, :]

    # ---- hoisted off the recurrence: encoder input projection as a K=8 MXU dot ---------
    gi_buf[0:ne, :] = (jnp.dot(xe, wih_e8, preferred_element_type=jnp.float32) + b_gi_e)

    # ---- hoisted off the recurrence: full decoder input path, batched over all steps ----
    # TODO(synk): DecoderRNN.self.embedding is undefined in the source module; synthesized
    # as a deterministic Linear(1, 40) so shapes match GRU(40, 40).
    e = jnp.dot(xd, wemb8, preferred_element_type=jnp.float32) + bemb          # (nd, 40)
    e = jnp.maximum(e, 0.0)                                                    # F.relu
    mu = jnp.mean(e, axis=-1, keepdims=True)
    var = jnp.mean((e - mu) ** 2, axis=-1, keepdims=True)
    ln = (e - mu) * jax.lax.rsqrt(var + EPS) * gamma + beta                    # LayerNorm(40)
    gi_buf[ne:ne + nd, :] = (jnp.dot(ln, wih_d, preferred_element_type=jnp.float32)
                             + b_gi_d)                                         # (nd, 384)

    # ---- serial recurrence: per step only h @ whh (MXU, K=40) + gate elementwise --------
    def gru_step(h, gi, whh, bhh_n):
        gh = jnp.dot(h[:, 0:H], whh, preferred_element_type=jnp.float32)       # (pb, 384)
        z = jax.nn.sigmoid(gi[:, G:2 * G] + gh[:, G:2 * G])                    # issue z's EUP early
        r = jax.nn.sigmoid(gi[:, 0:G] + gh[:, 0:G])
        n = jnp.tanh(gi[:, 2 * G:3 * G] + r * (gh[:, 2 * G:3 * G] + bhh_n))
        return n + z * (h - n)            # == (1-z)*n + z*h, one fewer VPU op per step

    # h padding lanes (40..127) stay exactly 0: all weight/bias columns beyond HIDDEN in
    # every gate block are zero by construction in pack_params, so n_pad = 0 and the blend
    # keeps 0*... = 0.  Do not fold anything into those columns.
    h = jnp.zeros((pb, G), jnp.float32)

    # Encoder GRU over the input sequence (fully unrolled; lin == 8).
    # TODO(synk): EncoderRNN.forward references a nonexistent self.embedding and applies
    # LayerNorm(40) to a size-1 feature dim; both are treated as identity.
    for t in range(lin):
        h = gru_step(h, gi_buf[t * pb:(t + 1) * pb, :], whh_e, bhh_e_n)

    # Decoder GRU, teacher forced; stash h_t lane-dense, output Linear applied after the loop.
    # TODO(synk): python random() teacher-forcing coin flip made deterministic (=True).
    for t in range(ltgt):
        h = gru_step(h, gi_buf[ne + t * pb:ne + (t + 1) * pb, :], whh_d, bhh_d_n)
        h_all[t * pb:(t + 1) * pb, :] = h                                      # (pb,128) aligned store

    # ---- epilogue: out Linear(40,1) as one MXU dot, lane-dense (nd, 128) output store ----
    out_ref[...] = (jnp.dot(h_all[...], wout_pad, preferred_element_type=jnp.float32)
                    + bout)


# ----------------------------------------------------------------------------- wrapper

def deepar_forward(inp, tgt, packed):
    B, Lin, _ = inp.shape
    Ltgt = tgt.shape[1]
    PB = ((B + 7) // 8) * 8               # pad batch to the f32 sublane count

    inp2d = inp[:, :, 0]                  # (B, Lin)
    tgt2d = tgt[:, :, 0]                  # (B, Ltgt)
    # Teacher forcing: decoder inputs known up front = [inp[:, -1], tgt[:, :-1]].
    dec2d = jnp.concatenate([inp2d[:, Lin - 1:Lin], tgt2d[:, :Ltgt - 1]], axis=1)

    # Time-major, batch padded to PB rows, packed as a (rows, 8) column slab so the kernel
    # can use a K=8 MXU dot instead of an XLU lane broadcast (pure layout plumbing).
    enc_t = jnp.zeros((Lin, PB), jnp.float32).at[:, :B].set(inp2d.T)
    dec_t = jnp.zeros((Ltgt, PB), jnp.float32).at[:, :B].set(dec2d.T)
    io = jnp.zeros(((Lin + Ltgt) * PB, KPAD), jnp.float32)
    io = io.at[:Lin * PB, 0].set(enc_t.reshape(-1))
    io = io.at[Lin * PB:, 0].set(dec_t.reshape(-1))

    vmem = pl.BlockSpec(memory_space=pltpu.MemorySpace.VMEM)
    kern = functools.partial(deepar_kernel, lin=Lin, ltgt=Ltgt, pb=PB)
    out2d = pl.pallas_call(
        kern,
        out_shape=jax.ShapeDtypeStruct((Ltgt * PB, GATE), jnp.float32),
        in_specs=[vmem] * 4,
        out_specs=vmem,
        scratch_shapes=[pltpu.VMEM((Ltgt * PB, GATE), jnp.float32),             # h_all
                        pltpu.VMEM(((Lin + Ltgt) * PB, 3 * GATE), jnp.float32)],  # gi_buf
    )(io, *packed)

    out = out2d.reshape(Ltgt, PB, GATE)[:, :B, 0]     # (Ltgt, B): column 0 holds the Linear(40,1)
    return out.T[:, :, None]                          # (B, Ltgt, 1), matching the PyTorch module


# --------------------------------------------------------------------- parameter packing

def _gate_pad(w):
    """(R, 3H) with gates [r|z|n] of width H -> (R, 3*GATE) with gates at lane offsets 0/128/256.

    Columns beyond HIDDEN inside each gate block are left at exactly zero; the kernel's
    'h padding lanes stay 0' invariant depends on this.
    """
    R = w.shape[0]
    out = jnp.zeros((R, 3 * GATE), jnp.float32)
    out = out.at[:, 0:HIDDEN].set(w[:, 0:HIDDEN])
    out = out.at[:, GATE:GATE + HIDDEN].set(w[:, HIDDEN:2 * HIDDEN])
    out = out.at[:, 2 * GATE:2 * GATE + HIDDEN].set(w[:, 2 * HIDDEN:3 * HIDDEN])
    return out


def pack_params(params):
    (wih_e, whh_e, bih_e, bhh_e,
     wemb, bemb, gamma, beta,
     wih_d, whh_d, bih_d, bhh_d,
     wout, bout) = params
    G, H = GATE, HIDDEN

    # Slab A: recurrent + decoder-input weights, contraction kept at K=H=40 (no zero rows).
    slab_rec = jnp.concatenate(
        [_gate_pad(whh_e), _gate_pad(whh_d), _gate_pad(wih_d)], axis=1)        # (40, 1152)

    def fold_bias(bih, bhh):              # fold bih+bhh for r,z; keep only bih for n
        return _gate_pad(bih.at[:, 0:2 * H].add(bhh[:, 0:2 * H]))

    # Slab B: (8-row) encoder input weights + folded biases + bhh (n block used in kernel).
    slab_small = jnp.zeros((16, 3 * G), jnp.float32)
    slab_small = slab_small.at[0:1, :].set(_gate_pad(wih_e))
    slab_small = slab_small.at[8:9, :].set(fold_bias(bih_e, bhh_e))
    slab_small = slab_small.at[9:10, :].set(fold_bias(bih_d, bhh_d))
    slab_small = slab_small.at[10:11, :].set(_gate_pad(bhh_e))
    slab_small = slab_small.at[11:12, :].set(_gate_pad(bhh_d))

    # Slab C: lane-dense output weight (column 0) + embedding / LayerNorm / output bias rows.
    slab_misc = jnp.zeros((G + 16, G), jnp.float32)
    slab_misc = slab_misc.at[0:H, 0].set(wout[:, 0])          # (128,128) wout_pad, column 0
    slab_misc = slab_misc.at[G, 0:H].set(wemb[0])             # wemb8 row 0 (rows G+1..G+7 zero)
    slab_misc = slab_misc.at[G + 8, 0:H].set(bemb[0])
    slab_misc = slab_misc.at[G + 9, 0:H].set(gamma[0])
    slab_misc = slab_misc.at[G + 10, 0:H].set(beta[0])
    slab_misc = slab_misc.at[G + 11, :].set(jnp.full((G,), bout[0, 0]))

    return (slab_rec, slab_small, slab_misc)


# ------------------------------------------------------------------- pure-JAX reference

def _gru_cell(x, h, wih, whh, bih, bhh):
    """PyTorch nn.GRU single-step semantics (gate order r, z, n)."""
    H = h.shape[-1]
    gi = jnp.dot(x, wih) + bih
    gh = jnp.dot(h, whh) + bhh
    r = jax.nn.sigmoid(gi[:, :H] + gh[:, :H])
    z = jax.nn.sigmoid(gi[:, H:2 * H] + gh[:, H:2 * H])
    n = jnp.tanh(gi[:, 2 * H:] + r * gh[:, 2 * H:])
    return (1.0 - z) * n + z * h


def _layer_norm(x, gamma, beta):
    mu = jnp.mean(x, axis=-1, keepdims=True)
    var = jnp.mean((x - mu) ** 2, axis=-1, keepdims=True)
    return (x - mu) * jax.lax.rsqrt(var + EPS) * gamma + beta


def reference_forward(inp, tgt, params):
    (wih_e, whh_e, bih_e, bhh_e,
     wemb, bemb, gamma, beta,
     wih_d, whh_d, bih_d, bhh_d,
     wout, bout) = params
    B, Lin, _ = inp.shape
    Ltgt = tgt.shape[1]

    h = jnp.zeros((B, HIDDEN), jnp.float32)
    for t in range(Lin):
        h = _gru_cell(inp[:, t, :], h, wih_e, whh_e, bih_e, bhh_e)

    dec_in = inp[:, Lin - 1, :]
    outs = []
    for t in range(Ltgt):
        e = jnp.maximum(jnp.dot(dec_in, wemb) + bemb, 0.0)
        e = _layer_norm(e, gamma, beta)
        h = _gru_cell(e, h, wih_d, whh_d, bih_d, bhh_d)
        outs.append((jnp.dot(h, wout) + bout)[:, None, :])
        dec_in = tgt[:, t, :]
    return jnp.concatenate(outs, axis=1)


# ----------------------------------------------------------------------------- params

def init_params(key):
    H = HIDDEN
    ks = jax.random.split(key, 12)
    k = 1.0 / np.sqrt(H)
    u = lambda kk, shape: jax.random.uniform(kk, shape, jnp.float32, -k, k)
    wih_e = u(ks[0], (1, 3 * H))       # encoder GRU weight_ih (transposed, gate order r,z,n)
    whh_e = u(ks[1], (H, 3 * H))       # encoder GRU weight_hh (transposed)
    bih_e = u(ks[2], (1, 3 * H))
    bhh_e = u(ks[3], (1, 3 * H))
    wemb  = u(ks[4], (1, H))           # synthesized decoder embedding Linear(1, H)
    bemb  = u(ks[5], (1, H))
    gamma = jnp.ones((1, H), jnp.float32)
    beta  = jnp.zeros((1, H), jnp.float32)
    wih_d = u(ks[6], (H, 3 * H))       # decoder GRU weight_ih (transposed)
    whh_d = u(ks[7], (H, 3 * H))       # decoder GRU weight_hh (transposed)
    bih_d = u(ks[8], (1, 3 * H))
    bhh_d = u(ks[9], (1, 3 * H))
    wout  = u(ks[10], (H, 1))          # out Linear(H, 1) (transposed)
    bout  = u(ks[11], (1, 1))
    return (wih_e, whh_e, bih_e, bhh_e,
            wemb, bemb, gamma, beta,
            wih_d, whh_d, bih_d, bhh_d,
            wout, bout)


if __name__ == "__main__":
    key = jax.random.PRNGKey(0)
    k_inp, k_tgt, k_par = jax.random.split(key, 3)

    B, L_IN, L_TGT = 2, 8, 8
    input_tensor = jax.random.normal(k_inp, (B, L_IN, 1), jnp.float32)
    target_tensor = jax.random.normal(k_tgt, (B, L_TGT, 1), jnp.float32)
    params = init_params(k_par)
    packed = pack_params(params)

    out = jax.jit(deepar_forward)(input_tensor, target_tensor, packed)
    jax.block_until_ready(out)

    ref = reference_forward(input_tensor, target_tensor, params)
    np.testing.assert_allclose(np.asarray(out), np.asarray(ref), rtol=1e-4, atol=1e-5)

    print("KERNEL_OK")
</pallas_src>

<mosaic_0001>
module attributes {stable_mosaic.version = 11 : i64} {
  func.func @deepar_kernel(%arg0: memref<128x8xf32, #tpu.memory_space<vmem>>, %arg1: memref<40x1152xf32, #tpu.memory_space<vmem>>, %arg2: memref<16x384xf32, #tpu.memory_space<vmem>>, %arg3: memref<144x128xf32, #tpu.memory_space<vmem>>, %arg4: memref<64x128xf32, #tpu.memory_space<vmem>>, %arg5: memref<64x128xf32, #tpu.memory_space<vmem>>, %arg6: memref<128x384xf32, #tpu.memory_space<vmem>>) attributes {dimension_semantics = [], scalar_prefetch = 0 : i64, scratch_operands = 2 : i64, tpu.core_type = #tpu.core_type<tc>} {
    %c0 = arith.constant 0 : index
    %c0_0 = arith.constant 0 : index
    %0 = vector.load %arg1[%c0, %c0_0] : memref<40x1152xf32, #tpu.memory_space<vmem>>, vector<40x384xf32>
    %c0_1 = arith.constant 0 : index
    %c384 = arith.constant 384 : index
    %1 = vector.load %arg1[%c0_1, %c384] : memref<40x1152xf32, #tpu.memory_space<vmem>>, vector<40x384xf32>
    %c0_2 = arith.constant 0 : index
    %c768 = arith.constant 768 : index
    %2 = vector.load %arg1[%c0_2, %c768] : memref<40x1152xf32, #tpu.memory_space<vmem>>, vector<40x384xf32>
    %c0_3 = arith.constant 0 : index
    %c0_4 = arith.constant 0 : index
    %3 = vector.load %arg2[%c0_3, %c0_4] : memref<16x384xf32, #tpu.memory_space<vmem>>, vector<8x384xf32>
    %c8 = arith.constant 8 : index
    %c0_5 = arith.constant 0 : index
    %4 = vector.load %arg2[%c8, %c0_5] : memref<16x384xf32, #tpu.memory_space<vmem>>, vector<1x384xf32>
    %c9 = arith.constant 9 : index
    %c0_6 = arith.constant 0 : index
    %5 = vector.load %arg2[%c9, %c0_6] : memref<16x384xf32, #tpu.memory_space<vmem>>, vector<1x384xf32>
    %c10 = arith.constant 10 : index
    %c256 = arith.constant 256 : index
    %6 = vector.load %arg2[%c10, %c256] : memref<16x384xf32, #tpu.memory_space<vmem>>, vector<1x128xf32>
    %c11 = arith.constant 11 : index
    %c256_7 = arith.constant 256 : index
    %7 = vector.load %arg2[%c11, %c256_7] : memref<16x384xf32, #tpu.memory_space<vmem>>, vector<1x128xf32>
    %c0_8 = arith.constant 0 : index
    %c0_9 = arith.constant 0 : index
    %8 = vector.load %arg3[%c0_8, %c0_9] : memref<144x128xf32, #tpu.memory_space<vmem>>, vector<128x128xf32>
    %c128 = arith.constant 128 : index
    %c0_10 = arith.constant 0 : index
    %9 = vector.load %arg3[%c128, %c0_10] : memref<144x128xf32, #tpu.memory_space<vmem>>, vector<8x40xf32>
    %c136 = arith.constant 136 : index
    %c0_11 = arith.constant 0 : index
    %10 = vector.load %arg3[%c136, %c0_11] : memref<144x128xf32, #tpu.memory_space<vmem>>, vector<1x40xf32>
    %c137 = arith.constant 137 : index
    %c0_12 = arith.constant 0 : index
    %11 = vector.load %arg3[%c137, %c0_12] : memref<144x128xf32, #tpu.memory_space<vmem>>, vector<1x40xf32>
    %c138 = arith.constant 138 : index
    %c0_13 = arith.constant 0 : index
    %12 = vector.load %arg3[%c138, %c0_13] : memref<144x128xf32, #tpu.memory_space<vmem>>, vector<1x40xf32>
    %c139 = arith.constant 139 : index
    %c0_14 = arith.constant 0 : index
    %13 = vector.load %arg3[%c139, %c0_14] : memref<144x128xf32, #tpu.memory_space<vmem>>, vector<1x128xf32>
    %c0_15 = arith.constant 0 : index
    %c0_16 = arith.constant 0 : index
    %14 = vector.load %arg0[%c0_15, %c0_16] : memref<128x8xf32, #tpu.memory_space<vmem>>, vector<128x8xf32>
    %15 = vector.extract_strided_slice %14 {offsets = [0, 0], sizes = [64, 8], strides = [1, 1]} : vector<128x8xf32> to vector<64x8xf32>
    %16 = vector.extract_strided_slice %14 {offsets = [64, 0], sizes = [64, 8], strides = [1, 1]} : vector<128x8xf32> to vector<64x8xf32>
    %cst = arith.constant dense<0.000000e+00> : vector<64x384xf32>
    %17 = tpu.matmul %15, %3, %cst {dimension_numbers = #tpu.dot_dimension_numbers<[1], [0], [0], [1], [0, 0, 1, 1], [], []>} : vector<64x8xf32>, vector<8x384xf32>, vector<64x384xf32> -> vector<64x384xf32>
    %18 = vector.broadcast %4 : vector<1x384xf32> to vector<64x384xf32>
    %19 = arith.addf %17, %18 : vector<64x384xf32>
    %c0_17 = arith.constant 0 : index
    %c0_18 = arith.constant 0 : index
    %20 = vector.load %arg6[%c0_17, %c0_18] : memref<128x384xf32, #tpu.memory_space<vmem>>, vector<64x384xf32>
    tpu.vector_store %arg6[%c0_17, %c0_18], %19 {strides = array<i32>} : memref<128x384xf32, #tpu.memory_space<vmem>>, vector<64x384xf32>,
    %cst_19 = arith.constant dense<0.000000e+00> : vector<64x40xf32>
    %21 = tpu.matmul %16, %9, %cst_19 {dimension_numbers = #tpu.dot_dimension_numbers<[1], [0], [0], [1], [0, 0, 1, 1], [], []>} : vector<64x8xf32>, vector<8x40xf32>, vector<64x40xf32> -> vector<64x40xf32>
    %22 = vector.broadcast %10 : vector<1x40xf32> to vector<64x40xf32>
    %23 = arith.addf %21, %22 : vector<64x40xf32>
    %cst_20 = arith.constant 0.000000e+00 : f32
    %24 = vector.broadcast %cst_20 : f32 to vector<64x40xf32>
    %25 = arith.maximumf %23, %24 : vector<64x40xf32>
    %cst_21 = arith.constant dense<0.000000e+00> : vector<64xf32>
    %26 = vector.multi_reduction <add>, %25, %cst_21 [1] : vector<64x40xf32> to vector<64xf32>
    %27 = vector.shape_cast %26 : vector<64xf32> to vector<64x1xf32>
    %cst_22 = arith.constant 4.000000e+01 : f32
    %28 = vector.broadcast %cst_22 : f32 to vector<64x1xf32>
    %29 = arith.divf %27, %28 : vector<64x1xf32>
    %30 = vector.broadcast %29 : vector<64x1xf32> to vector<64x40xf32>
    %31 = arith.subf %25, %30 : vector<64x40xf32>
    %32 = arith.mulf %31, %31 : vector<64x40xf32>
    %cst_23 = arith.constant dense<0.000000e+00> : vector<64xf32>
    %33 = vector.multi_reduction <add>, %32, %cst_23 [1] : vector<64x40xf32> to vector<64xf32>
    %34 = vector.shape_cast %33 : vector<64xf32> to vector<64x1xf32>
    %cst_24 = arith.constant 4.000000e+01 : f32
    %35 = vector.broadcast %cst_24 : f32 to vector<64x1xf32>
    %36 = arith.divf %34, %35 : vector<64x1xf32>
    %37 = vector.broadcast %29 : vector<64x1xf32> to vector<64x40xf32>
    %38 = arith.subf %25, %37 : vector<64x40xf32>
    %cst_25 = arith.constant 9.99999974E-6 : f32
    %39 = vector.broadcast %cst_25 : f32 to vector<64x1xf32>
    %40 = arith.addf %36, %39 : vector<64x1xf32>
    %41 = math.rsqrt %40 : vector<64x1xf32>
    %42 = vector.broadcast %41 : vector<64x1xf32> to vector<64x40xf32>
    %43 = arith.mulf %38, %42 : vector<64x40xf32>
    %44 = vector.broadcast %11 : vector<1x40xf32> to vector<64x40xf32>
    %45 = arith.mulf %43, %44 : vector<64x40xf32>
    %46 = vector.broadcast %12 : vector<1x40xf32> to vector<64x40xf32>
    %47 = arith.addf %45, %46 : vector<64x40xf32>
    %cst_26 = arith.constant dense<0.000000e+00> : vector<64x384xf32>
    %48 = tpu.matmul %47, %2, %cst_26 {dimension_numbers = #tpu.dot_dimension_numbers<[1], [0], [0], [1], [0, 0, 1, 1], [], []>} : vector<64x40xf32>, vector<40x384xf32>, vector<64x384xf32> -> vector<64x384xf32>
    %49 = vector.broadcast %5 : vector<1x384xf32> to vector<64x384xf32>
    %50 = arith.addf %48, %49 : vector<64x384xf32>
    %c64 = arith.constant 64 : index
    %c0_27 = arith.constant 0 : index
    %51 = vector.load %arg6[%c64, %c0_27] : memref<128x384xf32, #tpu.memory_space<vmem>>, vector<64x384xf32>
    tpu.vector_store %arg6[%c64, %c0_27], %50 {strides = array<i32>} : memref<128x384xf32, #tpu.memory_space<vmem>>, vector<64x384xf32>,
    %cst_28 = arith.constant 0.000000e+00 : f32
    %52 = vector.broadcast %cst_28 : f32 to vector<8x128xf32>
    %c0_29 = arith.constant 0 : index
    %c0_30 = arith.constant 0 : index
    %53 = vector.load %arg6[%c0_29, %c0_30] : memref<128x384xf32, #tpu.memory_space<vmem>>, vector<8x384xf32>
    %54 = vector.extract_strided_slice %52 {offsets = [0, 0], sizes = [8, 40], strides = [1, 1]} : vector<8x128xf32> to vector<8x40xf32>
    %cst_31 = arith.constant dense<0.000000e+00> : vector<8x384xf32>
    %55 = tpu.matmul %54, %0, %cst_31 {dimension_numbers = #tpu.dot_dimension_numbers<[1], [0], [0], [1], [0, 0, 1, 1], [], []>} : vector<8x40xf32>, vector<40x384xf32>, vector<8x384xf32> -> vector<8x384xf32>
    %56 = vector.extract_strided_slice %53 {offsets = [0, 128], sizes = [8, 128], strides = [1, 1]} : vector<8x384xf32> to vector<8x128xf32>
    %57 = vector.extract_strided_slice %55 {offsets = [0, 128], sizes = [8, 128], strides = [1, 1]} : vector<8x384xf32> to vector<8x128xf32>
    %58 = arith.addf %56, %57 : vector<8x128xf32>
    %59 = arith.negf %58 : vector<8x128xf32>
    %60 = math.exp %59 : vector<8x128xf32>
    %cst_32 = arith.constant 1.000000e+00 : f32
    %61 = vector.broadcast %cst_32 : f32 to vector<8x128xf32>
    %62 = arith.addf %61, %60 : vector<8x128xf32>
    %63 = arith.divf %61, %62 : vector<8x128xf32>
    %64 = vector.extract_strided_slice %53 {offsets = [0, 0], sizes = [8, 128], strides = [1, 1]} : vector<8x384xf32> to vector<8x128xf32>
    %65 = vector.extract_strided_slice %55 {offsets = [0, 0], sizes = [8, 128], strides = [1, 1]} : vector<8x384xf32> to vector<8x128xf32>
    %66 = arith.addf %64, %65 : vector<8x128xf32>
    %67 = arith.negf %66 : vector<8x128xf32>
    %68 = math.exp %67 : vector<8x128xf32>
    %cst_33 = arith.constant 1.000000e+00 : f32
    %69 = vector.broadcast %cst_33 : f32 to vector<8x128xf32>
    %70 = arith.addf %69, %68 : vector<8x128xf32>
    %71 = arith.divf %69, %70 : vector<8x128xf32>
    %72 = vector.extract_strided_slice %53 {offsets = [0, 256], sizes = [8, 128], strides = [1, 1]} : vector<8x384xf32> to vector<8x128xf32>
    %73 = vector.extract_strided_slice %55 {offsets = [0, 256], sizes = [8, 128], strides = [1, 1]} : vector<8x384xf32> to vector<8x128xf32>
    %74 = vector.broadcast %6 : vector<1x128xf32> to vector<8x128xf32>
    %75 = arith.addf %73, %74 : vector<8x128xf32>
    %76 = arith.mulf %71, %75 : vector<8x128xf32>
    %77 = arith.addf %72, %76 : vector<8x128xf32>
    %78 = math.tanh %77 : vector<8x128xf32>
    %79 = arith.subf %52, %78 : vector<8x128xf32>
    %80 = arith.mulf %63, %79 : vector<8x128xf32>
    %81 = arith.addf %78, %80 : vector<8x128xf32>
    %c8_34 = arith.constant 8 : index
    %c0_35 = arith.constant 0 : index
    %82 = vector.load %arg6[%c8_34, %c0_35] : memref<128x384xf32, #tpu.memory_space<vmem>>, vector<8x384xf32>
    %83 = vector.extract_strided_slice %81 {offsets = [0, 0], sizes = [8, 40], strides = [1, 1]} : vector<8x128xf32> to vector<8x40xf32>
    %cst_36 = arith.constant dense<0.000000e+00> : vector<8x384xf32>
    %84 = tpu.matmul %83, %0, %cst_36 {dimension_numbers = #tpu.dot_dimension_numbers<[1], [0], [0], [1], [0, 0, 1, 1], [], []>} : vector<8x40xf32>, vector<40x384xf32>, vector<8x384xf32> -> vector<8x384xf32>
    %85 = vector.extract_strided_slice %82 {offsets = [0, 128], sizes = [8, 128], strides = [1, 1]} : vector<8x384xf32> to vector<8x128xf32>
    %86 = vector.extract_strided_slice %84 {offsets = [0, 128], sizes = [8, 128], strides = [1, 1]} : vector<8x384xf32> to vector<8x128xf32>
    %87 = arith.addf %85, %86 : vector<8x128xf32>
    %88 = arith.negf %87 : vector<8x128xf32>
    %89 = math.exp %88 : vector<8x128xf32>
    %cst_37 = arith.constant 1.000000e+00 : f32
    %90 = vector.broadcast %cst_37 : f32 to vector<8x128xf32>
    %91 = arith.addf %90, %89 : vector<8x128xf32>
    %92 = arith.divf %90, %91 : vector<8x128xf32>
    %93 = vector.extract_strided_slice %82 {offsets = [0, 0], sizes = [8, 128], strides = [1, 1]} : vector<8x384xf32> to vector<8x128xf32>
    %94 = vector.extract_strided_slice %84 {offsets = [0, 0], sizes = [8, 128], strides = [1, 1]} : vector<8x384xf32> to vector<8x128xf32>
    %95 = arith.addf %93, %94 : vector<8x128xf32>
    %96 = arith.negf %95 : vector<8x128xf32>
    %97 = math.exp %96 : vector<8x128xf32>
    %cst_38 = arith.constant 1.000000e+00 : f32
    %98 = vector.broadcast %cst_38 : f32 to vector<8x128xf32>
    %99 = arith.addf %98, %97 : vector<8x128xf32>
    %100 = arith.divf %98, %99 : vector<8x128xf32>
    %101 = vector.extract_strided_slice %82 {offsets = [0, 256], sizes = [8, 128], strides = [1, 1]} : vector<8x384xf32> to vector<8x128xf32>
    %102 = vector.extract_strided_slice %84 {offsets = [0, 256], sizes = [8, 128], strides = [1, 1]} : vector<8x384xf32> to vector<8x128xf32>
    %103 = vector.broadcast %6 : vector<1x128xf32> to vector<8x128xf32>
    %104 = arith.addf %102, %103 : vector<8x128xf32>
    %105 = arith.mulf %100, %104 : vector<8x128xf32>
    %106 = arith.addf %101, %105 : vector<8x128xf32>
    %107 = math.tanh %106 : vector<8x128xf32>
    %108 = arith.subf %81, %107 : vector<8x128xf32>
    %109 = arith.mulf %92, %108 : vector<8x128xf32>
    %110 = arith.addf %107, %109 : vector<8x128xf32>
    %c16 = arith.constant 16 : index
    %c0_39 = arith.constant 0 : index
    %111 = vector.load %arg6[%c16, %c0_39] : memref<128x384xf32, #tpu.memory_space<vmem>>, vector<8x384xf32>
    %112 = vector.extract_strided_slice %110 {offsets = [0, 0], sizes = [8, 40], strides = [1, 1]} : vector<8x128xf32> to vector<8x40xf32>
    %cst_40 = arith.constant dense<0.000000e+00> : vector<8x384xf32>
    %113 = tpu.matmul %112, %0, %cst_40 {dimension_numbers = #tpu.dot_dimension_numbers<[1], [0], [0], [1], [0, 0, 1, 1], [], []>} : vector<8x40xf32>, vector<40x384xf32>, vector<8x384xf32> -> vector<8x384xf32>
    %114 = vector.extract_strided_slice %111 {offsets = [0, 128], sizes = [8, 128], strides = [1, 1]} : vector<8x384xf32> to vector<8x128xf32>
    %115 = vector.extract_strided_slice %113 {offsets = [0, 128], sizes = [8, 128], strides = [1, 1]} : vector<8x384xf32> to vector<8x128xf32>
    %116 = arith.addf %114, %115 : vector<8x128xf32>
    %117 = arith.negf %116 : vector<8x128xf32>
    %118 = math.exp %117 : vector<8x128xf32>
    %cst_41 = arith.constant 1.000000e+00 : f32
    %119 = vector.broadcast %cst_41 : f32 to vector<8x128xf32>
    %120 = arith.addf %119, %118 : vector<8x128xf32>
    %121 = arith.divf %119, %120 : vector<8x128xf32>
    %122 = vector.extract_strided_slice %111 {offsets = [0, 0], sizes = [8, 128], strides = [1, 1]} : vector<8x384xf32> to vector<8x128xf32>
    %123 = vector.extract_strided_slice %113 {offsets = [0, 0], sizes = [8, 128], strides = [1, 1]} : vector<8x384xf32> to vector<8x128xf32>
    %124 = arith.addf %122, %123 : vector<8x128xf32>
    %125 = arith.negf %124 : vector<8x128xf32>
    %126 = math.exp %125 : vector<8x128xf32>
    %cst_42 = arith.constant 1.000000e+00 : f32
    %127 = vector.broadcast %cst_42 : f32 to vector<8x128xf32>
    %128 = arith.addf %127, %126 : vector<8x128xf32>
    %129 = arith.divf %127, %128 : vector<8x128xf32>
    %130 = vector.extract_strided_slice %111 {offsets = [0, 256], sizes = [8, 128], strides = [1, 1]} : vector<8x384xf32> to vector<8x128xf32>
    %131 = vector.extract_strided_slice %113 {offsets = [0, 256], sizes = [8, 128], strides = [1, 1]} : vector<8x384xf32> to vector<8x128xf32>
    %132 = vector.broadcast %6 : vector<1x128xf32> to vector<8x128xf32>
    %133 = arith.addf %131, %132 : vector<8x128xf32>
    %134 = arith.mulf %129, %133 : vector<8x128xf32>
    %135 = arith.addf %130, %134 : vector<8x128xf32>
    %136 = math.tanh %135 : vector<8x128xf32>
    %137 = arith.subf %110, %136 : vector<8x128xf32>
    %138 = arith.mulf %121, %137 : vector<8x128xf32>
    %139 = arith.addf %136, %138 : vector<8x128xf32>
    %c24 = arith.constant 24 : index
    %c0_43 = arith.constant 0 : index
    %140 = vector.load %arg6[%c24, %c0_43] : memref<128x384xf32, #tpu.memory_space<vmem>>, vector<8x384xf32>
    %141 = vector.extract_strided_slice %139 {offsets = [0, 0], sizes = [8, 40], strides = [1, 1]} : vector<8x128xf32> to vector<8x40xf32>
    %cst_44 = arith.constant dense<0.000000e+00> : vector<8x384xf32>
    %142 = tpu.matmul %141, %0, %cst_44 {dimension_numbers = #tpu.dot_dimension_numbers<[1], [0], [0], [1], [0, 0, 1, 1], [], []>} : vector<8x40xf32>, vector<40x384xf32>, vector<8x384xf32> -> vector<8x384xf32>
    %143 = vector.extract_strided_slice %140 {offsets = [0, 128], sizes = [8, 128], strides = [1, 1]} : vector<8x384xf32> to vector<8x128xf32>
    %144 = vector.extract_strided_slice %142 {offsets = [0, 128], sizes = [8, 128], strides = [1, 1]} : vector<8x384xf32> to vector<8x128xf32>
    %145 = arith.addf %143, %144 : vector<8x128xf32>
    %146 = arith.negf %145 : vector<8x128xf32>
    %147 = math.exp %146 : vector<8x128xf32>
    %cst_45 = arith.constant 1.000000e+00 : f32
    %148 = vector.broadcast %cst_45 : f32 to vector<8x128xf32>
    %149 = arith.addf %148, %147 : vector<8x128xf32>
    %150 = arith.divf %148, %149 : vector<8x128xf32>
    %151 = vector.extract_strided_slice %140 {offsets = [0, 0], sizes = [8, 128], strides = [1, 1]} : vector<8x384xf32> to vector<8x128xf32>
    %152 = vector.extract_strided_slice %142 {offsets = [0, 0], sizes = [8, 128], strides = [1, 1]} : vector<8x384xf32> to vector<8x128xf32>
    %153 = arith.addf %151, %152 : vector<8x128xf32>
    %154 = arith.negf %153 : vector<8x128xf32>
    %155 = math.exp %154 : vector<8x128xf32>
    %cst_46 = arith.constant 1.000000e+00 : f32
    %156 = vector.broadcast %cst_46 : f32 to vector<8x128xf32>
    %157 = arith.addf %156, %155 : vector<8x128xf32>
    %158 = arith.divf %156, %157 : vector<8x128xf32>
    %159 = vector.extract_strided_slice %140 {offsets = [0, 256], sizes = [8, 128], strides = [1, 1]} : vector<8x384xf32> to vector<8x128xf32>
    %160 = vector.extract_strided_slice %142 {offsets = [0, 256], sizes = [8, 128], strides = [1, 1]} : vector<8x384xf32> to vector<8x128xf32>
    %161 = vector.broadcast %6 : vector<1x128xf32> to vector<8x128xf32>
    %162 = arith.addf %160, %161 : vector<8x128xf32>
    %163 = arith.mulf %158, %162 : vector<8x128xf32>
    %164 = arith.addf %159, %163 : vector<8x128xf32>
    %165 = math.tanh %164 : vector<8x128xf32>
    %166 = arith.subf %139, %165 : vector<8x128xf32>
    %167 = arith.mulf %150, %166 : vector<8x128xf32>
    %168 = arith.addf %165, %167 : vector<8x128xf32>
    %c32 = arith.constant 32 : index
    %c0_47 = arith.constant 0 : index
    %169 = vector.load %arg6[%c32, %c0_47] : memref<128x384xf32, #tpu.memory_space<vmem>>, vector<8x384xf32>
    %170 = vector.extract_strided_slice %168 {offsets = [0, 0], sizes = [8, 40], strides = [1, 1]} : vector<8x128xf32> to vector<8x40xf32>
    %cst_48 = arith.constant dense<0.000000e+00> : vector<8x384xf32>
    %171 = tpu.matmul %170, %0, %cst_48 {dimension_numbers = #tpu.dot_dimension_numbers<[1], [0], [0], [1], [0, 0, 1, 1], [], []>} : vector<8x40xf32>, vector<40x384xf32>, vector<8x384xf32> -> vector<8x384xf32>
    %172 = vector.extract_strided_slice %169 {offsets = [0, 128], sizes = [8, 128], strides = [1, 1]} : vector<8x384xf32> to vector<8x128xf32>
    %173 = vector.extract_strided_slice %171 {offsets = [0, 128], sizes = [8, 128], strides = [1, 1]} : vector<8x384xf32> to vector<8x128xf32>
    %174 = arith.addf %172, %173 : vector<8x128xf32>
    %175 = arith.negf %174 : vector<8x128xf32>
    %176 = math.exp %175 : vector<8x128xf32>
    %cst_49 = arith.constant 1.000000e+00 : f32
    %177 = vector.broadcast %cst_49 : f32 to vector<8x128xf32>
    %178 = arith.addf %177, %176 : vector<8x128xf32>
    %179 = arith.divf %177, %178 : vector<8x128xf32>
    %180 = vector.extract_strided_slice %169 {offsets = [0, 0], sizes = [8, 128], strides = [1, 1]} : vector<8x384xf32> to vector<8x128xf32>
    %181 = vector.extract_strided_slice %171 {offsets = [0, 0], sizes = [8, 128], strides = [1, 1]} : vector<8x384xf32> to vector<8x128xf32>
    %182 = arith.addf %180, %181 : vector<8x128xf32>
    %183 = arith.negf %182 : vector<8x128xf32>
    %184 = math.exp %183 : vector<8x128xf32>
    %cst_50 = arith.constant 1.000000e+00 : f32
    %185 = vector.broadcast %cst_50 : f32 to vector<8x128xf32>
    %186 = arith.addf %185, %184 : vector<8x128xf32>
    %187 = arith.divf %185, %186 : vector<8x128xf32>
    %188 = vector.extract_strided_slice %169 {offsets = [0, 256], sizes = [8, 128], strides = [1, 1]} : vector<8x384xf32> to vector<8x128xf32>
    %189 = vector.extract_strided_slice %171 {offsets = [0, 256], sizes = [8, 128], strides = [1, 1]} : vector<8x384xf32> to vector<8x128xf32>
    %190 = vector.broadcast %6 : vector<1x128xf32> to vector<8x128xf32>
    %191 = arith.addf %189, %190 : vector<8x128xf32>
    %192 = arith.mulf %187, %191 : vector<8x128xf32>
    %193 = arith.addf %188, %192 : vector<8x128xf32>
    %194 = math.tanh %193 : vector<8x128xf32>
    %195 = arith.subf %168, %194 : vector<8x128xf32>
    %196 = arith.mulf %179, %195 : vector<8x128xf32>
    %197 = arith.addf %194, %196 : vector<8x128xf32>
    %c40 = arith.constant 40 : index
    %c0_51 = arith.constant 0 : index
    %198 = vector.load %arg6[%c40, %c0_51] : memref<128x384xf32, #tpu.memory_space<vmem>>, vector<8x384xf32>
    %199 = vector.extract_strided_slice %197 {offsets = [0, 0], sizes = [8, 40], strides = [1, 1]} : vector<8x128xf32> to vector<8x40xf32>
    %cst_52 = arith.constant dense<0.000000e+00> : vector<8x384xf32>
    %200 = tpu.matmul %199, %0, %cst_52 {dimension_numbers = #tpu.dot_dimension_numbers<[1], [0], [0], [1], [0, 0, 1, 1], [], []>} : vector<8x40xf32>, vector<40x384xf32>, vector<8x384xf32> -> vector<8x384xf32>
    %201 = vector.extract_strided_slice %198 {offsets = [0, 128], sizes = [8, 128], strides = [1, 1]} : vector<8x384xf32> to vector<8x128xf32>
    %202 = vector.extract_strided_slice %200 {offsets = [0, 128], sizes = [8, 128], strides = [1, 1]} : vector<8x384xf32> to vector<8x128xf32>
    %203 = arith.addf %201, %202 : vector<8x128xf32>
    %204 = arith.negf %203 : vector<8x128xf32>
    %205 = math.exp %204 : vector<8x128xf32>
    %cst_53 = arith.constant 1.000000e+00 : f32
    %206 = vector.broadcast %cst_53 : f32 to vector<8x128xf32>
    %207 = arith.addf %206, %205 : vector<8x128xf32>
    %208 = arith.divf %206, %207 : vector<8x128xf32>
    %209 = vector.extract_strided_slice %198 {offsets = [0, 0], sizes = [8, 128], strides = [1, 1]} : vector<8x384xf32> to vector<8x128xf32>
    %210 = vector.extract_strided_slice %200 {offsets = [0, 0], sizes = [8, 128], strides = [1, 1]} : vector<8x384xf32> to vector<8x128xf32>
    %211 = arith.addf %209, %210 : vector<8x128xf32>
    %212 = arith.negf %211 : vector<8x128xf32>
    %213 = math.exp %212 : vector<8x128xf32>
    %cst_54 = arith.constant 1.000000e+00 : f32
    %214 = vector.broadcast %cst_54 : f32 to vector<8x128xf32>
    %215 = arith.addf %214, %213 : vector<8x128xf32>
    %216 = arith.divf %214, %215 : vector<8x128xf32>
    %217 = vector.extract_strided_slice %198 {offsets = [0, 256], sizes = [8, 128], strides = [1, 1]} : vector<8x384xf32> to vector<8x128xf32>
    %218 = vector.extract_strided_slice %200 {offsets = [0, 256], sizes = [8, 128], strides = [1, 1]} : vector<8x384xf32> to vector<8x128xf32>
    %219 = vector.broadcast %6 : vector<1x128xf32> to vector<8x128xf32>
    %220 = arith.addf %218, %219 : vector<8x128xf32>
    %221 = arith.mulf %216, %220 : vector<8x128xf32>
    %222 = arith.addf %217, %221 : vector<8x128xf32>
    %223 = math.tanh %222 : vector<8x128xf32>
    %224 = arith.subf %197, %223 : vector<8x128xf32>
    %225 = arith.mulf %208, %224 : vector<8x128xf32>
    %226 = arith.addf %223, %225 : vector<8x128xf32>
    %c48 = arith.constant 48 : index
    %c0_55 = arith.constant 0 : index
    %227 = vector.load %arg6[%c48, %c0_55] : memref<128x384xf32, #tpu.memory_space<vmem>>, vector<8x384xf32>
    %228 = vector.extract_strided_slice %226 {offsets = [0, 0], sizes = [8, 40], strides = [1, 1]} : vector<8x128xf32> to vector<8x40xf32>
    %cst_56 = arith.constant dense<0.000000e+00> : vector<8x384xf32>
    %229 = tpu.matmul %228, %0, %cst_56 {dimension_numbers = #tpu.dot_dimension_numbers<[1], [0], [0], [1], [0, 0, 1, 1], [], []>} : vector<8x40xf32>, vector<40x384xf32>, vector<8x384xf32> -> vector<8x384xf32>
    %230 = vector.extract_strided_slice %227 {offsets = [0, 128], sizes = [8, 128], strides = [1, 1]} : vector<8x384xf32> to vector<8x128xf32>
    %231 = vector.extract_strided_slice %229 {offsets = [0, 128], sizes = [8, 128], strides = [1, 1]} : vector<8x384xf32> to vector<8x128xf32>
    %232 = arith.addf %230, %231 : vector<8x128xf32>
    %233 = arith.negf %232 : vector<8x128xf32>
    %234 = math.exp %233 : vector<8x128xf32>
    %cst_57 = arith.constant 1.000000e+00 : f32
    %235 = vector.broadcast %cst_57 : f32 to vector<8x128xf32>
    %236 = arith.addf %235, %234 : vector<8x128xf32>
    %237 = arith.divf %235, %236 : vector<8x128xf32>
    %238 = vector.extract_strided_slice %227 {offsets = [0, 0], sizes = [8, 128], strides = [1, 1]} : vector<8x384xf32> to vector<8x128xf32>
    %239 = vector.extract_strided_slice %229 {offsets = [0, 0], sizes = [8, 128], strides = [1, 1]} : vector<8x384xf32> to vector<8x128xf32>
    %240 = arith.addf %238, %239 : vector<8x128xf32>
    %241 = arith.negf %240 : vector<8x128xf32>
    %242 = math.exp %241 : vector<8x128xf32>
    %cst_58 = arith.constant 1.000000e+00 : f32
    %243 = vector.broadcast %cst_58 : f32 to vector<8x128xf32>
    %244 = arith.addf %243, %242 : vector<8x128xf32>
    %245 = arith.divf %243, %244 : vector<8x128xf32>
    %246 = vector.extract_strided_slice %227 {offsets = [0, 256], sizes = [8, 128], strides = [1, 1]} : vector<8x384xf32> to vector<8x128xf32>
    %247 = vector.extract_strided_slice %229 {offsets = [0, 256], sizes = [8, 128], strides = [1, 1]} : vector<8x384xf32> to vector<8x128xf32>
    %248 = vector.broadcast %6 : vector<1x128xf32> to vector<8x128xf32>
    %249 = arith.addf %247, %248 : vector<8x128xf32>
    %250 = arith.mulf %245, %249 : vector<8x128xf32>
    %251 = arith.addf %246, %250 : vector<8x128xf32>
    %252 = math.tanh %251 : vector<8x128xf32>
    %253 = arith.subf %226, %252 : vector<8x128xf32>
    %254 = arith.mulf %237, %253 : vector<8x128xf32>
    %255 = arith.addf %252, %254 : vector<8x128xf32>
    %c56 = arith.constant 56 : index
    %c0_59 = arith.constant 0 : index
    %256 = vector.load %arg6[%c56, %c0_59] : memref<128x384xf32, #tpu.memory_space<vmem>>, vector<8x384xf32>
    %257 = vector.extract_strided_slice %255 {offsets = [0, 0], sizes = [8, 40], strides = [1, 1]} : vector<8x128xf32> to vector<8x40xf32>
    %cst_60 = arith.constant dense<0.000000e+00> : vector<8x384xf32>
    %258 = tpu.matmul %257, %0, %cst_60 {dimension_numbers = #tpu.dot_dimension_numbers<[1], [0], [0], [1], [0, 0, 1, 1], [], []>} : vector<8x40xf32>, vector<40x384xf32>, vector<8x384xf32> -> vector<8x384xf32>
    %259 = vector.extract_strided_slice %256 {offsets = [0, 128], sizes = [8, 128], strides = [1, 1]} : vector<8x384xf32> to vector<8x128xf32>
    %260 = vector.extract_strided_slice %258 {offsets = [0, 128], sizes = [8, 128], strides = [1, 1]} : vector<8x384xf32> to vector<8x128xf32>
    %261 = arith.addf %259, %260 : vector<8x128xf32>
    %262 = arith.negf %261 : vector<8x128xf32>
    %263 = math.exp %262 : vector<8x128xf32>
    %cst_61 = arith.constant 1.000000e+00 : f32
    %264 = vector.broadcast %cst_61 : f32 to vector<8x128xf32>
    %265 = arith.addf %264, %263 : vector<8x128xf32>
    %266 = arith.divf %264, %265 : vector<8x128xf32>
    %267 = vector.extract_strided_slice %256 {offsets = [0, 0], sizes = [8, 128], strides = [1, 1]} : vector<8x384xf32> to vector<8x128xf32>
    %268 = vector.extract_strided_slice %258 {offsets = [0, 0], sizes = [8, 128], strides = [1, 1]} : vector<8x384xf32> to vector<8x128xf32>
    %269 = arith.addf %267, %268 : vector<8x128xf32>
    %270 = arith.negf %269 : vector<8x128xf32>
    %271 = math.exp %270 : vector<8x128xf32>
    %cst_62 = arith.constant 1.000000e+00 : f32
    %272 = vector.broadcast %cst_62 : f32 to vector<8x128xf32>
    %273 = arith.addf %272, %271 : vector<8x128xf32>
    %274 = arith.divf %272, %273 : vector<8x128xf32>
    %275 = vector.extract_strided_slice %256 {offsets = [0, 256], sizes = [8, 128], strides = [1, 1]} : vector<8x384xf32> to vector<8x128xf32>
    %276 = vector.extract_strided_slice %258 {offsets = [0, 256], sizes = [8, 128], strides = [1, 1]} : vector<8x384xf32> to vector<8x128xf32>
    %277 = vector.broadcast %6 : vector<1x128xf32> to vector<8x128xf32>
    %278 = arith.addf %276, %277 : vector<8x128xf32>
    %279 = arith.mulf %274, %278 : vector<8x128xf32>
    %280 = arith.addf %275, %279 : vector<8x128xf32>
    %281 = math.tanh %280 : vector<8x128xf32>
    %282 = arith.subf %255, %281 : vector<8x128xf32>
    %283 = arith.mulf %266, %282 : vector<8x128xf32>
    %284 = arith.addf %281, %283 : vector<8x128xf32>
    %c64_63 = arith.constant 64 : index
    %c0_64 = arith.constant 0 : index
    %285 = vector.load %arg6[%c64_63, %c0_64] : memref<128x384xf32, #tpu.memory_space<vmem>>, vector<8x384xf32>
    %286 = vector.extract_strided_slice %284 {offsets = [0, 0], sizes = [8, 40], strides = [1, 1]} : vector<8x128xf32> to vector<8x40xf32>
    %cst_65 = arith.constant dense<0.000000e+00> : vector<8x384xf32>
    %287 = tpu.matmul %286, %1, %cst_65 {dimension_numbers = #tpu.dot_dimension_numbers<[1], [0], [0], [1], [0, 0, 1, 1], [], []>} : vector<8x40xf32>, vector<40x384xf32>, vector<8x384xf32> -> vector<8x384xf32>
    %288 = vector.extract_strided_slice %285 {offsets = [0, 128], sizes = [8, 128], strides = [1, 1]} : vector<8x384xf32> to vector<8x128xf32>
    %289 = vector.extract_strided_slice %287 {offsets = [0, 128], sizes = [8, 128], strides = [1, 1]} : vector<8x384xf32> to vector<8x128xf32>
    %290 = arith.addf %288, %289 : vector<8x128xf32>
    %291 = arith.negf %290 : vector<8x128xf32>
    %292 = math.exp %291 : vector<8x128xf32>
    %cst_66 = arith.constant 1.000000e+00 : f32
    %293 = vector.broadcast %cst_66 : f32 to vector<8x128xf32>
    %294 = arith.addf %293, %292 : vector<8x128xf32>
    %295 = arith.divf %293, %294 : vector<8x128xf32>
    %296 = vector.extract_strided_slice %285 {offsets = [0, 0], sizes = [8, 128], strides = [1, 1]} : vector<8x384xf32> to vector<8x128xf32>
    %297 = vector.extract_strided_slice %287 {offsets = [0, 0], sizes = [8, 128], strides = [1, 1]} : vector<8x384xf32> to vector<8x128xf32>
    %298 = arith.addf %296, %297 : vector<8x128xf32>
    %299 = arith.negf %298 : vector<8x128xf32>
    %300 = math.exp %299 : vector<8x128xf32>
    %cst_67 = arith.constant 1.000000e+00 : f32
    %301 = vector.broadcast %cst_67 : f32 to vector<8x128xf32>
    %302 = arith.addf %301, %300 : vector<8x128xf32>
    %303 = arith.divf %301, %302 : vector<8x128xf32>
    %304 = vector.extract_strided_slice %285 {offsets = [0, 256], sizes = [8, 128], strides = [1, 1]} : vector<8x384xf32> to vector<8x128xf32>
    %305 = vector.extract_strided_slice %287 {offsets = [0, 256], sizes = [8, 128], strides = [1, 1]} : vector<8x384xf32> to vector<8x128xf32>
    %306 = vector.broadcast %7 : vector<1x128xf32> to vector<8x128xf32>
    %307 = arith.addf %305, %306 : vector<8x128xf32>
    %308 = arith.mulf %303, %307 : vector<8x128xf32>
    %309 = arith.addf %304, %308 : vector<8x128xf32>
    %310 = math.tanh %309 : vector<8x128xf32>
    %311 = arith.subf %284, %310 : vector<8x128xf32>
    %312 = arith.mulf %295, %311 : vector<8x128xf32>
    %313 = arith.addf %310, %312 : vector<8x128xf32>
    %c0_68 = arith.constant 0 : index
    %c0_69 = arith.constant 0 : index
    %314 = vector.load %arg5[%c0_68, %c0_69] : memref<64x128xf32, #tpu.memory_space<vmem>>, vector<8x128xf32>
    tpu.vector_store %arg5[%c0_68, %c0_69], %313 {strides = array<i32>} : memref<64x128xf32, #tpu.memory_space<vmem>>, vector<8x128xf32>,
    %c72 = arith.constant 72 : index
    %c0_70 = arith.constant 0 : index
    %315 = vector.load %arg6[%c72, %c0_70] : memref<128x384xf32, #tpu.memory_space<vmem>>, vector<8x384xf32>
    %316 = vector.extract_strided_slice %313 {offsets = [0, 0], sizes = [8, 40], strides = [1, 1]} : vector<8x128xf32> to vector<8x40xf32>
    %cst_71 = arith.constant dense<0.000000e+00> : vector<8x384xf32>
    %317 = tpu.matmul %316, %1, %cst_71 {dimension_numbers = #tpu.dot_dimension_numbers<[1], [0], [0], [1], [0, 0, 1, 1], [], []>} : vector<8x40xf32>, vector<40x384xf32>, vector<8x384xf32> -> vector<8x384xf32>
    %318 = vector.extract_strided_slice %315 {offsets = [0, 128], sizes = [8, 128], strides = [1, 1]} : vector<8x384xf32> to vector<8x128xf32>
    %319 = vector.extract_strided_slice %317 {offsets = [0, 128], sizes = [8, 128], strides = [1, 1]} : vector<8x384xf32> to vector<8x128xf32>
    %320 = arith.addf %318, %319 : vector<8x128xf32>
    %321 = arith.negf %320 : vector<8x128xf32>
    %322 = math.exp %321 : vector<8x128xf32>
    %cst_72 = arith.constant 1.000000e+00 : f32
    %323 = vector.broadcast %cst_72 : f32 to vector<8x128xf32>
    %324 = arith.addf %323, %322 : vector<8x128xf32>
    %325 = arith.divf %323, %324 : vector<8x128xf32>
    %326 = vector.extract_strided_slice %315 {offsets = [0, 0], sizes = [8, 128], strides = [1, 1]} : vector<8x384xf32> to vector<8x128xf32>
    %327 = vector.extract_strided_slice %317 {offsets = [0, 0], sizes = [8, 128], strides = [1, 1]} : vector<8x384xf32> to vector<8x128xf32>
    %328 = arith.addf %326, %327 : vector<8x128xf32>
    %329 = arith.negf %328 : vector<8x128xf32>
    %330 = math.exp %329 : vector<8x128xf32>
    %cst_73 = arith.constant 1.000000e+00 : f32
    %331 = vector.broadcast %cst_73 : f32 to vector<8x128xf32>
    %332 = arith.addf %331, %330 : vector<8x128xf32>
    %333 = arith.divf %331, %332 : vector<8x128xf32>
    %334 = vector.extract_strided_slice %315 {offsets = [0, 256], sizes = [8, 128], strides = [1, 1]} : vector<8x384xf32> to vector<8x128xf32>
    %335 = vector.extract_strided_slice %317 {offsets = [0, 256], sizes = [8, 128], strides = [1, 1]} : vector<8x384xf32> to vector<8x128xf32>
    %336 = vector.broadcast %7 : vector<1x128xf32> to vector<8x128xf32>
    %337 = arith.addf %335, %336 : vector<8x128xf32>
    %338 = arith.mulf %333, %337 : vector<8x128xf32>
    %339 = arith.addf %334, %338 : vector<8x128xf32>
    %340 = math.tanh %339 : vector<8x128xf32>
    %341 = arith.subf %313, %340 : vector<8x128xf32>
    %342 = arith.mulf %325, %341 : vector<8x128xf32>
    %343 = arith.addf %340, %342 : vector<8x128xf32>
    %c8_74 = arith.constant 8 : index
    %c0_75 = arith.constant 0 : index
    %344 = vector.load %arg5[%c8_74, %c0_75] : memref<64x128xf32, #tpu.memory_space<vmem>>, vector<8x128xf32>
    tpu.vector_store %arg5[%c8_74, %c0_75], %343 {strides = array<i32>} : memref<64x128xf32, #tpu.memory_space<vmem>>, vector<8x128xf32>,
    %c80 = arith.constant 80 : index
    %c0_76 = arith.constant 0 : index
    %345 = vector.load %arg6[%c80, %c0_76] : memref<128x384xf32, #tpu.memory_space<vmem>>, vector<8x384xf32>
    %346 = vector.extract_strided_slice %343 {offsets = [0, 0], sizes = [8, 40], strides = [1, 1]} : vector<8x128xf32> to vector<8x40xf32>
    %cst_77 = arith.constant dense<0.000000e+00> : vector<8x384xf32>
    %347 = tpu.matmul %346, %1, %cst_77 {dimension_numbers = #tpu.dot_dimension_numbers<[1], [0], [0], [1], [0, 0, 1, 1], [], []>} : vector<8x40xf32>, vector<40x384xf32>, vector<8x384xf32> -> vector<8x384xf32>
    %348 = vector.extract_strided_slice %345 {offsets = [0, 128], sizes = [8, 128], strides = [1, 1]} : vector<8x384xf32> to vector<8x128xf32>
    %349 = vector.extract_strided_slice %347 {offsets = [0, 128], sizes = [8, 128], strides = [1, 1]} : vector<8x384xf32> to vector<8x128xf32>
    %350 = arith.addf %348, %349 : vector<8x128xf32>
    %351 = arith.negf %350 : vector<8x128xf32>
    %352 = math.exp %351 : vector<8x128xf32>
    %cst_78 = arith.constant 1.000000e+00 : f32
    %353 = vector.broadcast %cst_78 : f32 to vector<8x128xf32>
    %354 = arith.addf %353, %352 : vector<8x128xf32>
    %355 = arith.divf %353, %354 : vector<8x128xf32>
    %356 = vector.extract_strided_slice %345 {offsets = [0, 0], sizes = [8, 128], strides = [1, 1]} : vector<8x384xf32> to vector<8x128xf32>
    %357 = vector.extract_strided_slice %347 {offsets = [0, 0], sizes = [8, 128], strides = [1, 1]} : vector<8x384xf32> to vector<8x128xf32>
    %358 = arith.addf %356, %357 : vector<8x128xf32>
    %359 = arith.negf %358 : vector<8x128xf32>
    %360 = math.exp %359 : vector<8x128xf32>
    %cst_79 = arith.constant 1.000000e+00 : f32
    %361 = vector.broadcast %cst_79 : f32 to vector<8x128xf32>
    %362 = arith.addf %361, %360 : vector<8x128xf32>
    %363 = arith.divf %361, %362 : vector<8x128xf32>
    %364 = vector.extract_strided_slice %345 {offsets = [0, 256], sizes = [8, 128], strides = [1, 1]} : vector<8x384xf32> to vector<8x128xf32>
    %365 = vector.extract_strided_slice %347 {offsets = [0, 256], sizes = [8, 128], strides = [1, 1]} : vector<8x384xf32> to vector<8x128xf32>
    %366 = vector.broadcast %7 : vector<1x128xf32> to vector<8x128xf32>
    %367 = arith.addf %365, %366 : vector<8x128xf32>
    %368 = arith.mulf %363, %367 : vector<8x128xf32>
    %369 = arith.addf %364, %368 : vector<8x128xf32>
    %370 = math.tanh %369 : vector<8x128xf32>
    %371 = arith.subf %343, %370 : vector<8x128xf32>
    %372 = arith.mulf %355, %371 : vector<8x128xf32>
    %373 = arith.addf %370, %372 : vector<8x128xf32>
    %c16_80 = arith.constant 16 : index
    %c0_81 = arith.constant 0 : index
    %374 = vector.load %arg5[%c16_80, %c0_81] : memref<64x128xf32, #tpu.memory_space<vmem>>, vector<8x128xf32>
    tpu.vector_store %arg5[%c16_80, %c0_81], %373 {strides = array<i32>} : memref<64x128xf32, #tpu.memory_space<vmem>>, vector<8x128xf32>,
    %c88 = arith.constant 88 : index
    %c0_82 = arith.constant 0 : index
    %375 = vector.load %arg6[%c88, %c0_82] : memref<128x384xf32, #tpu.memory_space<vmem>>, vector<8x384xf32>
    %376 = vector.extract_strided_slice %373 {offsets = [0, 0], sizes = [8, 40], strides = [1, 1]} : vector<8x128xf32> to vector<8x40xf32>
    %cst_83 = arith.constant dense<0.000000e+00> : vector<8x384xf32>
    %377 = tpu.matmul %376, %1, %cst_83 {dimension_numbers = #tpu.dot_dimension_numbers<[1], [0], [0], [1], [0, 0, 1, 1], [], []>} : vector<8x40xf32>, vector<40x384xf32>, vector<8x384xf32> -> vector<8x384xf32>
    %378 = vector.extract_strided_slice %375 {offsets = [0, 128], sizes = [8, 128], strides = [1, 1]} : vector<8x384xf32> to vector<8x128xf32>
    %379 = vector.extract_strided_slice %377 {offsets = [0, 128], sizes = [8, 128], strides = [1, 1]} : vector<8x384xf32> to vector<8x128xf32>
    %380 = arith.addf %378, %379 : vector<8x128xf32>
    %381 = arith.negf %380 : vector<8x128xf32>
    %382 = math.exp %381 : vector<8x128xf32>
    %cst_84 = arith.constant 1.000000e+00 : f32
    %383 = vector.broadcast %cst_84 : f32 to vector<8x128xf32>
    %384 = arith.addf %383, %382 : vector<8x128xf32>
    %385 = arith.divf %383, %384 : vector<8x128xf32>
    %386 = vector.extract_strided_slice %375 {offsets = [0, 0], sizes = [8, 128], strides = [1, 1]} : vector<8x384xf32> to vector<8x128xf32>
    %387 = vector.extract_strided_slice %377 {offsets = [0, 0], sizes = [8, 128], strides = [1, 1]} : vector<8x384xf32> to vector<8x128xf32>
    %388 = arith.addf %386, %387 : vector<8x128xf32>
    %389 = arith.negf %388 : vector<8x128xf32>
    %390 = math.exp %389 : vector<8x128xf32>
    %cst_85 = arith.constant 1.000000e+00 : f32
    %391 = vector.broadcast %cst_85 : f32 to vector<8x128xf32>
    %392 = arith.addf %391, %390 : vector<8x128xf32>
    %393 = arith.divf %391, %392 : vector<8x128xf32>
    %394 = vector.extract_strided_slice %375 {offsets = [0, 256], sizes = [8, 128], strides = [1, 1]} : vector<8x384xf32> to vector<8x128xf32>
    %395 = vector.extract_strided_slice %377 {offsets = [0, 256], sizes = [8, 128], strides = [1, 1]} : vector<8x384xf32> to vector<8x128xf32>
    %396 = vector.broadcast %7 : vector<1x128xf32> to vector<8x128xf32>
    %397 = arith.addf %395, %396 : vector<8x128xf32>
    %398 = arith.mulf %393, %397 : vector<8x128xf32>
    %399 = arith.addf %394, %398 : vector<8x128xf32>
    %400 = math.tanh %399 : vector<8x128xf32>
    %401 = arith.subf %373, %400 : vector<8x128xf32>
    %402 = arith.mulf %385, %401 : vector<8x128xf32>
    %403 = arith.addf %400, %402 : vector<8x128xf32>
    %c24_86 = arith.constant 24 : index
    %c0_87 = arith.constant 0 : index
    %404 = vector.load %arg5[%c24_86, %c0_87] : memref<64x128xf32, #tpu.memory_space<vmem>>, vector<8x128xf32>
    tpu.vector_store %arg5[%c24_86, %c0_87], %403 {strides = array<i32>} : memref<64x128xf32, #tpu.memory_space<vmem>>, vector<8x128xf32>,
    %c96 = arith.constant 96 : index
    %c0_88 = arith.constant 0 : index
    %405 = vector.load %arg6[%c96, %c0_88] : memref<128x384xf32, #tpu.memory_space<vmem>>, vector<8x384xf32>
    %406 = vector.extract_strided_slice %403 {offsets = [0, 0], sizes = [8, 40], strides = [1, 1]} : vector<8x128xf32> to vector<8x40xf32>
    %cst_89 = arith.constant dense<0.000000e+00> : vector<8x384xf32>
    %407 = tpu.matmul %406, %1, %cst_89 {dimension_numbers = #tpu.dot_dimension_numbers<[1], [0], [0], [1], [0, 0, 1, 1], [], []>} : vector<8x40xf32>, vector<40x384xf32>, vector<8x384xf32> -> vector<8x384xf32>
    %408 = vector.extract_strided_slice %405 {offsets = [0, 128], sizes = [8, 128], strides = [1, 1]} : vector<8x384xf32> to vector<8x128xf32>
    %409 = vector.extract_strided_slice %407 {offsets = [0, 128], sizes = [8, 128], strides = [1, 1]} : vector<8x384xf32> to vector<8x128xf32>
    %410 = arith.addf %408, %409 : vector<8x128xf32>
    %411 = arith.negf %410 : vector<8x128xf32>
    %412 = math.exp %411 : vector<8x128xf32>
    %cst_90 = arith.constant 1.000000e+00 : f32
    %413 = vector.broadcast %cst_90 : f32 to vector<8x128xf32>
    %414 = arith.addf %413, %412 : vector<8x128xf32>
    %415 = arith.divf %413, %414 : vector<8x128xf32>
    %416 = vector.extract_strided_slice %405 {offsets = [0, 0], sizes = [8, 128], strides = [1, 1]} : vector<8x384xf32> to vector<8x128xf32>
    %417 = vector.extract_strided_slice %407 {offsets = [0, 0], sizes = [8, 128], strides = [1, 1]} : vector<8x384xf32> to vector<8x128xf32>
    %418 = arith.addf %416, %417 : vector<8x128xf32>
    %419 = arith.negf %418 : vector<8x128xf32>
    %420 = math.exp %419 : vector<8x128xf32>
    %cst_91 = arith.constant 1.000000e+00 : f32
    %421 = vector.broadcast %cst_91 : f32 to vector<8x128xf32>
    %422 = arith.addf %421, %420 : vector<8x128xf32>
    %423 = arith.divf %421, %422 : vector<8x128xf32>
    %424 = vector.extract_strided_slice %405 {offsets = [0, 256], sizes = [8, 128], strides = [1, 1]} : vector<8x384xf32> to vector<8x128xf32>
    %425 = vector.extract_strided_slice %407 {offsets = [0, 256], sizes = [8, 128], strides = [1, 1]} : vector<8x384xf32> to vector<8x128xf32>
    %426 = vector.broadcast %7 : vector<1x128xf32> to vector<8x128xf32>
    %427 = arith.addf %425, %426 : vector<8x128xf32>
    %428 = arith.mulf %423, %427 : vector<8x128xf32>
    %429 = arith.addf %424, %428 : vector<8x128xf32>
    %430 = math.tanh %429 : vector<8x128xf32>
    %431 = arith.subf %403, %430 : vector<8x128xf32>
    %432 = arith.mulf %415, %431 : vector<8x128xf32>
    %433 = arith.addf %430, %432 : vector<8x128xf32>
    %c32_92 = arith.constant 32 : index
    %c0_93 = arith.constant 0 : index
    %434 = vector.load %arg5[%c32_92, %c0_93] : memref<64x128xf32, #tpu.memory_space<vmem>>, vector<8x128xf32>
    tpu.vector_store %arg5[%c32_92, %c0_93], %433 {strides = array<i32>} : memref<64x128xf32, #tpu.memory_space<vmem>>, vector<8x128xf32>,
    %c104 = arith.constant 104 : index
    %c0_94 = arith.constant 0 : index
    %435 = vector.load %arg6[%c104, %c0_94] : memref<128x384xf32, #tpu.memory_space<vmem>>, vector<8x384xf32>
    %436 = vector.extract_strided_slice %433 {offsets = [0, 0], sizes = [8, 40], strides = [1, 1]} : vector<8x128xf32> to vector<8x40xf32>
    %cst_95 = arith.constant dense<0.000000e+00> : vector<8x384xf32>
    %437 = tpu.matmul %436, %1, %cst_95 {dimension_numbers = #tpu.dot_dimension_numbers<[1], [0], [0], [1], [0, 0, 1, 1], [], []>} : vector<8x40xf32>, vector<40x384xf32>, vector<8x384xf32> -> vector<8x384xf32>
    %438 = vector.extract_strided_slice %435 {offsets = [0, 128], sizes = [8, 128], strides = [1, 1]} : vector<8x384xf32> to vector<8x128xf32>
    %439 = vector.extract_strided_slice %437 {offsets = [0, 128], sizes = [8, 128], strides = [1, 1]} : vector<8x384xf32> to vector<8x128xf32>
    %440 = arith.addf %438, %439 : vector<8x128xf32>
    %441 = arith.negf %440 : vector<8x128xf32>
    %442 = math.exp %441 : vector<8x128xf32>
    %cst_96 = arith.constant 1.000000e+00 : f32
    %443 = vector.broadcast %cst_96 : f32 to vector<8x128xf32>
    %444 = arith.addf %443, %442 : vector<8x128xf32>
    %445 = arith.divf %443, %444 : vector<8x128xf32>
    %446 = vector.extract_strided_slice %435 {offsets = [0, 0], sizes = [8, 128], strides = [1, 1]} : vector<8x384xf32> to vector<8x128xf32>
    %447 = vector.extract_strided_slice %437 {offsets = [0, 0], sizes = [8, 128], strides = [1, 1]} : vector<8x384xf32> to vector<8x128xf32>
    %448 = arith.addf %446, %447 : vector<8x128xf32>
    %449 = arith.negf %448 : vector<8x128xf32>
    %450 = math.exp %449 : vector<8x128xf32>
    %cst_97 = arith.constant 1.000000e+00 : f32
    %451 = vector.broadcast %cst_97 : f32 to vector<8x128xf32>
    %452 = arith.addf %451, %450 : vector<8x128xf32>
    %453 = arith.divf %451, %452 : vector<8x128xf32>
    %454 = vector.extract_strided_slice %435 {offsets = [0, 256], sizes = [8, 128], strides = [1, 1]} : vector<8x384xf32> to vector<8x128xf32>
    %455 = vector.extract_strided_slice %437 {offsets = [0, 256], sizes = [8, 128], strides = [1, 1]} : vector<8x384xf32> to vector<8x128xf32>
    %456 = vector.broadcast %7 : vector<1x128xf32> to vector<8x128xf32>
    %457 = arith.addf %455, %456 : vector<8x128xf32>
    %458 = arith.mulf %453, %457 : vector<8x128xf32>
    %459 = arith.addf %454, %458 : vector<8x128xf32>
    %460 = math.tanh %459 : vector<8x128xf32>
    %461 = arith.subf %433, %460 : vector<8x128xf32>
    %462 = arith.mulf %445, %461 : vector<8x128xf32>
    %463 = arith.addf %460, %462 : vector<8x128xf32>
    %c40_98 = arith.constant 40 : index
    %c0_99 = arith.constant 0 : index
    %464 = vector.load %arg5[%c40_98, %c0_99] : memref<64x128xf32, #tpu.memory_space<vmem>>, vector<8x128xf32>
    tpu.vector_store %arg5[%c40_98, %c0_99], %463 {strides = array<i32>} : memref<64x128xf32, #tpu.memory_space<vmem>>, vector<8x128xf32>,
    %c112 = arith.constant 112 : index
    %c0_100 = arith.constant 0 : index
    %465 = vector.load %arg6[%c112, %c0_100] : memref<128x384xf32, #tpu.memory_space<vmem>>, vector<8x384xf32>
    %466 = vector.extract_strided_slice %463 {offsets = [0, 0], sizes = [8, 40], strides = [1, 1]} : vector<8x128xf32> to vector<8x40xf32>
    %cst_101 = arith.constant dense<0.000000e+00> : vector<8x384xf32>
    %467 = tpu.matmul %466, %1, %cst_101 {dimension_numbers = #tpu.dot_dimension_numbers<[1], [0], [0], [1], [0, 0, 1, 1], [], []>} : vector<8x40xf32>, vector<40x384xf32>, vector<8x384xf32> -> vector<8x384xf32>
    %468 = vector.extract_strided_slice %465 {offsets = [0, 128], sizes = [8, 128], strides = [1, 1]} : vector<8x384xf32> to vector<8x128xf32>
    %469 = vector.extract_strided_slice %467 {offsets = [0, 128], sizes = [8, 128], strides = [1, 1]} : vector<8x384xf32> to vector<8x128xf32>
    %470 = arith.addf %468, %469 : vector<8x128xf32>
    %471 = arith.negf %470 : vector<8x128xf32>
    %472 = math.exp %471 : vector<8x128xf32>
    %cst_102 = arith.constant 1.000000e+00 : f32
    %473 = vector.broadcast %cst_102 : f32 to vector<8x128xf32>
    %474 = arith.addf %473, %472 : vector<8x128xf32>
    %475 = arith.divf %473, %474 : vector<8x128xf32>
    %476 = vector.extract_strided_slice %465 {offsets = [0, 0], sizes = [8, 128], strides = [1, 1]} : vector<8x384xf32> to vector<8x128xf32>
    %477 = vector.extract_strided_slice %467 {offsets = [0, 0], sizes = [8, 128], strides = [1, 1]} : vector<8x384xf32> to vector<8x128xf32>
    %478 = arith.addf %476, %477 : vector<8x128xf32>
    %479 = arith.negf %478 : vector<8x128xf32>
    %480 = math.exp %479 : vector<8x128xf32>
    %cst_103 = arith.constant 1.000000e+00 : f32
    %481 = vector.broadcast %cst_103 : f32 to vector<8x128xf32>
    %482 = arith.addf %481, %480 : vector<8x128xf32>
    %483 = arith.divf %481, %482 : vector<8x128xf32>
    %484 = vector.extract_strided_slice %465 {offsets = [0, 256], sizes = [8, 128], strides = [1, 1]} : vector<8x384xf32> to vector<8x128xf32>
    %485 = vector.extract_strided_slice %467 {offsets = [0, 256], sizes = [8, 128], strides = [1, 1]} : vector<8x384xf32> to vector<8x128xf32>
    %486 = vector.broadcast %7 : vector<1x128xf32> to vector<8x128xf32>
    %487 = arith.addf %485, %486 : vector<8x128xf32>
    %488 = arith.mulf %483, %487 : vector<8x128xf32>
    %489 = arith.addf %484, %488 : vector<8x128xf32>
    %490 = math.tanh %489 : vector<8x128xf32>
    %491 = arith.subf %463, %490 : vector<8x128xf32>
    %492 = arith.mulf %475, %491 : vector<8x128xf32>
    %493 = arith.addf %490, %492 : vector<8x128xf32>
    %c48_104 = arith.constant 48 : index
    %c0_105 = arith.constant 0 : index
    %494 = vector.load %arg5[%c48_104, %c0_105] : memref<64x128xf32, #tpu.memory_space<vmem>>, vector<8x128xf32>
    tpu.vector_store %arg5[%c48_104, %c0_105], %493 {strides = array<i32>} : memref<64x128xf32, #tpu.memory_space<vmem>>, vector<8x128xf32>,
    %c120 = arith.constant 120 : index
    %c0_106 = arith.constant 0 : index
    %495 = vector.load %arg6[%c120, %c0_106] : memref<128x384xf32, #tpu.memory_space<vmem>>, vector<8x384xf32>
    %496 = vector.extract_strided_slice %493 {offsets = [0, 0], sizes = [8, 40], strides = [1, 1]} : vector<8x128xf32> to vector<8x40xf32>
    %cst_107 = arith.constant dense<0.000000e+00> : vector<8x384xf32>
    %497 = tpu.matmul %496, %1, %cst_107 {dimension_numbers = #tpu.dot_dimension_numbers<[1], [0], [0], [1], [0, 0, 1, 1], [], []>} : vector<8x40xf32>, vector<40x384xf32>, vector<8x384xf32> -> vector<8x384xf32>
    %498 = vector.extract_strided_slice %495 {offsets = [0, 128], sizes = [8, 128], strides = [1, 1]} : vector<8x384xf32> to vector<8x128xf32>
    %499 = vector.extract_strided_slice %497 {offsets = [0, 128], sizes = [8, 128], strides = [1, 1]} : vector<8x384xf32> to vector<8x128xf32>
    %500 = arith.addf %498, %499 : vector<8x128xf32>
    %501 = arith.negf %500 : vector<8x128xf32>
    %502 = math.exp %501 : vector<8x128xf32>
    %cst_108 = arith.constant 1.000000e+00 : f32
    %503 = vector.broadcast %cst_108 : f32 to vector<8x128xf32>
    %504 = arith.addf %503, %502 : vector<8x128xf32>
    %505 = arith.divf %503, %504 : vector<8x128xf32>
    %506 = vector.extract_strided_slice %495 {offsets = [0, 0], sizes = [8, 128], strides = [1, 1]} : vector<8x384xf32> to vector<8x128xf32>
    %507 = vector.extract_strided_slice %497 {offsets = [0, 0], sizes = [8, 128], strides = [1, 1]} : vector<8x384xf32> to vector<8x128xf32>
    %508 = arith.addf %506, %507 : vector<8x128xf32>
    %509 = arith.negf %508 : vector<8x128xf32>
    %510 = math.exp %509 : vector<8x128xf32>
    %cst_109 = arith.constant 1.000000e+00 : f32
    %511 = vector.broadcast %cst_109 : f32 to vector<8x128xf32>
    %512 = arith.addf %511, %510 : vector<8x128xf32>
    %513 = arith.divf %511, %512 : vector<8x128xf32>
    %514 = vector.extract_strided_slice %495 {offsets = [0, 256], sizes = [8, 128], strides = [1, 1]} : vector<8x384xf32> to vector<8x128xf32>
    %515 = vector.extract_strided_slice %497 {offsets = [0, 256], sizes = [8, 128], strides = [1, 1]} : vector<8x384xf32> to vector<8x128xf32>
    %516 = vector.broadcast %7 : vector<1x128xf32> to vector<8x128xf32>
    %517 = arith.addf %515, %516 : vector<8x128xf32>
    %518 = arith.mulf %513, %517 : vector<8x128xf32>
    %519 = arith.addf %514, %518 : vector<8x128xf32>
    %520 = math.tanh %519 : vector<8x128xf32>
    %521 = arith.subf %493, %520 : vector<8x128xf32>
    %522 = arith.mulf %505, %521 : vector<8x128xf32>
    %523 = arith.addf %520, %522 : vector<8x128xf32>
    %c56_110 = arith.constant 56 : index
    %c0_111 = arith.constant 0 : index
    %524 = vector.load %arg5[%c56_110, %c0_111] : memref<64x128xf32, #tpu.memory_space<vmem>>, vector<8x128xf32>
    tpu.vector_store %arg5[%c56_110, %c0_111], %523 {strides = array<i32>} : memref<64x128xf32, #tpu.memory_space<vmem>>, vector<8x128xf32>,
    %c0_112 = arith.constant 0 : index
    %c0_113 = arith.constant 0 : index
    %525 = vector.load %arg5[%c0_112, %c0_113] : memref<64x128xf32, #tpu.memory_space<vmem>>, vector<64x128xf32>
    %cst_114 = arith.constant dense<0.000000e+00> : vector<64x128xf32>
    %526 = tpu.matmul %525, %8, %cst_114 {dimension_numbers = #tpu.dot_dimension_numbers<[1], [0], [0], [1], [0, 0, 1, 1], [], []>} : vector<64x128xf32>, vector<128x128xf32>, vector<64x128xf32> -> vector<64x128xf32>
    %527 = vector.broadcast %13 : vector<1x128xf32> to vector<64x128xf32>
    %528 = arith.addf %526, %527 : vector<64x128xf32>
    %c0_115 = arith.constant 0 : index
    %c0_116 = arith.constant 0 : index
    %529 = vector.load %arg4[%c0_115, %c0_116] : memref<64x128xf32, #tpu.memory_space<vmem>>, vector<64x128xf32>
    tpu.vector_store %arg4[%c0_115, %c0_116], %528 {strides = array<i32>} : memref<64x128xf32, #tpu.memory_space<vmem>>, vector<64x128xf32>,
    return
  }
}

</mosaic_0001>

<llo_original>
// kernel: deepar_forward.1
$region0: #{deepar_forward.1}
  #allocation0 [shape = 'u32[]', space=smem, size = 0x4, offset = 0x4, fixed_abs, tag = 'smem constant byte address 0x4 - core index']
  #allocation1 [shape = 'u32[72,128]{1,0:T(1,128)}', space=vmem, size = 0x9000, scoped, tag = 'internal scratch']
  #allocation2 [shape = 'f32[64,128]{1,0:T(8,128)}', space=vmem, size = 0x8000, scoped, tag = 'scratch operand']
  #allocation3 [shape = 'f32[128,384]{1,0:T(8,128)}', space=vmem, size = 0x30000, scoped, tag = 'scratch operand']
  %s0 = inlined_call_operand.vmem [shape: f32[128,8], index: 0, kind: input, shape index: {}]
  %s1 = inlined_call_operand.vmem [shape: f32[40,1152], index: 1, kind: input, shape index: {}]
  %s2 = inlined_call_operand.hbm [shape: f32[16,384], index: 2, kind: input, shape index: {}]
  %s3 = inlined_call_operand.vmem [shape: f32[144,128], index: 3, kind: input, shape index: {}]
  %s4 = inlined_call_operand.vmem [shape: f32[64,128], index: 4, kind: output, shape index: {}]
  %s5 = sld [smem:[#allocation0]]
  $region30: #{deepar_forward.1} parent=0
    _
  %s7 = ssub.s32 1, %s5
  %s8 = scalar_select 0, %s7, %s5
  $region1: #{deepar_forward.1} parent=0
    #allocation4 [shape = 'u8[24576]{0}', space=vmem, size = 0x6000, scoped, tag = 'input window, operand 2, single buffered']
    #allocation5 [shape = 's32[1]{0}', space=sflag, size = 0x4, scoped, tag = 'scoped memory for deepar_forward.1']
    %9 = vsyncpa [#allocation5], 0
    // Predicated region
    $region2: #{deepar_forward.1} parent=1 // pred_check
      _
    $region3: #{deepar_forward.1} parent=1 // pred_check_branch
      %11 = sbr.rel (0) target = $region5
    $region4: #{deepar_forward.1} parent=1 // pred_region
      _
    $region5: #{deepar_forward.1} parent=1 // pred_fallthru
      _
    // Predicated region
    $region6: #{deepar_forward.1} parent=1 // pred_check
      _
    $region7: #{deepar_forward.1} parent=1 // pred_check_branch
      %13 = sbr.rel (0) target = $region9
    $region8: #{deepar_forward.1} parent=1 // pred_region
      _
    $region9: #{deepar_forward.1} parent=1 // pred_fallthru
      _
    // Predicated region
    $region10: #{deepar_forward.1} parent=1 // pred_check
      _
    $region11: #{deepar_forward.1} parent=1 // pred_check_branch
      %15 = sbr.rel (0) target = $region13
    $region12: #{deepar_forward.1} parent=1 // pred_region
      %17 = vsyncadd [#allocation5], 0
      %s18 = sshll.u32 %s2, 4
      %s19 = int_to_ptr.hbm [resolvable:$true] %s18
      %s20 = sshll.u32 [#allocation4], 4
      %s21 = int_to_ptr.vmem [resolvable:$true] %s20
      %26 = dma.hbm_to_vmem [thread:$0]  %s19, 768, %s21, [#allocation5], 384, 384, 24
    $region13: #{deepar_forward.1} parent=1 // pred_fallthru
      _
    // Predicated region
    $region14: #{deepar_forward.1} parent=1 // pred_check
      _
    $region15: #{deepar_forward.1} parent=1 // pred_check_branch
      %28 = sbr.rel (0) target = $region17
    $region16: #{deepar_forward.1} parent=1 // pred_region
      _
    $region17: #{deepar_forward.1} parent=1 // pred_fallthru
      _
    // Predicated region
    $region18: #{deepar_forward.1} parent=1 // pred_check
      _
    $region19: #{deepar_forward.1} parent=1 // pred_check_branch
      %30 = sbr.rel (0) target = $region21
    $region20: #{deepar_forward.1} parent=1 // pred_region
      %32 = dma.done [#allocation5], 768
    $region21: #{deepar_forward.1} parent=1 // pred_fallthru
      _
    %v33 = vld [vmem:[%s1] sm:$0xff]
    %v34 = vld [vmem:[%s1 + $0x8] sm:$0xff]
    %v35 = vld [vmem:[%s1 + $0x10] sm:$0xff]
    %v36 = vld [vmem:[%s1 + $0x48] sm:$0xff]
    %v37 = vld [vmem:[%s1 + $0x50] sm:$0xff]
    %v38 = vld [vmem:[%s1 + $0x58] sm:$0xff]
    %v39 = vld [vmem:[%s1 + $0x90] sm:$0xff]
    %v40 = vld [vmem:[%s1 + $0x98] sm:$0xff]
    %v41 = vld [vmem:[%s1 + $0xa0] sm:$0xff]
    %v42 = vld [vmem:[%s1 + $0xd8] sm:$0xff]
    %v43 = vld [vmem:[%s1 + $0xe0] sm:$0xff]
    %v44 = vld [vmem:[%s1 + $0xe8] sm:$0xff]
    %v45 = vld [vmem:[%s1 + $0x120] sm:$0xff]
    %v46 = vld [vmem:[%s1 + $0x128] sm:$0xff]
    %v47 = vld [vmem:[%s1 + $0x130] sm:$0xff]
    %v48 = vld [vmem:[%s1 + $0x18] sm:$0xff]
    %v49 = vld [vmem:[%s1 + $0x20] sm:$0xff]
    %v50 = vld [vmem:[%s1 + $0x28] sm:$0xff]
    %v51 = vld [vmem:[%s1 + $0x60] sm:$0xff]
    %v52 = vld [vmem:[%s1 + $0x68] sm:$0xff]
    %v53 = vld [vmem:[%s1 + $0x70] sm:$0xff]
    %v54 = vld [vmem:[%s1 + $0xa8] sm:$0xff]
    %v55 = vld [vmem:[%s1 + $0xb0] sm:$0xff]
    %v56 = vld [vmem:[%s1 + $0xb8] sm:$0xff]
    %v57 = vld [vmem:[%s1 + $0xf0] sm:$0xff]
    %v58 = vld [vmem:[%s1 + $0xf8] sm:$0xff]
    %v59 = vld [vmem:[%s1 + $0x100] sm:$0xff]
    %v60 = vld [vmem:[%s1 + $0x138] sm:$0xff]
    %v61 = vld [vmem:[%s1 + $0x140] sm:$0xff]
    %v62 = vld [vmem:[%s1 + $0x148] sm:$0xff]
    %v63 = vld [vmem:[%s1 + $0x30] sm:$0xff]
    %v64 = vld [vmem:[%s1 + $0x38] sm:$0xff]
    %v65 = vld [vmem:[%s1 + $0x40] sm:$0xff]
    %v66 = vld [vmem:[%s1 + $0x78] sm:$0xff]
    %v67 = vld [vmem:[%s1 + $0x80] sm:$0xff]
    %v68 = vld [vmem:[%s1 + $0x88] sm:$0xff]
    %v69 = vld [vmem:[%s1 + $0xc0] sm:$0xff]
    %v70 = vld [vmem:[%s1 + $0xc8] sm:$0xff]
    %v71 = vld [vmem:[%s1 + $0xd0] sm:$0xff]
    %v72 = vld [vmem:[%s1 + $0x108] sm:$0xff]
    %v73 = vld [vmem:[%s1 + $0x110] sm:$0xff]
    %v74 = vld [vmem:[%s1 + $0x118] sm:$0xff]
    %v75 = vld [vmem:[%s1 + $0x150] sm:$0xff]
    %v76 = vld [vmem:[%s1 + $0x158] sm:$0xff]
    %v77 = vld [vmem:[%s1 + $0x160] sm:$0xff]
    %v78 = vld [vmem:[#allocation4] sm:$0xff]
    %v79 = vld [vmem:[#allocation4 + $0x8] sm:$0xff]
    %v80 = vld [vmem:[#allocation4 + $0x10] sm:$0xff]
    %s81 = scalar_lea.vmem [#allocation4], 24
    %v82 = vld [vmem:[%s81] ss:$8 sm:$0x7]
    %s83 = scalar_lea.vmem [#allocation4], 25
    %v84 = vld [vmem:[%s83] ss:$8 sm:$0x7]
    %v85 = vld [vmem:[#allocation4 + $0x2a] ss:$0 sm:$0xff]
    %v86 = vld [vmem:[#allocation4 + $0x2b] ss:$0 sm:$0xff]
    %v87 = vld [vmem:[%s3] sm:$0xff]
    %v88 = vld [vmem:[%s3 + $0x8] sm:$0xff]
    %v89 = vld [vmem:[%s3 + $0x10] sm:$0xff]
    %v90 = vld [vmem:[%s3 + $0x18] sm:$0xff]
    %v91 = vld [vmem:[%s3 + $0x20] sm:$0xff]
    %v92 = vld [vmem:[%s3 + $0x28] sm:$0xff]
    %v93 = vld [vmem:[%s3 + $0x30] sm:$0xff]
    %v94 = vld [vmem:[%s3 + $0x38] sm:$0xff]
    %v95 = vld [vmem:[%s3 + $0x40] sm:$0xff]
    %v96 = vld [vmem:[%s3 + $0x48] sm:$0xff]
    %v97 = vld [vmem:[%s3 + $0x50] sm:$0xff]
    %v98 = vld [vmem:[%s3 + $0x58] sm:$0xff]
    %v99 = vld [vmem:[%s3 + $0x60] sm:$0xff]
    %v100 = vld [vmem:[%s3 + $0x68] sm:$0xff]
    %v101 = vld [vmem:[%s3 + $0x70] sm:$0xff]
    %v102 = vld [vmem:[%s3 + $0x78] sm:$0xff]
    %v103 = vld [vmem:[%s3 + $0x80] sm:$0xff]
    %v104 = vld [vmem:[%s3 + $0x88] sm:$0x1]
    %v105 = vld [vmem:[%s3 + $0x89] sm:$0x1]
    %v106 = vld [vmem:[%s3 + $0x8a] sm:$0x1]
    %v107 = vld [vmem:[%s3 + $0x8b] sm:$0x1]
    %v108 = vld [vmem:[%s0] sm:$0xff]
    %v109 = vld [vmem:[%s0 + $0x8] sm:$0xff]
    %v110 = vld [vmem:[%s0 + $0x10] sm:$0xff]
    %v111 = vld [vmem:[%s0 + $0x18] sm:$0xff]
    %v112 = vld [vmem:[%s0 + $0x20] sm:$0xff]
    %v113 = vld [vmem:[%s0 + $0x28] sm:$0xff]
    %v114 = vld [vmem:[%s0 + $0x30] sm:$0xff]
    %v115 = vld [vmem:[%s0 + $0x38] sm:$0xff]
    %v116 = vld [vmem:[%s0 + $0x40] sm:$0xff]
    %v117 = vld [vmem:[%s0 + $0x48] sm:$0xff]
    %v118 = vld [vmem:[%s0 + $0x50] sm:$0xff]
    %v119 = vld [vmem:[%s0 + $0x58] sm:$0xff]
    %v120 = vld [vmem:[%s0 + $0x60] sm:$0xff]
    %v121 = vld [vmem:[%s0 + $0x68] sm:$0xff]
    %v122 = vld [vmem:[%s0 + $0x70] sm:$0xff]
    %v123 = vld [vmem:[%s0 + $0x78] sm:$0xff]
    %v125 = vperm.slane %v82, 0
    %v126 = vperm.slane %v82, 1
    %v127 = vperm.slane %v82, 2
    %vm131 = vcmask 64512
    %v133 = vsel %vm131, %v108, 0
    %v136 = vsel %vm131, %v109, 0
    %v139 = vsel %vm131, %v110, 0
    %v142 = vsel %vm131, %v111, 0
    %v145 = vsel %vm131, %v112, 0
    %v148 = vsel %vm131, %v113, 0
    %v151 = vsel %vm131, %v114, 0
    %v154 = vsel %vm131, %v115, 0
    %156 = vmatpush.msra.mxu0 0.0
    %157 = vmatpush.msra.mxu0 0.0
    %158 = vmatpush.msra.mxu0 0.0
    %159 = vmatpush.msra.mxu0 0.0
    %160 = vmatpush.msra.mxu0 0.0
    %161 = vmatpush.msra.mxu0 0.0
    %162 = vmatpush.msra.mxu0 0.0
    %163 = vmatpush.msra.mxu0 0.0
    %164 = vmatpush.msra.mxu0 0.0
    %165 = vmatpush.msra.mxu0 0.0
    %166 = vmatpush.msra.mxu0 0.0
    %167 = vmatpush.msra.mxu0 0.0
    %168 = vmatpush.msra.mxu0 0.0
    %169 = vmatpush.msra.mxu0 0.0
    %170 = vmatpush.msra.mxu0 0.0
    %171 = vmatpush.msra.mxu0 %v78
    %172 = vmatmul.f32.gmra.mxu0 %v133
    %v173 = vpop.f32.mrf.mxu0
    %v174 = vadd.f32 %v125, %v173
    %175 = vmatmul.f32.gmra.mxu0 %v136
    %v176 = vpop.f32.mrf.mxu0
    %v177 = vadd.f32 %v125, %v176
    %178 = vmatmul.f32.gmra.mxu0 %v139
    %v179 = vpop.f32.mrf.mxu0
    %v180 = vadd.f32 %v125, %v179
    %181 = vmatmul.f32.gmra.mxu0 %v142
    %v182 = vpop.f32.mrf.mxu0
    %v183 = vadd.f32 %v125, %v182
    %184 = vmatmul.f32.gmra.mxu0 %v145
    %v185 = vpop.f32.mrf.mxu0
    %v186 = vadd.f32 %v125, %v185
    %187 = vmatmul.f32.gmra.mxu0 %v148
    %v188 = vpop.f32.mrf.mxu0
    %v189 = vadd.f32 %v125, %v188
    %190 = vmatmul.f32.gmra.mxu0 %v151
    %v191 = vpop.f32.mrf.mxu0
    %v192 = vadd.f32 %v125, %v191
    %193 = vmatmul.f32.gmra.mxu0 %v154
    %v194 = vpop.f32.mrf.mxu0
    %v195 = vadd.f32 %v125, %v194
    %196 = vdwg.mxu0
    %197 = vmatpush.msra.mxu0 0.0
    %198 = vmatpush.msra.mxu0 0.0
    %199 = vmatpush.msra.mxu0 0.0
    %200 = vmatpush.msra.mxu0 0.0
    %201 = vmatpush.msra.mxu0 0.0
    %202 = vmatpush.msra.mxu0 0.0
    %203 = vmatpush.msra.mxu0 0.0
    %204 = vmatpush.msra.mxu0 0.0
    %205 = vmatpush.msra.mxu0 0.0
    %206 = vmatpush.msra.mxu0 0.0
    %207 = vmatpush.msra.mxu0 0.0
    %208 = vmatpush.msra.mxu0 0.0
    %209 = vmatpush.msra.mxu0 0.0
    %210 = vmatpush.msra.mxu0 0.0
    %211 = vmatpush.msra.mxu0 0.0
    %212 = vmatpush.msra.mxu0 %v79
    %213 = vmatmul.f32.gmra.mxu0 %v133
    %v214 = vpop.f32.mrf.mxu0
    %v215 = vadd.f32 %v126, %v214
    %216 = vmatmul.f32.gmra.mxu0 %v136
    %v217 = vpop.f32.mrf.mxu0
    %v218 = vadd.f32 %v126, %v217
    %219 = vmatmul.f32.gmra.mxu0 %v139
    %v220 = vpop.f32.mrf.mxu0
    %v221 = vadd.f32 %v126, %v220
    %222 = vmatmul.f32.gmra.mxu0 %v142
    %v223 = vpop.f32.mrf.mxu0
    %v224 = vadd.f32 %v126, %v223
    %225 = vmatmul.f32.gmra.mxu0 %v145
    %v226 = vpop.f32.mrf.mxu0
    %v227 = vadd.f32 %v126, %v226
    %228 = vmatmul.f32.gmra.mxu0 %v148
    %v229 = vpop.f32.mrf.mxu0
    %v230 = vadd.f32 %v126, %v229
    %231 = vmatmul.f32.gmra.mxu0 %v151
    %v232 = vpop.f32.mrf.mxu0
    %v233 = vadd.f32 %v126, %v232
    %234 = vmatmul.f32.gmra.mxu0 %v154
    %v235 = vpop.f32.mrf.mxu0
    %v236 = vadd.f32 %v126, %v235
    %237 = vdwg.mxu0
    %238 = vmatpush.msra.mxu0 0.0
    %239 = vmatpush.msra.mxu0 0.0
    %240 = vmatpush.msra.mxu0 0.0
    %241 = vmatpush.msra.mxu0 0.0
    %242 = vmatpush.msra.mxu0 0.0
    %243 = vmatpush.msra.mxu0 0.0
    %244 = vmatpush.msra.mxu0 0.0
    %245 = vmatpush.msra.mxu0 0.0
    %246 = vmatpush.msra.mxu0 0.0
    %247 = vmatpush.msra.mxu0 0.0
    %248 = vmatpush.msra.mxu0 0.0
    %249 = vmatpush.msra.mxu0 0.0
    %250 = vmatpush.msra.mxu0 0.0
    %251 = vmatpush.msra.mxu0 0.0
    %252 = vmatpush.msra.mxu0 0.0
    %253 = vmatpush.msra.mxu0 %v80
    %254 = vmatmul.f32.gmra.mxu0 %v133
    %v255 = vpop.f32.mrf.mxu0
    %v256 = vadd.f32 %v127, %v255
    %257 = vmatmul.f32.gmra.mxu0 %v136
    %v258 = vpop.f32.mrf.mxu0
    %v259 = vadd.f32 %v127, %v258
    %260 = vmatmul.f32.gmra.mxu0 %v139
    %v261 = vpop.f32.mrf.mxu0
    %v262 = vadd.f32 %v127, %v261
    %263 = vmatmul.f32.gmra.mxu0 %v142
    %v264 = vpop.f32.mrf.mxu0
    %v265 = vadd.f32 %v127, %v264
    %266 = vmatmul.f32.gmra.mxu0 %v145
    %v267 = vpop.f32.mrf.mxu0
    %v268 = vadd.f32 %v127, %v267
    %269 = vmatmul.f32.gmra.mxu0 %v148
    %v270 = vpop.f32.mrf.mxu0
    %v271 = vadd.f32 %v127, %v270
    %272 = vmatmul.f32.gmra.mxu0 %v151
    %v273 = vpop.f32.mrf.mxu0
    %v274 = vadd.f32 %v127, %v273
    %275 = vmatmul.f32.gmra.mxu0 %v154
    %v276 = vpop.f32.mrf.mxu0
    %v277 = vadd.f32 %v127, %v276
    %278 = vdwg.mxu0
    %279 = vst [vmem:[#allocation3] sm:$0xff] %v174
    %280 = vst [vmem:[#allocation3 + $0x8] sm:$0xff] %v215
    %281 = vst [vmem:[#allocation3 + $0x10] sm:$0xff] %v256
    %282 = vst [vmem:[#allocation3 + $0x18] sm:$0xff] %v177
    %283 = vst [vmem:[#allocation3 + $0x20] sm:$0xff] %v218
    %284 = vst [vmem:[#allocation3 + $0x28] sm:$0xff] %v259
    %285 = vst [vmem:[#allocation3 + $0x30] sm:$0xff] %v180
    %286 = vst [vmem:[#allocation3 + $0x38] sm:$0xff] %v221
    %287 = vst [vmem:[#allocation3 + $0x40] sm:$0xff] %v262
    %288 = vst [vmem:[#allocation3 + $0x48] sm:$0xff] %v183
    %289 = vst [vmem:[#allocation3 + $0x50] sm:$0xff] %v224
    %290 = vst [vmem:[#allocation3 + $0x58] sm:$0xff] %v265
    %291 = vst [vmem:[#allocation3 + $0x60] sm:$0xff] %v186
    %292 = vst [vmem:[#allocation3 + $0x68] sm:$0xff] %v227
    %293 = vst [vmem:[#allocation3 + $0x70] sm:$0xff] %v268
    %294 = vst [vmem:[#allocation3 + $0x78] sm:$0xff] %v189
    %295 = vst [vmem:[#allocation3 + $0x80] sm:$0xff] %v230
    %296 = vst [vmem:[#allocation3 + $0x88] sm:$0xff] %v271
    %297 = vst [vmem:[#allocation3 + $0x90] sm:$0xff] %v192
    %298 = vst [vmem:[#allocation3 + $0x98] sm:$0xff] %v233
    %299 = vst [vmem:[#allocation3 + $0xa0] sm:$0xff] %v274
    %300 = vst [vmem:[#allocation3 + $0xa8] sm:$0xff] %v195
    %301 = vst [vmem:[#allocation3 + $0xb0] sm:$0xff] %v236
    %302 = vst [vmem:[#allocation3 + $0xb8] sm:$0xff] %v277
    %v303 = vperm.slane %v104, 0
    %v305 = vsel %vm131, %v116, 0
    %v308 = vsel %vm131, %v117, 0
    %v311 = vsel %vm131, %v118, 0
    %v314 = vsel %vm131, %v119, 0
    %v317 = vsel %vm131, %v120, 0
    %v320 = vsel %vm131, %v121, 0
    %v323 = vsel %vm131, %v122, 0
    %v326 = vsel %vm131, %v123, 0
    %328 = vmatpush.msra.mxu0 0.0
    %329 = vmatpush.msra.mxu0 0.0
    %330 = vmatpush.msra.mxu0 0.0
    %331 = vmatpush.msra.mxu0 0.0
    %332 = vmatpush.msra.mxu0 0.0
    %333 = vmatpush.msra.mxu0 0.0
    %334 = vmatpush.msra.mxu0 0.0
    %335 = vmatpush.msra.mxu0 0.0
    %336 = vmatpush.msra.mxu0 0.0
    %337 = vmatpush.msra.mxu0 0.0
    %338 = vmatpush.msra.mxu0 0.0
    %339 = vmatpush.msra.mxu0 0.0
    %340 = vmatpush.msra.mxu0 0.0
    %341 = vmatpush.msra.mxu0 0.0
    %342 = vmatpush.msra.mxu0 0.0
    %343 = vmatpush.msra.mxu0 %v103
    %344 = vmatmul.f32.gmra.mxu0 %v305
    %v345 = vpop.f32.mrf.mxu0
    %v346 = vadd.f32 %v303, %v345
    %347 = vmatmul.f32.gmra.mxu0 %v308
    %v348 = vpop.f32.mrf.mxu0
    %v349 = vadd.f32 %v303, %v348
    %350 = vmatmul.f32.gmra.mxu0 %v311
    %v351 = vpop.f32.mrf.mxu0
    %v352 = vadd.f32 %v303, %v351
    %353 = vmatmul.f32.gmra.mxu0 %v314
    %v354 = vpop.f32.mrf.mxu0
    %v355 = vadd.f32 %v303, %v354
    %356 = vmatmul.f32.gmra.mxu0 %v317
    %v357 = vpop.f32.mrf.mxu0
    %v358 = vadd.f32 %v303, %v357
    %359 = vmatmul.f32.gmra.mxu0 %v320
    %v360 = vpop.f32.mrf.mxu0
    %v361 = vadd.f32 %v303, %v360
    %362 = vmatmul.f32.gmra.mxu0 %v323
    %v363 = vpop.f32.mrf.mxu0
    %v364 = vadd.f32 %v303, %v363
    %365 = vmatmul.f32.gmra.mxu0 %v326
    %v366 = vpop.f32.mrf.mxu0
    %v367 = vadd.f32 %v303, %v366
    %368 = vdwg.mxu0
    %v369 = vmax.f32 %v346, 0.0
    %v370 = vmax.f32 %v349, 0.0
    %v371 = vmax.f32 %v352, 0.0
    %v372 = vmax.f32 %v355, 0.0
    %v373 = vmax.f32 %v358, 0.0
    %v374 = vmax.f32 %v361, 0.0
    %v375 = vmax.f32 %v364, 0.0
    %v376 = vmax.f32 %v367, 0.0
    %vm377 = vcmask 326656
    %v378 = vsel %vm377, %v369, 0.0
    %379 = vadd.xlane.f32.xlu0 %v378
    %v380 = vpop.xlane.xlu0 %379
    %v381 = vsel %vm377, %v370, 0.0
    %382 = vadd.xlane.f32.xlu0 %v381
    %v383 = vpop.xlane.xlu0 %382
    %v384 = vsel %vm377, %v371, 0.0
    %385 = vadd.xlane.f32.xlu0 %v384
    %v386 = vpop.xlane.xlu0 %385
    %v387 = vsel %vm377, %v372, 0.0
    %388 = vadd.xlane.f32.xlu0 %v387
    %v389 = vpop.xlane.xlu0 %388
    %v390 = vsel %vm377, %v373, 0.0
    %391 = vadd.xlane.f32.xlu0 %v390
    %v392 = vpop.xlane.xlu0 %391
    %v393 = vsel %vm377, %v374, 0.0
    %394 = vadd.xlane.f32.xlu0 %v393
    %v395 = vpop.xlane.xlu0 %394
    %v396 = vsel %vm377, %v375, 0.0
    %397 = vadd.xlane.f32.xlu0 %v396
    %v398 = vpop.xlane.xlu0 %397
    %v399 = vsel %vm377, %v376, 0.0
    %400 = vadd.xlane.f32.xlu0 %v399
    %v401 = vpop.xlane.xlu0 %400
    %v402 = vrcp.pop 40.0
    %v403 = vmul.f32 40.0, %v402
    %v404 = vsub.f32 1.0, %v403
    %v405 = vmul.f32 %v402, %v404
    %v406 = vadd.f32 %v402, %v405
    %vm407 = vweird.f32 %v402
    %v408 = vsel %vm407, %v402, %v406
    %v409 = vmul.f32 %v380, %v408
    %v410 = vmul.f32 %v383, %v408
    %v411 = vmul.f32 %v386, %v408
    %v412 = vmul.f32 %v389, %v408
    %v413 = vmul.f32 %v392, %v408
    %v414 = vmul.f32 %v395, %v408
    %v415 = vmul.f32 %v398, %v408
    %v416 = vmul.f32 %v401, %v408
    %v417 = vsub.f32 %v369, %v409
    %v418 = vsub.f32 %v370, %v410
    %v419 = vsub.f32 %v371, %v411
    %v420 = vsub.f32 %v372, %v412
    %v421 = vsub.f32 %v373, %v413
    %v422 = vsub.f32 %v374, %v414
    %v423 = vsub.f32 %v375, %v415
    %v424 = vsub.f32 %v376, %v416
    %v425 = vmul.f32 %v417, %v417
    %v426 = vmul.f32 %v418, %v418
    %v427 = vmul.f32 %v419, %v419
    %v428 = vmul.f32 %v420, %v420
    %v429 = vmul.f32 %v421, %v421
    %v430 = vmul.f32 %v422, %v422
    %v431 = vmul.f32 %v423, %v423
    %v432 = vmul.f32 %v424, %v424
    %v433 = vsel %vm377, %v425, 0.0
    %434 = vadd.xlane.f32.xlu0 %v433
    %v435 = vpop.xlane.xlu0 %434
    %v436 = vsel %vm377, %v426, 0.0
    %437 = vadd.xlane.f32.xlu0 %v436
    %v438 = vpop.xlane.xlu0 %437
    %v439 = vsel %vm377, %v427, 0.0
    %440 = vadd.xlane.f32.xlu0 %v439
    %v441 = vpop.xlane.xlu0 %440
    %v442 = vsel %vm377, %v428, 0.0
    %443 = vadd.xlane.f32.xlu0 %v442
    %v444 = vpop.xlane.xlu0 %443
    %v445 = vsel %vm377, %v429, 0.0
    %446 = vadd.xlane.f32.xlu0 %v445
    %v447 = vpop.xlane.xlu0 %446
    %v448 = vsel %vm377, %v430, 0.0
    %449 = vadd.xlane.f32.xlu0 %v448
    %v450 = vpop.xlane.xlu0 %449
    %v451 = vsel %vm377, %v431, 0.0
    %452 = vadd.xlane.f32.xlu0 %v451
    %v453 = vpop.xlane.xlu0 %452
    %v454 = vsel %vm377, %v432, 0.0
    %455 = vadd.xlane.f32.xlu0 %v454
    %v456 = vpop.xlane.xlu0 %455
    %v457 = vmul.f32 %v435, %v408
    %v458 = vmul.f32 %v438, %v408
    %v459 = vmul.f32 %v441, %v408
    %v460 = vmul.f32 %v444, %v408
    %v461 = vmul.f32 %v447, %v408
    %v462 = vmul.f32 %v450, %v408
    %v463 = vmul.f32 %v453, %v408
    %v464 = vmul.f32 %v456, %v408
    %v465 = vadd.f32 %v457, 1e-05
    %v466 = vadd.f32 %v458, 1e-05
    %v467 = vadd.f32 %v459, 1e-05
    %v468 = vadd.f32 %v460, 1e-05
    %v469 = vadd.f32 %v461, 1e-05
    %v470 = vadd.f32 %v462, 1e-05
    %v471 = vadd.f32 %v463, 1e-05
    %v472 = vadd.f32 %v464, 1e-05
    %v473 = vrsqrt.pop %v465
    %v474 = vmul.f32 %v473, %v465
    %v475 = vmul.f32 %v474, %v473
    %v476 = vmul.f32 0.5, %v475
    %v477 = vsub.f32 1.5, %v476
    %v478 = vmul.f32 %v473, %v477
    %vm479 = vweird.f32 %v465
    %vm480 = vweird.f32 %v473
    %vm481 = vmor %vm479, %vm480
    %v482 = vsel %vm481, %v473, %v478
    %v483 = vrsqrt.pop %v466
    %v484 = vmul.f32 %v483, %v466
    %v485 = vmul.f32 %v484, %v483
    %v486 = vmul.f32 0.5, %v485
    %v487 = vsub.f32 1.5, %v486
    %v488 = vmul.f32 %v483, %v487
    %vm489 = vweird.f32 %v466
    %vm490 = vweird.f32 %v483
    %vm491 = vmor %vm489, %vm490
    %v492 = vsel %vm491, %v483, %v488
    %v493 = vrsqrt.pop %v467
    %v494 = vmul.f32 %v493, %v467
    %v495 = vmul.f32 %v494, %v493
    %v496 = vmul.f32 0.5, %v495
    %v497 = vsub.f32 1.5, %v496
    %v498 = vmul.f32 %v493, %v497
    %vm499 = vweird.f32 %v467
    %vm500 = vweird.f32 %v493
    %vm501 = vmor %vm499, %vm500
    %v502 = vsel %vm501, %v493, %v498
    %v503 = vrsqrt.pop %v468
    %v504 = vmul.f32 %v503, %v468
    %v505 = vmul.f32 %v504, %v503
    %v506 = vmul.f32 0.5, %v505
    %v507 = vsub.f32 1.5, %v506
    %v508 = vmul.f32 %v503, %v507
    %vm509 = vweird.f32 %v468
    %vm510 = vweird.f32 %v503
    %vm511 = vmor %vm509, %vm510
    %v512 = vsel %vm511, %v503, %v508
    %v513 = vrsqrt.pop %v469
    %v514 = vmul.f32 %v513, %v469
    %v515 = vmul.f32 %v514, %v513
    %v516 = vmul.f32 0.5, %v515
    %v517 = vsub.f32 1.5, %v516
    %v518 = vmul.f32 %v513, %v517
    %vm519 = vweird.f32 %v469
    %vm520 = vweird.f32 %v513
    %vm521 = vmor %vm519, %vm520
    %v522 = vsel %vm521, %v513, %v518
    %v523 = vrsqrt.pop %v470
    %v524 = vmul.f32 %v523, %v470
    %v525 = vmul.f32 %v524, %v523
    %v526 = vmul.f32 0.5, %v525
    %v527 = vsub.f32 1.5, %v526
    %v528 = vmul.f32 %v523, %v527
    %vm529 = vweird.f32 %v470
    %vm530 = vweird.f32 %v523
    %vm531 = vmor %vm529, %vm530
    %v532 = vsel %vm531, %v523, %v528
    %v533 = vrsqrt.pop %v471
    %v534 = vmul.f32 %v533, %v471
    %v535 = vmul.f32 %v534, %v533
    %v536 = vmul.f32 0.5, %v535
    %v537 = vsub.f32 1.5, %v536
    %v538 = vmul.f32 %v533, %v537
    %vm539 = vweird.f32 %v471
    %vm540 = vweird.f32 %v533
    %vm541 = vmor %vm539, %vm540
    %v542 = vsel %vm541, %v533, %v538
    %v543 = vrsqrt.pop %v472
    %v544 = vmul.f32 %v543, %v472
    %v545 = vmul.f32 %v544, %v543
    %v546 = vmul.f32 0.5, %v545
    %v547 = vsub.f32 1.5, %v546
    %v548 = vmul.f32 %v543, %v547
    %vm549 = vweird.f32 %v472
    %vm550 = vweird.f32 %v543
    %vm551 = vmor %vm549, %vm550
    %v552 = vsel %vm551, %v543, %v548
    %v553 = vmul.f32 %v417, %v482
    %v554 = vmul.f32 %v418, %v492
    %v555 = vmul.f32 %v419, %v502
    %v556 = vmul.f32 %v420, %v512
    %v557 = vmul.f32 %v421, %v522
    %v558 = vmul.f32 %v422, %v532
    %v559 = vmul.f32 %v423, %v542
    %v560 = vmul.f32 %v424, %v552
    %v561 = vperm.slane %v105, 0
    %v562 = vmul.f32 %v553, %v561
    %v563 = vmul.f32 %v554, %v561
    %v564 = vmul.f32 %v555, %v561
    %v565 = vmul.f32 %v556, %v561
    %v566 = vmul.f32 %v557, %v561
    %v567 = vmul.f32 %v558, %v561
    %v568 = vmul.f32 %v559, %v561
    %v569 = vmul.f32 %v560, %v561
    %v570 = vperm.slane %v106, 0
    %v571 = vadd.f32 %v562, %v570
    %v572 = vadd.f32 %v563, %v570
    %v573 = vadd.f32 %v564, %v570
    %v574 = vadd.f32 %v565, %v570
    %v575 = vadd.f32 %v566, %v570
    %v576 = vadd.f32 %v567, %v570
    %v577 = vadd.f32 %v568, %v570
    %v578 = vadd.f32 %v569, %v570
    %v580 = vperm.slane %v84, 0
    %v581 = vperm.slane %v84, 1
    %v582 = vperm.slane %v84, 2
    %v587 = vsel %vm377, %v571, 0
    %v590 = vsel %vm377, %v572, 0
    %v593 = vsel %vm377, %v573, 0
    %v596 = vsel %vm377, %v574, 0
    %v599 = vsel %vm377, %v575, 0
    %v602 = vsel %vm377, %v576, 0
    %v605 = vsel %vm377, %v577, 0
    %v608 = vsel %vm377, %v578, 0
    %610 = vmatpush.msra.mxu0 0.0
    %611 = vmatpush.msra.mxu0 0.0
    %612 = vmatpush.msra.mxu0 0.0
    %613 = vmatpush.msra.mxu0 0.0
    %614 = vmatpush.msra.mxu0 0.0
    %615 = vmatpush.msra.mxu0 0.0
    %616 = vmatpush.msra.mxu0 0.0
    %617 = vmatpush.msra.mxu0 0.0
    %618 = vmatpush.msra.mxu0 0.0
    %619 = vmatpush.msra.mxu0 0.0
    %620 = vmatpush.msra.mxu0 0.0
    %621 = vmatpush.msra.mxu0 %v75
    %622 = vmatpush.msra.mxu0 %v72
    %623 = vmatpush.msra.mxu0 %v69
    %624 = vmatpush.msra.mxu0 %v66
    %625 = vmatpush.msra.mxu0 %v63
    %626 = vmatmul.f32.gmra.mxu0 %v587
    %v627 = vpop.f32.mrf.mxu0
    %v628 = vadd.f32 %v580, %v627
    %629 = vmatmul.f32.gmra.mxu0 %v590
    %v630 = vpop.f32.mrf.mxu0
    %v631 = vadd.f32 %v580, %v630
    %632 = vmatmul.f32.gmra.mxu0 %v593
    %v633 = vpop.f32.mrf.mxu0
    %v634 = vadd.f32 %v580, %v633
    %635 = vmatmul.f32.gmra.mxu0 %v596
    %v636 = vpop.f32.mrf.mxu0
    %v637 = vadd.f32 %v580, %v636
    %638 = vmatmul.f32.gmra.mxu0 %v599
    %v639 = vpop.f32.mrf.mxu0
    %v640 = vadd.f32 %v580, %v639
    %641 = vmatmul.f32.gmra.mxu0 %v602
    %v642 = vpop.f32.mrf.mxu0
    %v643 = vadd.f32 %v580, %v642
    %644 = vmatmul.f32.gmra.mxu0 %v605
    %v645 = vpop.f32.mrf.mxu0
    %v646 = vadd.f32 %v580, %v645
    %647 = vmatmul.f32.gmra.mxu0 %v608
    %v648 = vpop.f32.mrf.mxu0
    %v649 = vadd.f32 %v580, %v648
    %650 = vdwg.mxu0
    %651 = vmatpush.msra.mxu0 0.0
    %652 = vmatpush.msra.mxu0 0.0
    %653 = vmatpush.msra.mxu0 0.0
    %654 = vmatpush.msra.mxu0 0.0
    %655 = vmatpush.msra.mxu0 0.0
    %656 = vmatpush.msra.mxu0 0.0
    %657 = vmatpush.msra.mxu0 0.0
    %658 = vmatpush.msra.mxu0 0.0
    %659 = vmatpush.msra.mxu0 0.0
    %660 = vmatpush.msra.mxu0 0.0
    %661 = vmatpush.msra.mxu0 0.0
    %662 = vmatpush.msra.mxu0 %v76
    %663 = vmatpush.msra.mxu0 %v73
    %664 = vmatpush.msra.mxu0 %v70
    %665 = vmatpush.msra.mxu0 %v67
    %666 = vmatpush.msra.mxu0 %v64
    %667 = vmatmul.f32.gmra.mxu0 %v587
    %v668 = vpop.f32.mrf.mxu0
    %v669 = vadd.f32 %v581, %v668
    %670 = vmatmul.f32.gmra.mxu0 %v590
    %v671 = vpop.f32.mrf.mxu0
    %v672 = vadd.f32 %v581, %v671
    %673 = vmatmul.f32.gmra.mxu0 %v593
    %v674 = vpop.f32.mrf.mxu0
    %v675 = vadd.f32 %v581, %v674
    %676 = vmatmul.f32.gmra.mxu0 %v596
    %v677 = vpop.f32.mrf.mxu0
    %v678 = vadd.f32 %v581, %v677
    %679 = vmatmul.f32.gmra.mxu0 %v599
    %v680 = vpop.f32.mrf.mxu0
    %v681 = vadd.f32 %v581, %v680
    %682 = vmatmul.f32.gmra.mxu0 %v602
    %v683 = vpop.f32.mrf.mxu0
    %v684 = vadd.f32 %v581, %v683
    %685 = vmatmul.f32.gmra.mxu0 %v605
    %v686 = vpop.f32.mrf.mxu0
    %v687 = vadd.f32 %v581, %v686
    %688 = vmatmul.f32.gmra.mxu0 %v608
    %v689 = vpop.f32.mrf.mxu0
    %v690 = vadd.f32 %v581, %v689
    %691 = vdwg.mxu0
    %692 = vmatpush.msra.mxu0 0.0
    %693 = vmatpush.msra.mxu0 0.0
    %694 = vmatpush.msra.mxu0 0.0
    %695 = vmatpush.msra.mxu0 0.0
    %696 = vmatpush.msra.mxu0 0.0
    %697 = vmatpush.msra.mxu0 0.0
    %698 = vmatpush.msra.mxu0 0.0
    %699 = vmatpush.msra.mxu0 0.0
    %700 = vmatpush.msra.mxu0 0.0
    %701 = vmatpush.msra.mxu0 0.0
    %702 = vmatpush.msra.mxu0 0.0
    %703 = vmatpush.msra.mxu0 %v77
    %704 = vmatpush.msra.mxu0 %v74
    %705 = vmatpush.msra.mxu0 %v71
    %706 = vmatpush.msra.mxu0 %v68
    %707 = vmatpush.msra.mxu0 %v65
    %708 = vmatmul.f32.gmra.mxu0 %v587
    %v709 = vpop.f32.mrf.mxu0
    %v710 = vadd.f32 %v582, %v709
    %711 = vmatmul.f32.gmra.mxu0 %v590
    %v712 = vpop.f32.mrf.mxu0
    %v713 = vadd.f32 %v582, %v712
    %714 = vmatmul.f32.gmra.mxu0 %v593
    %v715 = vpop.f32.mrf.mxu0
    %v716 = vadd.f32 %v582, %v715
    %717 = vmatmul.f32.gmra.mxu0 %v596
    %v718 = vpop.f32.mrf.mxu0
    %v719 = vadd.f32 %v582, %v718
    %720 = vmatmul.f32.gmra.mxu0 %v599
    %v721 = vpop.f32.mrf.mxu0
    %v722 = vadd.f32 %v582, %v721
    %723 = vmatmul.f32.gmra.mxu0 %v602
    %v724 = vpop.f32.mrf.mxu0
    %v725 = vadd.f32 %v582, %v724
    %726 = vmatmul.f32.gmra.mxu0 %v605
    %v727 = vpop.f32.mrf.mxu0
    %v728 = vadd.f32 %v582, %v727
    %729 = vmatmul.f32.gmra.mxu0 %v608
    %v730 = vpop.f32.mrf.mxu0
    %v731 = vadd.f32 %v582, %v730
    %732 = vdwg.mxu0
    %733 = vst [vmem:[#allocation3 + $0xc0] sm:$0xff] %v628
    %734 = vst [vmem:[#allocation3 + $0xc8] sm:$0xff] %v669
    %735 = vst [vmem:[#allocation3 + $0xd0] sm:$0xff] %v710
    %736 = vst [vmem:[#allocation3 + $0xd8] sm:$0xff] %v631
    %737 = vst [vmem:[#allocation3 + $0xe0] sm:$0xff] %v672
    %738 = vst [vmem:[#allocation3 + $0xe8] sm:$0xff] %v713
    %739 = vst [vmem:[#allocation3 + $0xf0] sm:$0xff] %v634
    %740 = vst [vmem:[#allocation3 + $0xf8] sm:$0xff] %v675
    %741 = vst [vmem:[#allocation3 + $0x100] sm:$0xff] %v716
    %742 = vst [vmem:[#allocation3 + $0x108] sm:$0xff] %v637
    %743 = vst [vmem:[#allocation3 + $0x110] sm:$0xff] %v678
    %744 = vst [vmem:[#allocation3 + $0x118] sm:$0xff] %v719
    %745 = vst [vmem:[#allocation3 + $0x120] sm:$0xff] %v640
    %746 = vst [vmem:[#allocation3 + $0x128] sm:$0xff] %v681
    %747 = vst [vmem:[#allocation3 + $0x130] sm:$0xff] %v722
    %748 = vst [vmem:[#allocation3 + $0x138] sm:$0xff] %v643
    %749 = vst [vmem:[#allocation3 + $0x140] sm:$0xff] %v684
    %750 = vst [vmem:[#allocation3 + $0x148] sm:$0xff] %v725
    %751 = vst [vmem:[#allocation3 + $0x150] sm:$0xff] %v646
    %752 = vst [vmem:[#allocation3 + $0x158] sm:$0xff] %v687
    %753 = vst [vmem:[#allocation3 + $0x160] sm:$0xff] %v728
    %754 = vst [vmem:[#allocation3 + $0x168] sm:$0xff] %v649
    %755 = vst [vmem:[#allocation3 + $0x170] sm:$0xff] %v690
    %756 = vst [vmem:[#allocation3 + $0x178] sm:$0xff] %v731
    %v757 = vld [vmem:[#allocation3] sm:$0xff]
    %v758 = vld [vmem:[#allocation3 + $0x8] sm:$0xff]
    %v759 = vld [vmem:[#allocation3 + $0x10] sm:$0xff]
    %v761 = vsel %vm377, 0.0, 0
    %763 = vmatpush.msra.mxu0 0.0
    %764 = vmatpush.msra.mxu0 0.0
    %765 = vmatpush.msra.mxu0 0.0
    %766 = vmatpush.msra.mxu0 0.0
    %767 = vmatpush.msra.mxu0 0.0
    %768 = vmatpush.msra.mxu0 0.0
    %769 = vmatpush.msra.mxu0 0.0
    %770 = vmatpush.msra.mxu0 0.0
    %771 = vmatpush.msra.mxu0 0.0
    %772 = vmatpush.msra.mxu0 0.0
    %773 = vmatpush.msra.mxu0 0.0
    %774 = vmatpush.msra.mxu0 %v45
    %775 = vmatpush.msra.mxu0 %v42
    %776 = vmatpush.msra.mxu0 %v39
    %777 = vmatpush.msra.mxu0 %v36
    %778 = vmatpush.msra.mxu0 %v33
    %779 = vmatmul.f32.gmra.mxu0 %v761
    %v780 = vpop.f32.mrf.mxu0
    %v781 = vadd.f32 0.0, %v780
    %782 = vdwg.mxu0
    %783 = vmatpush.msra.mxu0 0.0
    %784 = vmatpush.msra.mxu0 0.0
    %785 = vmatpush.msra.mxu0 0.0
    %786 = vmatpush.msra.mxu0 0.0
    %787 = vmatpush.msra.mxu0 0.0
    %788 = vmatpush.msra.mxu0 0.0
    %789 = vmatpush.msra.mxu0 0.0
    %790 = vmatpush.msra.mxu0 0.0
    %791 = vmatpush.msra.mxu0 0.0
    %792 = vmatpush.msra.mxu0 0.0
    %793 = vmatpush.msra.mxu0 0.0
    %794 = vmatpush.msra.mxu0 %v46
    %795 = vmatpush.msra.mxu0 %v43
    %796 = vmatpush.msra.mxu0 %v40
    %797 = vmatpush.msra.mxu0 %v37
    %798 = vmatpush.msra.mxu0 %v34
    %799 = vmatmul.f32.gmra.mxu0 %v761
    %v800 = vpop.f32.mrf.mxu0
    %v801 = vadd.f32 0.0, %v800
    %802 = vdwg.mxu0
    %803 = vmatpush.msra.mxu0 0.0
    %804 = vmatpush.msra.mxu0 0.0
    %805 = vmatpush.msra.mxu0 0.0
    %806 = vmatpush.msra.mxu0 0.0
    %807 = vmatpush.msra.mxu0 0.0
    %808 = vmatpush.msra.mxu0 0.0
    %809 = vmatpush.msra.mxu0 0.0
    %810 = vmatpush.msra.mxu0 0.0
    %811 = vmatpush.msra.mxu0 0.0
    %812 = vmatpush.msra.mxu0 0.0
    %813 = vmatpush.msra.mxu0 0.0
    %814 = vmatpush.msra.mxu0 %v47
    %815 = vmatpush.msra.mxu0 %v44
    %816 = vmatpush.msra.mxu0 %v41
    %817 = vmatpush.msra.mxu0 %v38
    %818 = vmatpush.msra.mxu0 %v35
    %819 = vmatmul.f32.gmra.mxu0 %v761
    %v820 = vpop.f32.mrf.mxu0
    %v821 = vadd.f32 0.0, %v820
    %822 = vdwg.mxu0
    %v823 = vadd.f32 %v758, %v801
    %v824 = vxor.u32 %v823, 2147483648
    %v825 = vmul.f32 %v824, 1.442695
    %v826 = vpow.pop %v825
    %v827 = vadd.f32 %v826, 1.0
    %v828 = vrcp.pop %v827
    %v829 = vmul.f32 %v827, %v828
    %v830 = vsub.f32 1.0, %v829
    %v831 = vmul.f32 %v828, %v830
    %v832 = vadd.f32 %v828, %v831
    %vm833 = vweird.f32 %v827
    %vm834 = vweird.f32 %v828
    %vm835 = vmor %vm833, %vm834
    %v836 = vsel %vm835, %v828, %v832
    %v837 = vand.u32 2147483647, %v827
    %vm838 = vcmp.eq.f32.partialorder %v837, 8.507059e+37
    %v839 = vand.u32 %v827, 2147483648
    %v840 = vor.u32 1.1754944e-38, %v839
    %v841 = vsel %vm838, %v840, %v836
    %v842 = vmul.f32 1.0, %v841
    %v843 = vadd.f32 %v757, %v781
    %v844 = vxor.u32 %v843, 2147483648
    %v845 = vmul.f32 %v844, 1.442695
    %v846 = vpow.pop %v845
    %v847 = vadd.f32 %v846, 1.0
    %v848 = vrcp.pop %v847
    %v849 = vmul.f32 %v847, %v848
    %v850 = vsub.f32 1.0, %v849
    %v851 = vmul.f32 %v848, %v850
    %v852 = vadd.f32 %v848, %v851
    %vm853 = vweird.f32 %v847
    %vm854 = vweird.f32 %v848
    %vm855 = vmor %vm853, %vm854
    %v856 = vsel %vm855, %v848, %v852
    %v857 = vand.u32 2147483647, %v847
    %vm858 = vcmp.eq.f32.partialorder %v857, 8.507059e+37
    %v859 = vand.u32 %v847, 2147483648
    %v860 = vor.u32 1.1754944e-38, %v859
    %v861 = vsel %vm858, %v860, %v856
    %v862 = vmul.f32 1.0, %v861
    %v863 = vadd.f32 %v821, %v85
    %v864 = vmul.f32 %v862, %v863
    %v865 = vadd.f32 %v759, %v864
    %v866 = vtanh.pop %v865
    %v867 = vsub.f32 0.0, %v866
    %v868 = vmul.f32 %v842, %v867
    %v869 = vadd.f32 %v866, %v868
    %v870 = vld [vmem:[#allocation3 + $0x18] sm:$0xff]
    %v871 = vld [vmem:[#allocation3 + $0x20] sm:$0xff]
    %v872 = vld [vmem:[#allocation3 + $0x28] sm:$0xff]
    %v874 = vsel %vm377, %v869, 0
    %876 = vmatpush.msra.mxu0 0.0
    %877 = vmatpush.msra.mxu0 0.0
    %878 = vmatpush.msra.mxu0 0.0
    %879 = vmatpush.msra.mxu0 0.0
    %880 = vmatpush.msra.mxu0 0.0
    %881 = vmatpush.msra.mxu0 0.0
    %882 = vmatpush.msra.mxu0 0.0
    %883 = vmatpush.msra.mxu0 0.0
    %884 = vmatpush.msra.mxu0 0.0
    %885 = vmatpush.msra.mxu0 0.0
    %886 = vmatpush.msra.mxu0 0.0
    %887 = vmatpush.msra.mxu0 %v45
    %888 = vmatpush.msra.mxu0 %v42
    %889 = vmatpush.msra.mxu0 %v39
    %890 = vmatpush.msra.mxu0 %v36
    %891 = vmatpush.msra.mxu0 %v33
    %892 = vmatmul.f32.gmra.mxu0 %v874
    %v893 = vpop.f32.mrf.mxu0
    %v894 = vadd.f32 0.0, %v893
    %895 = vdwg.mxu0
    %896 = vmatpush.msra.mxu0 0.0
    %897 = vmatpush.msra.mxu0 0.0
    %898 = vmatpush.msra.mxu0 0.0
    %899 = vmatpush.msra.mxu0 0.0
    %900 = vmatpush.msra.mxu0 0.0
    %901 = vmatpush.msra.mxu0 0.0
    %902 = vmatpush.msra.mxu0 0.0
    %903 = vmatpush.msra.mxu0 0.0
    %904 = vmatpush.msra.mxu0 0.0
    %905 = vmatpush.msra.mxu0 0.0
    %906 = vmatpush.msra.mxu0 0.0
    %907 = vmatpush.msra.mxu0 %v46
    %908 = vmatpush.msra.mxu0 %v43
    %909 = vmatpush.msra.mxu0 %v40
    %910 = vmatpush.msra.mxu0 %v37
    %911 = vmatpush.msra.mxu0 %v34
    %912 = vmatmul.f32.gmra.mxu0 %v874
    %v913 = vpop.f32.mrf.mxu0
    %v914 = vadd.f32 0.0, %v913
    %915 = vdwg.mxu0
    %916 = vmatpush.msra.mxu0 0.0
    %917 = vmatpush.msra.mxu0 0.0
    %918 = vmatpush.msra.mxu0 0.0
    %919 = vmatpush.msra.mxu0 0.0
    %920 = vmatpush.msra.mxu0 0.0
    %921 = vmatpush.msra.mxu0 0.0
    %922 = vmatpush.msra.mxu0 0.0
    %923 = vmatpush.msra.mxu0 0.0
    %924 = vmatpush.msra.mxu0 0.0
    %925 = vmatpush.msra.mxu0 0.0
    %926 = vmatpush.msra.mxu0 0.0
    %927 = vmatpush.msra.mxu0 %v47
    %928 = vmatpush.msra.mxu0 %v44
    %929 = vmatpush.msra.mxu0 %v41
    %930 = vmatpush.msra.mxu0 %v38
    %931 = vmatpush.msra.mxu0 %v35
    %932 = vmatmul.f32.gmra.mxu0 %v874
    %v933 = vpop.f32.mrf.mxu0
    %v934 = vadd.f32 0.0, %v933
    %935 = vdwg.mxu0
    %v936 = vadd.f32 %v871, %v914
    %v937 = vxor.u32 %v936, 2147483648
    %v938 = vmul.f32 %v937, 1.442695
    %v939 = vpow.pop %v938
    %v940 = vadd.f32 %v939, 1.0
    %v941 = vrcp.pop %v940
    %v942 = vmul.f32 %v940, %v941
    %v943 = vsub.f32 1.0, %v942
    %v944 = vmul.f32 %v941, %v943
    %v945 = vadd.f32 %v941, %v944
    %vm946 = vweird.f32 %v940
    %vm947 = vweird.f32 %v941
    %vm948 = vmor %vm946, %vm947
    %v949 = vsel %vm948, %v941, %v945
    %v950 = vand.u32 2147483647, %v940
    %vm951 = vcmp.eq.f32.partialorder %v950, 8.507059e+37
    %v952 = vand.u32 %v940, 2147483648
    %v953 = vor.u32 1.1754944e-38, %v952
    %v954 = vsel %vm951, %v953, %v949
    %v955 = vmul.f32 1.0, %v954
    %v956 = vadd.f32 %v870, %v894
    %v957 = vxor.u32 %v956, 2147483648
    %v958 = vmul.f32 %v957, 1.442695
    %v959 = vpow.pop %v958
    %v960 = vadd.f32 %v959, 1.0
    %v961 = vrcp.pop %v960
    %v962 = vmul.f32 %v960, %v961
    %v963 = vsub.f32 1.0, %v962
    %v964 = vmul.f32 %v961, %v963
    %v965 = vadd.f32 %v961, %v964
    %vm966 = vweird.f32 %v960
    %vm967 = vweird.f32 %v961
    %vm968 = vmor %vm966, %vm967
    %v969 = vsel %vm968, %v961, %v965
    %v970 = vand.u32 2147483647, %v960
    %vm971 = vcmp.eq.f32.partialorder %v970, 8.507059e+37
    %v972 = vand.u32 %v960, 2147483648
    %v973 = vor.u32 1.1754944e-38, %v972
    %v974 = vsel %vm971, %v973, %v969
    %v975 = vmul.f32 1.0, %v974
    %v976 = vadd.f32 %v934, %v85
    %v977 = vmul.f32 %v975, %v976
    %v978 = vadd.f32 %v872, %v977
    %v979 = vtanh.pop %v978
    %v980 = vsub.f32 %v869, %v979
    %v981 = vmul.f32 %v955, %v980
    %v982 = vadd.f32 %v979, %v981
    %v983 = vld [vmem:[#allocation3 + $0x30] sm:$0xff]
    %v984 = vld [vmem:[#allocation3 + $0x38] sm:$0xff]
    %v985 = vld [vmem:[#allocation3 + $0x40] sm:$0xff]
    %v987 = vsel %vm377, %v982, 0
    %989 = vmatpush.msra.mxu0 0.0
    %990 = vmatpush.msra.mxu0 0.0
    %991 = vmatpush.msra.mxu0 0.0
    %992 = vmatpush.msra.mxu0 0.0
    %993 = vmatpush.msra.mxu0 0.0
    %994 = vmatpush.msra.mxu0 0.0
    %995 = vmatpush.msra.mxu0 0.0
    %996 = vmatpush.msra.mxu0 0.0
    %997 = vmatpush.msra.mxu0 0.0
    %998 = vmatpush.msra.mxu0 0.0
    %999 = vmatpush.msra.mxu0 0.0
    %1000 = vmatpush.msra.mxu0 %v45
    %1001 = vmatpush.msra.mxu0 %v42
    %1002 = vmatpush.msra.mxu0 %v39
    %1003 = vmatpush.msra.mxu0 %v36
    %1004 = vmatpush.msra.mxu0 %v33
    %1005 = vmatmul.f32.gmra.mxu0 %v987
    %v1006 = vpop.f32.mrf.mxu0
    %v1007 = vadd.f32 0.0, %v1006
    %1008 = vdwg.mxu0
    %1009 = vmatpush.msra.mxu0 0.0
    %1010 = vmatpush.msra.mxu0 0.0
    %1011 = vmatpush.msra.mxu0 0.0
    %1012 = vmatpush.msra.mxu0 0.0
    %1013 = vmatpush.msra.mxu0 0.0
    %1014 = vmatpush.msra.mxu0 0.0
    %1015 = vmatpush.msra.mxu0 0.0
    %1016 = vmatpush.msra.mxu0 0.0
    %1017 = vmatpush.msra.mxu0 0.0
    %1018 = vmatpush.msra.mxu0 0.0
    %1019 = vmatpush.msra.mxu0 0.0
    %1020 = vmatpush.msra.mxu0 %v46
    %1021 = vmatpush.msra.mxu0 %v43
    %1022 = vmatpush.msra.mxu0 %v40
    %1023 = vmatpush.msra.mxu0 %v37
    %1024 = vmatpush.msra.mxu0 %v34
    %1025 = vmatmul.f32.gmra.mxu0 %v987
    %v1026 = vpop.f32.mrf.mxu0
    %v1027 = vadd.f32 0.0, %v1026
    %1028 = vdwg.mxu0
    %1029 = vmatpush.msra.mxu0 0.0
    %1030 = vmatpush.msra.mxu0 0.0
    %1031 = vmatpush.msra.mxu0 0.0
    %1032 = vmatpush.msra.mxu0 0.0
    %1033 = vmatpush.msra.mxu0 0.0
    %1034 = vmatpush.msra.mxu0 0.0
    %1035 = vmatpush.msra.mxu0 0.0
    %1036 = vmatpush.msra.mxu0 0.0
    %1037 = vmatpush.msra.mxu0 0.0
    %1038 = vmatpush.msra.mxu0 0.0
    %1039 = vmatpush.msra.mxu0 0.0
    %1040 = vmatpush.msra.mxu0 %v47
    %1041 = vmatpush.msra.mxu0 %v44
    %1042 = vmatpush.msra.mxu0 %v41
    %1043 = vmatpush.msra.mxu0 %v38
    %1044 = vmatpush.msra.mxu0 %v35
    %1045 = vmatmul.f32.gmra.mxu0 %v987
    %v1046 = vpop.f32.mrf.mxu0
    %v1047 = vadd.f32 0.0, %v1046
    %1048 = vdwg.mxu0
    %v1049 = vadd.f32 %v984, %v1027
    %v1050 = vxor.u32 %v1049, 2147483648
    %v1051 = vmul.f32 %v1050, 1.442695
    %v1052 = vpow.pop %v1051
    %v1053 = vadd.f32 %v1052, 1.0
    %v1054 = vrcp.pop %v1053
    %v1055 = vmul.f32 %v1053, %v1054
    %v1056 = vsub.f32 1.0, %v1055
    %v1057 = vmul.f32 %v1054, %v1056
    %v1058 = vadd.f32 %v1054, %v1057
    %vm1059 = vweird.f32 %v1053
    %vm1060 = vweird.f32 %v1054
    %vm1061 = vmor %vm1059, %vm1060
    %v1062 = vsel %vm1061, %v1054, %v1058
    %v1063 = vand.u32 2147483647, %v1053
    %vm1064 = vcmp.eq.f32.partialorder %v1063, 8.507059e+37
    %v1065 = vand.u32 %v1053, 2147483648
    %v1066 = vor.u32 1.1754944e-38, %v1065
    %v1067 = vsel %vm1064, %v1066, %v1062
    %v1068 = vmul.f32 1.0, %v1067
    %v1069 = vadd.f32 %v983, %v1007
    %v1070 = vxor.u32 %v1069, 2147483648
    %v1071 = vmul.f32 %v1070, 1.442695
    %v1072 = vpow.pop %v1071
    %v1073 = vadd.f32 %v1072, 1.0
    %v1074 = vrcp.pop %v1073
    %v1075 = vmul.f32 %v1073, %v1074
    %v1076 = vsub.f32 1.0, %v1075
    %v1077 = vmul.f32 %v1074, %v1076
    %v1078 = vadd.f32 %v1074, %v1077
    %vm1079 = vweird.f32 %v1073
    %vm1080 = vweird.f32 %v1074
    %vm1081 = vmor %vm1079, %vm1080
    %v1082 = vsel %vm1081, %v1074, %v1078
    %v1083 = vand.u32 2147483647, %v1073
    %vm1084 = vcmp.eq.f32.partialorder %v1083, 8.507059e+37
    %v1085 = vand.u32 %v1073, 2147483648
    %v1086 = vor.u32 1.1754944e-38, %v1085
    %v1087 = vsel %vm1084, %v1086, %v1082
    %v1088 = vmul.f32 1.0, %v1087
    %v1089 = vadd.f32 %v1047, %v85
    %v1090 = vmul.f32 %v1088, %v1089
    %v1091 = vadd.f32 %v985, %v1090
    %v1092 = vtanh.pop %v1091
    %v1093 = vsub.f32 %v982, %v1092
    %v1094 = vmul.f32 %v1068, %v1093
    %v1095 = vadd.f32 %v1092, %v1094
    %v1096 = vld [vmem:[#allocation3 + $0x48] sm:$0xff]
    %v1097 = vld [vmem:[#allocation3 + $0x50] sm:$0xff]
    %v1098 = vld [vmem:[#allocation3 + $0x58] sm:$0xff]
    %v1100 = vsel %vm377, %v1095, 0
    %1102 = vmatpush.msra.mxu0 0.0
    %1103 = vmatpush.msra.mxu0 0.0
    %1104 = vmatpush.msra.mxu0 0.0
    %1105 = vmatpush.msra.mxu0 0.0
    %1106 = vmatpush.msra.mxu0 0.0
    %1107 = vmatpush.msra.mxu0 0.0
    %1108 = vmatpush.msra.mxu0 0.0
    %1109 = vmatpush.msra.mxu0 0.0
    %1110 = vmatpush.msra.mxu0 0.0
    %1111 = vmatpush.msra.mxu0 0.0
    %1112 = vmatpush.msra.mxu0 0.0
    %1113 = vmatpush.msra.mxu0 %v45
    %1114 = vmatpush.msra.mxu0 %v42
    %1115 = vmatpush.msra.mxu0 %v39
    %1116 = vmatpush.msra.mxu0 %v36
    %1117 = vmatpush.msra.mxu0 %v33
    %1118 = vmatmul.f32.gmra.mxu0 %v1100
    %v1119 = vpop.f32.mrf.mxu0
    %v1120 = vadd.f32 0.0, %v1119
    %1121 = vdwg.mxu0
    %1122 = vmatpush.msra.mxu0 0.0
    %1123 = vmatpush.msra.mxu0 0.0
    %1124 = vmatpush.msra.mxu0 0.0
    %1125 = vmatpush.msra.mxu0 0.0
    %1126 = vmatpush.msra.mxu0 0.0
    %1127 = vmatpush.msra.mxu0 0.0
    %1128 = vmatpush.msra.mxu0 0.0
    %1129 = vmatpush.msra.mxu0 0.0
    %1130 = vmatpush.msra.mxu0 0.0
    %1131 = vmatpush.msra.mxu0 0.0
    %1132 = vmatpush.msra.mxu0 0.0
    %1133 = vmatpush.msra.mxu0 %v46
    %1134 = vmatpush.msra.mxu0 %v43
    %1135 = vmatpush.msra.mxu0 %v40
    %1136 = vmatpush.msra.mxu0 %v37
    %1137 = vmatpush.msra.mxu0 %v34
    %1138 = vmatmul.f32.gmra.mxu0 %v1100
    %v1139 = vpop.f32.mrf.mxu0
    %v1140 = vadd.f32 0.0, %v1139
    %1141 = vdwg.mxu0
    %1142 = vmatpush.msra.mxu0 0.0
    %1143 = vmatpush.msra.mxu0 0.0
    %1144 = vmatpush.msra.mxu0 0.0
    %1145 = vmatpush.msra.mxu0 0.0
    %1146 = vmatpush.msra.mxu0 0.0
    %1147 = vmatpush.msra.mxu0 0.0
    %1148 = vmatpush.msra.mxu0 0.0
    %1149 = vmatpush.msra.mxu0 0.0
    %1150 = vmatpush.msra.mxu0 0.0
    %1151 = vmatpush.msra.mxu0 0.0
    %1152 = vmatpush.msra.mxu0 0.0
    %1153 = vmatpush.msra.mxu0 %v47
    %1154 = vmatpush.msra.mxu0 %v44
    %1155 = vmatpush.msra.mxu0 %v41
    %1156 = vmatpush.msra.mxu0 %v38
    %1157 = vmatpush.msra.mxu0 %v35
    %1158 = vmatmul.f32.gmra.mxu0 %v1100
    %v1159 = vpop.f32.mrf.mxu0
    %v1160 = vadd.f32 0.0, %v1159
    %1161 = vdwg.mxu0
    %v1162 = vadd.f32 %v1097, %v1140
    %v1163 = vxor.u32 %v1162, 2147483648
    %v1164 = vmul.f32 %v1163, 1.442695
    %v1165 = vpow.pop %v1164
    %v1166 = vadd.f32 %v1165, 1.0
    %v1167 = vrcp.pop %v1166
    %v1168 = vmul.f32 %v1166, %v1167
    %v1169 = vsub.f32 1.0, %v1168
    %v1170 = vmul.f32 %v1167, %v1169
    %v1171 = vadd.f32 %v1167, %v1170
    %vm1172 = vweird.f32 %v1166
    %vm1173 = vweird.f32 %v1167
    %vm1174 = vmor %vm1172, %vm1173
    %v1175 = vsel %vm1174, %v1167, %v1171
    %v1176 = vand.u32 2147483647, %v1166
    %vm1177 = vcmp.eq.f32.partialorder %v1176, 8.507059e+37
    %v1178 = vand.u32 %v1166, 2147483648
    %v1179 = vor.u32 1.1754944e-38, %v1178
    %v1180 = vsel %vm1177, %v1179, %v1175
    %v1181 = vmul.f32 1.0, %v1180
    %v1182 = vadd.f32 %v1096, %v1120
    %v1183 = vxor.u32 %v1182, 2147483648
    %v1184 = vmul.f32 %v1183, 1.442695
    %v1185 = vpow.pop %v1184
    %v1186 = vadd.f32 %v1185, 1.0
    %v1187 = vrcp.pop %v1186
    %v1188 = vmul.f32 %v1186, %v1187
    %v1189 = vsub.f32 1.0, %v1188
    %v1190 = vmul.f32 %v1187, %v1189
    %v1191 = vadd.f32 %v1187, %v1190
    %vm1192 = vweird.f32 %v1186
    %vm1193 = vweird.f32 %v1187
    %vm1194 = vmor %vm1192, %vm1193
    %v1195 = vsel %vm1194, %v1187, %v1191
    %v1196 = vand.u32 2147483647, %v1186
    %vm1197 = vcmp.eq.f32.partialorder %v1196, 8.507059e+37
    %v1198 = vand.u32 %v1186, 2147483648
    %v1199 = vor.u32 1.1754944e-38, %v1198
    %v1200 = vsel %vm1197, %v1199, %v1195
    %v1201 = vmul.f32 1.0, %v1200
    %v1202 = vadd.f32 %v1160, %v85
    %v1203 = vmul.f32 %v1201, %v1202
    %v1204 = vadd.f32 %v1098, %v1203
    %v1205 = vtanh.pop %v1204
    %v1206 = vsub.f32 %v1095, %v1205
    %v1207 = vmul.f32 %v1181, %v1206
    %v1208 = vadd.f32 %v1205, %v1207
    %v1209 = vld [vmem:[#allocation3 + $0x60] sm:$0xff]
    %v1210 = vld [vmem:[#allocation3 + $0x68] sm:$0xff]
    %v1211 = vld [vmem:[#allocation3 + $0x70] sm:$0xff]
    %v1213 = vsel %vm377, %v1208, 0
    %1215 = vmatpush.msra.mxu0 0.0
    %1216 = vmatpush.msra.mxu0 0.0
    %1217 = vmatpush.msra.mxu0 0.0
    %1218 = vmatpush.msra.mxu0 0.0
    %1219 = vmatpush.msra.mxu0 0.0
    %1220 = vmatpush.msra.mxu0 0.0
    %1221 = vmatpush.msra.mxu0 0.0
    %1222 = vmatpush.msra.mxu0 0.0
    %1223 = vmatpush.msra.mxu0 0.0
    %1224 = vmatpush.msra.mxu0 0.0
    %1225 = vmatpush.msra.mxu0 0.0
    %1226 = vmatpush.msra.mxu0 %v45
    %1227 = vmatpush.msra.mxu0 %v42
    %1228 = vmatpush.msra.mxu0 %v39
    %1229 = vmatpush.msra.mxu0 %v36
    %1230 = vmatpush.msra.mxu0 %v33
    %1231 = vmatmul.f32.gmra.mxu0 %v1213
    %v1232 = vpop.f32.mrf.mxu0
    %v1233 = vadd.f32 0.0, %v1232
    %1234 = vdwg.mxu0
    %1235 = vmatpush.msra.mxu0 0.0
    %1236 = vmatpush.msra.mxu0 0.0
    %1237 = vmatpush.msra.mxu0 0.0
    %1238 = vmatpush.msra.mxu0 0.0
    %1239 = vmatpush.msra.mxu0 0.0
    %1240 = vmatpush.msra.mxu0 0.0
    %1241 = vmatpush.msra.mxu0 0.0
    %1242 = vmatpush.msra.mxu0 0.0
    %1243 = vmatpush.msra.mxu0 0.0
    %1244 = vmatpush.msra.mxu0 0.0
    %1245 = vmatpush.msra.mxu0 0.0
    %1246 = vmatpush.msra.mxu0 %v46
    %1247 = vmatpush.msra.mxu0 %v43
    %1248 = vmatpush.msra.mxu0 %v40
    %1249 = vmatpush.msra.mxu0 %v37
    %1250 = vmatpush.msra.mxu0 %v34
    %1251 = vmatmul.f32.gmra.mxu0 %v1213
    %v1252 = vpop.f32.mrf.mxu0
    %v1253 = vadd.f32 0.0, %v1252
    %1254 = vdwg.mxu0
    %1255 = vmatpush.msra.mxu0 0.0
    %1256 = vmatpush.msra.mxu0 0.0
    %1257 = vmatpush.msra.mxu0 0.0
    %1258 = vmatpush.msra.mxu0 0.0
    %1259 = vmatpush.msra.mxu0 0.0
    %1260 = vmatpush.msra.mxu0 0.0
    %1261 = vmatpush.msra.mxu0 0.0
    %1262 = vmatpush.msra.mxu0 0.0
    %1263 = vmatpush.msra.mxu0 0.0
    %1264 = vmatpush.msra.mxu0 0.0
    %1265 = vmatpush.msra.mxu0 0.0
    %1266 = vmatpush.msra.mxu0 %v47
    %1267 = vmatpush.msra.mxu0 %v44
    %1268 = vmatpush.msra.mxu0 %v41
    %1269 = vmatpush.msra.mxu0 %v38
    %1270 = vmatpush.msra.mxu0 %v35
    %1271 = vmatmul.f32.gmra.mxu0 %v1213
    %v1272 = vpop.f32.mrf.mxu0
    %v1273 = vadd.f32 0.0, %v1272
    %1274 = vdwg.mxu0
    %v1275 = vadd.f32 %v1210, %v1253
    %v1276 = vxor.u32 %v1275, 2147483648
    %v1277 = vmul.f32 %v1276, 1.442695
    %v1278 = vpow.pop %v1277
    %v1279 = vadd.f32 %v1278, 1.0
    %v1280 = vrcp.pop %v1279
    %v1281 = vmul.f32 %v1279, %v1280
    %v1282 = vsub.f32 1.0, %v1281
    %v1283 = vmul.f32 %v1280, %v1282
    %v1284 = vadd.f32 %v1280, %v1283
    %vm1285 = vweird.f32 %v1279
    %vm1286 = vweird.f32 %v1280
    %vm1287 = vmor %vm1285, %vm1286
    %v1288 = vsel %vm1287, %v1280, %v1284
    %v1289 = vand.u32 2147483647, %v1279
    %vm1290 = vcmp.eq.f32.partialorder %v1289, 8.507059e+37
    %v1291 = vand.u32 %v1279, 2147483648
    %v1292 = vor.u32 1.1754944e-38, %v1291
    %v1293 = vsel %vm1290, %v1292, %v1288
    %v1294 = vmul.f32 1.0, %v1293
    %v1295 = vadd.f32 %v1209, %v1233
    %v1296 = vxor.u32 %v1295, 2147483648
    %v1297 = vmul.f32 %v1296, 1.442695
    %v1298 = vpow.pop %v1297
    %v1299 = vadd.f32 %v1298, 1.0
    %v1300 = vrcp.pop %v1299
    %v1301 = vmul.f32 %v1299, %v1300
    %v1302 = vsub.f32 1.0, %v1301
    %v1303 = vmul.f32 %v1300, %v1302
    %v1304 = vadd.f32 %v1300, %v1303
    %vm1305 = vweird.f32 %v1299
    %vm1306 = vweird.f32 %v1300
    %vm1307 = vmor %vm1305, %vm1306
    %v1308 = vsel %vm1307, %v1300, %v1304
    %v1309 = vand.u32 2147483647, %v1299
    %vm1310 = vcmp.eq.f32.partialorder %v1309, 8.507059e+37
    %v1311 = vand.u32 %v1299, 2147483648
    %v1312 = vor.u32 1.1754944e-38, %v1311
    %v1313 = vsel %vm1310, %v1312, %v1308
    %v1314 = vmul.f32 1.0, %v1313
    %v1315 = vadd.f32 %v1273, %v85
    %v1316 = vmul.f32 %v1314, %v1315
    %v1317 = vadd.f32 %v1211, %v1316
    %v1318 = vtanh.pop %v1317
    %v1319 = vsub.f32 %v1208, %v1318
    %v1320 = vmul.f32 %v1294, %v1319
    %v1321 = vadd.f32 %v1318, %v1320
    %v1322 = vld [vmem:[#allocation3 + $0x78] sm:$0xff]
    %v1323 = vld [vmem:[#allocation3 + $0x80] sm:$0xff]
    %v1324 = vld [vmem:[#allocation3 + $0x88] sm:$0xff]
    %v1326 = vsel %vm377, %v1321, 0
    %1328 = vmatpush.msra.mxu0 0.0
    %1329 = vmatpush.msra.mxu0 0.0
    %1330 = vmatpush.msra.mxu0 0.0
    %1331 = vmatpush.msra.mxu0 0.0
    %1332 = vmatpush.msra.mxu0 0.0
    %1333 = vmatpush.msra.mxu0 0.0
    %1334 = vmatpush.msra.mxu0 0.0
    %1335 = vmatpush.msra.mxu0 0.0
    %1336 = vmatpush.msra.mxu0 0.0
    %1337 = vmatpush.msra.mxu0 0.0
    %1338 = vmatpush.msra.mxu0 0.0
    %1339 = vmatpush.msra.mxu0 %v45
    %1340 = vmatpush.msra.mxu0 %v42
    %1341 = vmatpush.msra.mxu0 %v39
    %1342 = vmatpush.msra.mxu0 %v36
    %1343 = vmatpush.msra.mxu0 %v33
    %1344 = vmatmul.f32.gmra.mxu0 %v1326
    %v1345 = vpop.f32.mrf.mxu0
    %v1346 = vadd.f32 0.0, %v1345
    %1347 = vdwg.mxu0
    %1348 = vmatpush.msra.mxu0 0.0
    %1349 = vmatpush.msra.mxu0 0.0
    %1350 = vmatpush.msra.mxu0 0.0
    %1351 = vmatpush.msra.mxu0 0.0
    %1352 = vmatpush.msra.mxu0 0.0
    %1353 = vmatpush.msra.mxu0 0.0
    %1354 = vmatpush.msra.mxu0 0.0
    %1355 = vmatpush.msra.mxu0 0.0
    %1356 = vmatpush.msra.mxu0 0.0
    %1357 = vmatpush.msra.mxu0 0.0
    %1358 = vmatpush.msra.mxu0 0.0
    %1359 = vmatpush.msra.mxu0 %v46
    %1360 = vmatpush.msra.mxu0 %v43
    %1361 = vmatpush.msra.mxu0 %v40
    %1362 = vmatpush.msra.mxu0 %v37
    %1363 = vmatpush.msra.mxu0 %v34
    %1364 = vmatmul.f32.gmra.mxu0 %v1326
    %v1365 = vpop.f32.mrf.mxu0
    %v1366 = vadd.f32 0.0, %v1365
    %1367 = vdwg.mxu0
    %1368 = vmatpush.msra.mxu0 0.0
    %1369 = vmatpush.msra.mxu0 0.0
    %1370 = vmatpush.msra.mxu0 0.0
    %1371 = vmatpush.msra.mxu0 0.0
    %1372 = vmatpush.msra.mxu0 0.0
    %1373 = vmatpush.msra.mxu0 0.0
    %1374 = vmatpush.msra.mxu0 0.0
    %1375 = vmatpush.msra.mxu0 0.0
    %1376 = vmatpush.msra.mxu0 0.0
    %1377 = vmatpush.msra.mxu0 0.0
    %1378 = vmatpush.msra.mxu0 0.0
    %1379 = vmatpush.msra.mxu0 %v47
    %1380 = vmatpush.msra.mxu0 %v44
    %1381 = vmatpush.msra.mxu0 %v41
    %1382 = vmatpush.msra.mxu0 %v38
    %1383 = vmatpush.msra.mxu0 %v35
    %1384 = vmatmul.f32.gmra.mxu0 %v1326
    %v1385 = vpop.f32.mrf.mxu0
    %v1386 = vadd.f32 0.0, %v1385
    %1387 = vdwg.mxu0
    %v1388 = vadd.f32 %v1323, %v1366
    %v1389 = vxor.u32 %v1388, 2147483648
    %v1390 = vmul.f32 %v1389, 1.442695
    %v1391 = vpow.pop %v1390
    %v1392 = vadd.f32 %v1391, 1.0
    %v1393 = vrcp.pop %v1392
    %v1394 = vmul.f32 %v1392, %v1393
    %v1395 = vsub.f32 1.0, %v1394
    %v1396 = vmul.f32 %v1393, %v1395
    %v1397 = vadd.f32 %v1393, %v1396
    %vm1398 = vweird.f32 %v1392
    %vm1399 = vweird.f32 %v1393
    %vm1400 = vmor %vm1398, %vm1399
    %v1401 = vsel %vm1400, %v1393, %v1397
    %v1402 = vand.u32 2147483647, %v1392
    %vm1403 = vcmp.eq.f32.partialorder %v1402, 8.507059e+37
    %v1404 = vand.u32 %v1392, 2147483648
    %v1405 = vor.u32 1.1754944e-38, %v1404
    %v1406 = vsel %vm1403, %v1405, %v1401
    %v1407 = vmul.f32 1.0, %v1406
    %v1408 = vadd.f32 %v1322, %v1346
    %v1409 = vxor.u32 %v1408, 2147483648
    %v1410 = vmul.f32 %v1409, 1.442695
    %v1411 = vpow.pop %v1410
    %v1412 = vadd.f32 %v1411, 1.0
    %v1413 = vrcp.pop %v1412
    %v1414 = vmul.f32 %v1412, %v1413
    %v1415 = vsub.f32 1.0, %v1414
    %v1416 = vmul.f32 %v1413, %v1415
    %v1417 = vadd.f32 %v1413, %v1416
    %vm1418 = vweird.f32 %v1412
    %vm1419 = vweird.f32 %v1413
    %vm1420 = vmor %vm1418, %vm1419
    %v1421 = vsel %vm1420, %v1413, %v1417
    %v1422 = vand.u32 2147483647, %v1412
    %vm1423 = vcmp.eq.f32.partialorder %v1422, 8.507059e+37
    %v1424 = vand.u32 %v1412, 2147483648
    %v1425 = vor.u32 1.1754944e-38, %v1424
    %v1426 = vsel %vm1423, %v1425, %v1421
    %v1427 = vmul.f32 1.0, %v1426
    %v1428 = vadd.f32 %v1386, %v85
    %v1429 = vmul.f32 %v1427, %v1428
    %v1430 = vadd.f32 %v1324, %v1429
    %v1431 = vtanh.pop %v1430
    %v1432 = vsub.f32 %v1321, %v1431
    %v1433 = vmul.f32 %v1407, %v1432
    %v1434 = vadd.f32 %v1431, %v1433
    %v1435 = vld [vmem:[#allocation3 + $0x90] sm:$0xff]
    %v1436 = vld [vmem:[#allocation3 + $0x98] sm:$0xff]
    %v1437 = vld [vmem:[#allocation3 + $0xa0] sm:$0xff]
    %v1439 = vsel %vm377, %v1434, 0
    %1441 = vmatpush.msra.mxu0 0.0
    %1442 = vmatpush.msra.mxu0 0.0
    %1443 = vmatpush.msra.mxu0 0.0
    %1444 = vmatpush.msra.mxu0 0.0
    %1445 = vmatpush.msra.mxu0 0.0
    %1446 = vmatpush.msra.mxu0 0.0
    %1447 = vmatpush.msra.mxu0 0.0
    %1448 = vmatpush.msra.mxu0 0.0
    %1449 = vmatpush.msra.mxu0 0.0
    %1450 = vmatpush.msra.mxu0 0.0
    %1451 = vmatpush.msra.mxu0 0.0
    %1452 = vmatpush.msra.mxu0 %v45
    %1453 = vmatpush.msra.mxu0 %v42
    %1454 = vmatpush.msra.mxu0 %v39
    %1455 = vmatpush.msra.mxu0 %v36
    %1456 = vmatpush.msra.mxu0 %v33
    %1457 = vmatmul.f32.gmra.mxu0 %v1439
    %v1458 = vpop.f32.mrf.mxu0
    %v1459 = vadd.f32 0.0, %v1458
    %1460 = vdwg.mxu0
    %1461 = vmatpush.msra.mxu0 0.0
    %1462 = vmatpush.msra.mxu0 0.0
    %1463 = vmatpush.msra.mxu0 0.0
    %1464 = vmatpush.msra.mxu0 0.0
    %1465 = vmatpush.msra.mxu0 0.0
    %1466 = vmatpush.msra.mxu0 0.0
    %1467 = vmatpush.msra.mxu0 0.0
    %1468 = vmatpush.msra.mxu0 0.0
    %1469 = vmatpush.msra.mxu0 0.0
    %1470 = vmatpush.msra.mxu0 0.0
    %1471 = vmatpush.msra.mxu0 0.0
    %1472 = vmatpush.msra.mxu0 %v46
    %1473 = vmatpush.msra.mxu0 %v43
    %1474 = vmatpush.msra.mxu0 %v40
    %1475 = vmatpush.msra.mxu0 %v37
    %1476 = vmatpush.msra.mxu0 %v34
    %1477 = vmatmul.f32.gmra.mxu0 %v1439
    %v1478 = vpop.f32.mrf.mxu0
    %v1479 = vadd.f32 0.0, %v1478
    %1480 = vdwg.mxu0
    %1481 = vmatpush.msra.mxu0 0.0
    %1482 = vmatpush.msra.mxu0 0.0
    %1483 = vmatpush.msra.mxu0 0.0
    %1484 = vmatpush.msra.mxu0 0.0
    %1485 = vmatpush.msra.mxu0 0.0
    %1486 = vmatpush.msra.mxu0 0.0
    %1487 = vmatpush.msra.mxu0 0.0
    %1488 = vmatpush.msra.mxu0 0.0
    %1489 = vmatpush.msra.mxu0 0.0
    %1490 = vmatpush.msra.mxu0 0.0
    %1491 = vmatpush.msra.mxu0 0.0
    %1492 = vmatpush.msra.mxu0 %v47
    %1493 = vmatpush.msra.mxu0 %v44
    %1494 = vmatpush.msra.mxu0 %v41
    %1495 = vmatpush.msra.mxu0 %v38
    %1496 = vmatpush.msra.mxu0 %v35
    %1497 = vmatmul.f32.gmra.mxu0 %v1439
    %v1498 = vpop.f32.mrf.mxu0
    %v1499 = vadd.f32 0.0, %v1498
    %1500 = vdwg.mxu0
    %v1501 = vadd.f32 %v1436, %v1479
    %v1502 = vxor.u32 %v1501, 2147483648
    %v1503 = vmul.f32 %v1502, 1.442695
    %v1504 = vpow.pop %v1503
    %v1505 = vadd.f32 %v1504, 1.0
    %v1506 = vrcp.pop %v1505
    %v1507 = vmul.f32 %v1505, %v1506
    %v1508 = vsub.f32 1.0, %v1507
    %v1509 = vmul.f32 %v1506, %v1508
    %v1510 = vadd.f32 %v1506, %v1509
    %vm1511 = vweird.f32 %v1505
    %vm1512 = vweird.f32 %v1506
    %vm1513 = vmor %vm1511, %vm1512
    %v1514 = vsel %vm1513, %v1506, %v1510
    %v1515 = vand.u32 2147483647, %v1505
    %vm1516 = vcmp.eq.f32.partialorder %v1515, 8.507059e+37
    %v1517 = vand.u32 %v1505, 2147483648
    %v1518 = vor.u32 1.1754944e-38, %v1517
    %v1519 = vsel %vm1516, %v1518, %v1514
    %v1520 = vmul.f32 1.0, %v1519
    %v1521 = vadd.f32 %v1435, %v1459
    %v1522 = vxor.u32 %v1521, 2147483648
    %v1523 = vmul.f32 %v1522, 1.442695
    %v1524 = vpow.pop %v1523
    %v1525 = vadd.f32 %v1524, 1.0
    %v1526 = vrcp.pop %v1525
    %v1527 = vmul.f32 %v1525, %v1526
    %v1528 = vsub.f32 1.0, %v1527
    %v1529 = vmul.f32 %v1526, %v1528
    %v1530 = vadd.f32 %v1526, %v1529
    %vm1531 = vweird.f32 %v1525
    %vm1532 = vweird.f32 %v1526
    %vm1533 = vmor %vm1531, %vm1532
    %v1534 = vsel %vm1533, %v1526, %v1530
    %v1535 = vand.u32 2147483647, %v1525
    %vm1536 = vcmp.eq.f32.partialorder %v1535, 8.507059e+37
    %v1537 = vand.u32 %v1525, 2147483648
    %v1538 = vor.u32 1.1754944e-38, %v1537
    %v1539 = vsel %vm1536, %v1538, %v1534
    %v1540 = vmul.f32 1.0, %v1539
    %v1541 = vadd.f32 %v1499, %v85
    %v1542 = vmul.f32 %v1540, %v1541
    %v1543 = vadd.f32 %v1437, %v1542
    %v1544 = vtanh.pop %v1543
    %v1545 = vsub.f32 %v1434, %v1544
    %v1546 = vmul.f32 %v1520, %v1545
    %v1547 = vadd.f32 %v1544, %v1546
    %v1548 = vld [vmem:[#allocation3 + $0xa8] sm:$0xff]
    %v1549 = vld [vmem:[#allocation3 + $0xb0] sm:$0xff]
    %v1550 = vld [vmem:[#allocation3 + $0xb8] sm:$0xff]
    %v1552 = vsel %vm377, %v1547, 0
    %1554 = vmatpush.msra.mxu0 0.0
    %1555 = vmatpush.msra.mxu0 0.0
    %1556 = vmatpush.msra.mxu0 0.0
    %1557 = vmatpush.msra.mxu0 0.0
    %1558 = vmatpush.msra.mxu0 0.0
    %1559 = vmatpush.msra.mxu0 0.0
    %1560 = vmatpush.msra.mxu0 0.0
    %1561 = vmatpush.msra.mxu0 0.0
    %1562 = vmatpush.msra.mxu0 0.0
    %1563 = vmatpush.msra.mxu0 0.0
    %1564 = vmatpush.msra.mxu0 0.0
    %1565 = vmatpush.msra.mxu0 %v45
    %1566 = vmatpush.msra.mxu0 %v42
    %1567 = vmatpush.msra.mxu0 %v39
    %1568 = vmatpush.msra.mxu0 %v36
    %1569 = vmatpush.msra.mxu0 %v33
    %1570 = vmatmul.f32.gmra.mxu0 %v1552
    %v1571 = vpop.f32.mrf.mxu0
    %v1572 = vadd.f32 0.0, %v1571
    %1573 = vdwg.mxu0
    %1574 = vmatpush.msra.mxu0 0.0
    %1575 = vmatpush.msra.mxu0 0.0
    %1576 = vmatpush.msra.mxu0 0.0
    %1577 = vmatpush.msra.mxu0 0.0
    %1578 = vmatpush.msra.mxu0 0.0
    %1579 = vmatpush.msra.mxu0 0.0
    %1580 = vmatpush.msra.mxu0 0.0
    %1581 = vmatpush.msra.mxu0 0.0
    %1582 = vmatpush.msra.mxu0 0.0
    %1583 = vmatpush.msra.mxu0 0.0
    %1584 = vmatpush.msra.mxu0 0.0
    %1585 = vmatpush.msra.mxu0 %v46
    %1586 = vmatpush.msra.mxu0 %v43
    %1587 = vmatpush.msra.mxu0 %v40
    %1588 = vmatpush.msra.mxu0 %v37
    %1589 = vmatpush.msra.mxu0 %v34
    %1590 = vmatmul.f32.gmra.mxu0 %v1552
    %v1591 = vpop.f32.mrf.mxu0
    %v1592 = vadd.f32 0.0, %v1591
    %1593 = vdwg.mxu0
    %1594 = vmatpush.msra.mxu0 0.0
    %1595 = vmatpush.msra.mxu0 0.0
    %1596 = vmatpush.msra.mxu0 0.0
    %1597 = vmatpush.msra.mxu0 0.0
    %1598 = vmatpush.msra.mxu0 0.0
    %1599 = vmatpush.msra.mxu0 0.0
    %1600 = vmatpush.msra.mxu0 0.0
    %1601 = vmatpush.msra.mxu0 0.0
    %1602 = vmatpush.msra.mxu0 0.0
    %1603 = vmatpush.msra.mxu0 0.0
    %1604 = vmatpush.msra.mxu0 0.0
    %1605 = vmatpush.msra.mxu0 %v47
    %1606 = vmatpush.msra.mxu0 %v44
    %1607 = vmatpush.msra.mxu0 %v41
    %1608 = vmatpush.msra.mxu0 %v38
    %1609 = vmatpush.msra.mxu0 %v35
    %1610 = vmatmul.f32.gmra.mxu0 %v1552
    %v1611 = vpop.f32.mrf.mxu0
    %v1612 = vadd.f32 0.0, %v1611
    %1613 = vdwg.mxu0
    %v1614 = vadd.f32 %v1549, %v1592
    %v1615 = vxor.u32 %v1614, 2147483648
    %v1616 = vmul.f32 %v1615, 1.442695
    %v1617 = vpow.pop %v1616
    %v1618 = vadd.f32 %v1617, 1.0
    %v1619 = vrcp.pop %v1618
    %v1620 = vmul.f32 %v1618, %v1619
    %v1621 = vsub.f32 1.0, %v1620
    %v1622 = vmul.f32 %v1619, %v1621
    %v1623 = vadd.f32 %v1619, %v1622
    %vm1624 = vweird.f32 %v1618
    %vm1625 = vweird.f32 %v1619
    %vm1626 = vmor %vm1624, %vm1625
    %v1627 = vsel %vm1626, %v1619, %v1623
    %v1628 = vand.u32 2147483647, %v1618
    %vm1629 = vcmp.eq.f32.partialorder %v1628, 8.507059e+37
    %v1630 = vand.u32 %v1618, 2147483648
    %v1631 = vor.u32 1.1754944e-38, %v1630
    %v1632 = vsel %vm1629, %v1631, %v1627
    %v1633 = vmul.f32 1.0, %v1632
    %v1634 = vadd.f32 %v1548, %v1572
    %v1635 = vxor.u32 %v1634, 2147483648
    %v1636 = vmul.f32 %v1635, 1.442695
    %v1637 = vpow.pop %v1636
    %v1638 = vadd.f32 %v1637, 1.0
    %v1639 = vrcp.pop %v1638
    %v1640 = vmul.f32 %v1638, %v1639
    %v1641 = vsub.f32 1.0, %v1640
    %v1642 = vmul.f32 %v1639, %v1641
    %v1643 = vadd.f32 %v1639, %v1642
    %vm1644 = vweird.f32 %v1638
    %vm1645 = vweird.f32 %v1639
    %vm1646 = vmor %vm1644, %vm1645
    %v1647 = vsel %vm1646, %v1639, %v1643
    %v1648 = vand.u32 2147483647, %v1638
    %vm1649 = vcmp.eq.f32.partialorder %v1648, 8.507059e+37
    %v1650 = vand.u32 %v1638, 2147483648
    %v1651 = vor.u32 1.1754944e-38, %v1650
    %v1652 = vsel %vm1649, %v1651, %v1647
    %v1653 = vmul.f32 1.0, %v1652
    %v1654 = vadd.f32 %v1612, %v85
    %v1655 = vmul.f32 %v1653, %v1654
    %v1656 = vadd.f32 %v1550, %v1655
    %v1657 = vtanh.pop %v1656
    %v1658 = vsub.f32 %v1547, %v1657
    %v1659 = vmul.f32 %v1633, %v1658
    %v1660 = vadd.f32 %v1657, %v1659
    %v1661 = vld [vmem:[#allocation3 + $0xc0] sm:$0xff]
    %v1662 = vld [vmem:[#allocation3 + $0xc8] sm:$0xff]
    %v1663 = vld [vmem:[#allocation3 + $0xd0] sm:$0xff]
    %v1665 = vsel %vm377, %v1660, 0
    %1667 = vmatpush.msra.mxu0 0.0
    %1668 = vmatpush.msra.mxu0 0.0
    %1669 = vmatpush.msra.mxu0 0.0
    %1670 = vmatpush.msra.mxu0 0.0
    %1671 = vmatpush.msra.mxu0 0.0
    %1672 = vmatpush.msra.mxu0 0.0
    %1673 = vmatpush.msra.mxu0 0.0
    %1674 = vmatpush.msra.mxu0 0.0
    %1675 = vmatpush.msra.mxu0 0.0
    %1676 = vmatpush.msra.mxu0 0.0
    %1677 = vmatpush.msra.mxu0 0.0
    %1678 = vmatpush.msra.mxu0 %v60
    %1679 = vmatpush.msra.mxu0 %v57
    %1680 = vmatpush.msra.mxu0 %v54
    %1681 = vmatpush.msra.mxu0 %v51
    %1682 = vmatpush.msra.mxu0 %v48
    %1683 = vmatmul.f32.gmra.mxu0 %v1665
    %v1684 = vpop.f32.mrf.mxu0
    %v1685 = vadd.f32 0.0, %v1684
    %1686 = vdwg.mxu0
    %1687 = vmatpush.msra.mxu0 0.0
    %1688 = vmatpush.msra.mxu0 0.0
    %1689 = vmatpush.msra.mxu0 0.0
    %1690 = vmatpush.msra.mxu0 0.0
    %1691 = vmatpush.msra.mxu0 0.0
    %1692 = vmatpush.msra.mxu0 0.0
    %1693 = vmatpush.msra.mxu0 0.0
    %1694 = vmatpush.msra.mxu0 0.0
    %1695 = vmatpush.msra.mxu0 0.0
    %1696 = vmatpush.msra.mxu0 0.0
    %1697 = vmatpush.msra.mxu0 0.0
    %1698 = vmatpush.msra.mxu0 %v61
    %1699 = vmatpush.msra.mxu0 %v58
    %1700 = vmatpush.msra.mxu0 %v55
    %1701 = vmatpush.msra.mxu0 %v52
    %1702 = vmatpush.msra.mxu0 %v49
    %1703 = vmatmul.f32.gmra.mxu0 %v1665
    %v1704 = vpop.f32.mrf.mxu0
    %v1705 = vadd.f32 0.0, %v1704
    %1706 = vdwg.mxu0
    %1707 = vmatpush.msra.mxu0 0.0
    %1708 = vmatpush.msra.mxu0 0.0
    %1709 = vmatpush.msra.mxu0 0.0
    %1710 = vmatpush.msra.mxu0 0.0
    %1711 = vmatpush.msra.mxu0 0.0
    %1712 = vmatpush.msra.mxu0 0.0
    %1713 = vmatpush.msra.mxu0 0.0
    %1714 = vmatpush.msra.mxu0 0.0
    %1715 = vmatpush.msra.mxu0 0.0
    %1716 = vmatpush.msra.mxu0 0.0
    %1717 = vmatpush.msra.mxu0 0.0
    %1718 = vmatpush.msra.mxu0 %v62
    %1719 = vmatpush.msra.mxu0 %v59
    %1720 = vmatpush.msra.mxu0 %v56
    %1721 = vmatpush.msra.mxu0 %v53
    %1722 = vmatpush.msra.mxu0 %v50
    %1723 = vmatmul.f32.gmra.mxu0 %v1665
    %v1724 = vpop.f32.mrf.mxu0
    %v1725 = vadd.f32 0.0, %v1724
    %1726 = vdwg.mxu0
    %v1727 = vadd.f32 %v1662, %v1705
    %v1728 = vxor.u32 %v1727, 2147483648
    %v1729 = vmul.f32 %v1728, 1.442695
    %v1730 = vpow.pop %v1729
    %v1731 = vadd.f32 %v1730, 1.0
    %v1732 = vrcp.pop %v1731
    %v1733 = vmul.f32 %v1731, %v1732
    %v1734 = vsub.f32 1.0, %v1733
    %v1735 = vmul.f32 %v1732, %v1734
    %v1736 = vadd.f32 %v1732, %v1735
    %vm1737 = vweird.f32 %v1731
    %vm1738 = vweird.f32 %v1732
    %vm1739 = vmor %vm1737, %vm1738
    %v1740 = vsel %vm1739, %v1732, %v1736
    %v1741 = vand.u32 2147483647, %v1731
    %vm1742 = vcmp.eq.f32.partialorder %v1741, 8.507059e+37
    %v1743 = vand.u32 %v1731, 2147483648
    %v1744 = vor.u32 1.1754944e-38, %v1743
    %v1745 = vsel %vm1742, %v1744, %v1740
    %v1746 = vmul.f32 1.0, %v1745
    %v1747 = vadd.f32 %v1661, %v1685
    %v1748 = vxor.u32 %v1747, 2147483648
    %v1749 = vmul.f32 %v1748, 1.442695
    %v1750 = vpow.pop %v1749
    %v1751 = vadd.f32 %v1750, 1.0
    %v1752 = vrcp.pop %v1751
    %v1753 = vmul.f32 %v1751, %v1752
    %v1754 = vsub.f32 1.0, %v1753
    %v1755 = vmul.f32 %v1752, %v1754
    %v1756 = vadd.f32 %v1752, %v1755
    %vm1757 = vweird.f32 %v1751
    %vm1758 = vweird.f32 %v1752
    %vm1759 = vmor %vm1757, %vm1758
    %v1760 = vsel %vm1759, %v1752, %v1756
    %v1761 = vand.u32 2147483647, %v1751
    %vm1762 = vcmp.eq.f32.partialorder %v1761, 8.507059e+37
    %v1763 = vand.u32 %v1751, 2147483648
    %v1764 = vor.u32 1.1754944e-38, %v1763
    %v1765 = vsel %vm1762, %v1764, %v1760
    %v1766 = vmul.f32 1.0, %v1765
    %v1767 = vadd.f32 %v1725, %v86
    %v1768 = vmul.f32 %v1766, %v1767
    %v1769 = vadd.f32 %v1663, %v1768
    %v1770 = vtanh.pop %v1769
    %v1771 = vsub.f32 %v1660, %v1770
    %v1772 = vmul.f32 %v1746, %v1771
    %v1773 = vadd.f32 %v1770, %v1772
    %1774 = vst [vmem:[#allocation2] sm:$0xff] %v1773
    %v1775 = vld [vmem:[#allocation3 + $0xd8] sm:$0xff]
    %v1776 = vld [vmem:[#allocation3 + $0xe0] sm:$0xff]
    %v1777 = vld [vmem:[#allocation3 + $0xe8] sm:$0xff]
    %v1779 = vsel %vm377, %v1773, 0
    %1781 = vmatpush.msra.mxu0 0.0
    %1782 = vmatpush.msra.mxu0 0.0
    %1783 = vmatpush.msra.mxu0 0.0
    %1784 = vmatpush.msra.mxu0 0.0
    %1785 = vmatpush.msra.mxu0 0.0
    %1786 = vmatpush.msra.mxu0 0.0
    %1787 = vmatpush.msra.mxu0 0.0
    %1788 = vmatpush.msra.mxu0 0.0
    %1789 = vmatpush.msra.mxu0 0.0
    %1790 = vmatpush.msra.mxu0 0.0
    %1791 = vmatpush.msra.mxu0 0.0
    %1792 = vmatpush.msra.mxu0 %v60
    %1793 = vmatpush.msra.mxu0 %v57
    %1794 = vmatpush.msra.mxu0 %v54
    %1795 = vmatpush.msra.mxu0 %v51
    %1796 = vmatpush.msra.mxu0 %v48
    %1797 = vmatmul.f32.gmra.mxu0 %v1779
    %v1798 = vpop.f32.mrf.mxu0
    %v1799 = vadd.f32 0.0, %v1798
    %1800 = vdwg.mxu0
    %1801 = vmatpush.msra.mxu0 0.0
    %1802 = vmatpush.msra.mxu0 0.0
    %1803 = vmatpush.msra.mxu0 0.0
    %1804 = vmatpush.msra.mxu0 0.0
    %1805 = vmatpush.msra.mxu0 0.0
    %1806 = vmatpush.msra.mxu0 0.0
    %1807 = vmatpush.msra.mxu0 0.0
    %1808 = vmatpush.msra.mxu0 0.0
    %1809 = vmatpush.msra.mxu0 0.0
    %1810 = vmatpush.msra.mxu0 0.0
    %1811 = vmatpush.msra.mxu0 0.0
    %1812 = vmatpush.msra.mxu0 %v61
    %1813 = vmatpush.msra.mxu0 %v58
    %1814 = vmatpush.msra.mxu0 %v55
    %1815 = vmatpush.msra.mxu0 %v52
    %1816 = vmatpush.msra.mxu0 %v49
    %1817 = vmatmul.f32.gmra.mxu0 %v1779
    %v1818 = vpop.f32.mrf.mxu0
    %v1819 = vadd.f32 0.0, %v1818
    %1820 = vdwg.mxu0
    %1821 = vmatpush.msra.mxu0 0.0
    %1822 = vmatpush.msra.mxu0 0.0
    %1823 = vmatpush.msra.mxu0 0.0
    %1824 = vmatpush.msra.mxu0 0.0
    %1825 = vmatpush.msra.mxu0 0.0
    %1826 = vmatpush.msra.mxu0 0.0
    %1827 = vmatpush.msra.mxu0 0.0
    %1828 = vmatpush.msra.mxu0 0.0
    %1829 = vmatpush.msra.mxu0 0.0
    %1830 = vmatpush.msra.mxu0 0.0
    %1831 = vmatpush.msra.mxu0 0.0
    %1832 = vmatpush.msra.mxu0 %v62
    %1833 = vmatpush.msra.mxu0 %v59
    %1834 = vmatpush.msra.mxu0 %v56
    %1835 = vmatpush.msra.mxu0 %v53
    %1836 = vmatpush.msra.mxu0 %v50
    %1837 = vmatmul.f32.gmra.mxu0 %v1779
    %v1838 = vpop.f32.mrf.mxu0
    %v1839 = vadd.f32 0.0, %v1838
    %1840 = vdwg.mxu0
    %v1841 = vadd.f32 %v1776, %v1819
    %v1842 = vxor.u32 %v1841, 2147483648
    %v1843 = vmul.f32 %v1842, 1.442695
    %v1844 = vpow.pop %v1843
    %v1845 = vadd.f32 %v1844, 1.0
    %v1846 = vrcp.pop %v1845
    %v1847 = vmul.f32 %v1845, %v1846
    %v1848 = vsub.f32 1.0, %v1847
    %v1849 = vmul.f32 %v1846, %v1848
    %v1850 = vadd.f32 %v1846, %v1849
    %vm1851 = vweird.f32 %v1845
    %vm1852 = vweird.f32 %v1846
    %vm1853 = vmor %vm1851, %vm1852
    %v1854 = vsel %vm1853, %v1846, %v1850
    %v1855 = vand.u32 2147483647, %v1845
    %vm1856 = vcmp.eq.f32.partialorder %v1855, 8.507059e+37
    %v1857 = vand.u32 %v1845, 2147483648
    %v1858 = vor.u32 1.1754944e-38, %v1857
    %v1859 = vsel %vm1856, %v1858, %v1854
    %v1860 = vmul.f32 1.0, %v1859
    %v1861 = vadd.f32 %v1775, %v1799
    %v1862 = vxor.u32 %v1861, 2147483648
    %v1863 = vmul.f32 %v1862, 1.442695
    %v1864 = vpow.pop %v1863
    %v1865 = vadd.f32 %v1864, 1.0
    %v1866 = vrcp.pop %v1865
    %v1867 = vmul.f32 %v1865, %v1866
    %v1868 = vsub.f32 1.0, %v1867
    %v1869 = vmul.f32 %v1866, %v1868
    %v1870 = vadd.f32 %v1866, %v1869
    %vm1871 = vweird.f32 %v1865
    %vm1872 = vweird.f32 %v1866
    %vm1873 = vmor %vm1871, %vm1872
    %v1874 = vsel %vm1873, %v1866, %v1870
    %v1875 = vand.u32 2147483647, %v1865
    %vm1876 = vcmp.eq.f32.partialorder %v1875, 8.507059e+37
    %v1877 = vand.u32 %v1865, 2147483648
    %v1878 = vor.u32 1.1754944e-38, %v1877
    %v1879 = vsel %vm1876, %v1878, %v1874
    %v1880 = vmul.f32 1.0, %v1879
    %v1881 = vadd.f32 %v1839, %v86
    %v1882 = vmul.f32 %v1880, %v1881
    %v1883 = vadd.f32 %v1777, %v1882
    %v1884 = vtanh.pop %v1883
    %v1885 = vsub.f32 %v1773, %v1884
    %v1886 = vmul.f32 %v1860, %v1885
    %v1887 = vadd.f32 %v1884, %v1886
    %1888 = vst [vmem:[#allocation2 + $0x8] sm:$0xff] %v1887
    %v1889 = vld [vmem:[#allocation3 + $0xf0] sm:$0xff]
    %v1890 = vld [vmem:[#allocation3 + $0xf8] sm:$0xff]
    %v1891 = vld [vmem:[#allocation3 + $0x100] sm:$0xff]
    %v1893 = vsel %vm377, %v1887, 0
    %1895 = vmatpush.msra.mxu0 0.0
    %1896 = vmatpush.msra.mxu0 0.0
    %1897 = vmatpush.msra.mxu0 0.0
    %1898 = vmatpush.msra.mxu0 0.0
    %1899 = vmatpush.msra.mxu0 0.0
    %1900 = vmatpush.msra.mxu0 0.0
    %1901 = vmatpush.msra.mxu0 0.0
    %1902 = vmatpush.msra.mxu0 0.0
    %1903 = vmatpush.msra.mxu0 0.0
    %1904 = vmatpush.msra.mxu0 0.0
    %1905 = vmatpush.msra.mxu0 0.0
    %1906 = vmatpush.msra.mxu0 %v60
    %1907 = vmatpush.msra.mxu0 %v57
    %1908 = vmatpush.msra.mxu0 %v54
    %1909 = vmatpush.msra.mxu0 %v51
    %1910 = vmatpush.msra.mxu0 %v48
    %1911 = vmatmul.f32.gmra.mxu0 %v1893
    %v1912 = vpop.f32.mrf.mxu0
    %v1913 = vadd.f32 0.0, %v1912
    %1914 = vdwg.mxu0
    %1915 = vmatpush.msra.mxu0 0.0
    %1916 = vmatpush.msra.mxu0 0.0
    %1917 = vmatpush.msra.mxu0 0.0
    %1918 = vmatpush.msra.mxu0 0.0
    %1919 = vmatpush.msra.mxu0 0.0
    %1920 = vmatpush.msra.mxu0 0.0
    %1921 = vmatpush.msra.mxu0 0.0
    %1922 = vmatpush.msra.mxu0 0.0
    %1923 = vmatpush.msra.mxu0 0.0
    %1924 = vmatpush.msra.mxu0 0.0
    %1925 = vmatpush.msra.mxu0 0.0
    %1926 = vmatpush.msra.mxu0 %v61
    %1927 = vmatpush.msra.mxu0 %v58
    %1928 = vmatpush.msra.mxu0 %v55
    %1929 = vmatpush.msra.mxu0 %v52
    %1930 = vmatpush.msra.mxu0 %v49
    %1931 = vmatmul.f32.gmra.mxu0 %v1893
    %v1932 = vpop.f32.mrf.mxu0
    %v1933 = vadd.f32 0.0, %v1932
    %1934 = vdwg.mxu0
    %1935 = vmatpush.msra.mxu0 0.0
    %1936 = vmatpush.msra.mxu0 0.0
    %1937 = vmatpush.msra.mxu0 0.0
    %1938 = vmatpush.msra.mxu0 0.0
    %1939 = vmatpush.msra.mxu0 0.0
    %1940 = vmatpush.msra.mxu0 0.0
    %1941 = vmatpush.msra.mxu0 0.0
    %1942 = vmatpush.msra.mxu0 0.0
    %1943 = vmatpush.msra.mxu0 0.0
    %1944 = vmatpush.msra.mxu0 0.0
    %1945 = vmatpush.msra.mxu0 0.0
    %1946 = vmatpush.msra.mxu0 %v62
    %1947 = vmatpush.msra.mxu0 %v59
    %1948 = vmatpush.msra.mxu0 %v56
    %1949 = vmatpush.msra.mxu0 %v53
    %1950 = vmatpush.msra.mxu0 %v50
    %1951 = vmatmul.f32.gmra.mxu0 %v1893
    %v1952 = vpop.f32.mrf.mxu0
    %v1953 = vadd.f32 0.0, %v1952
    %1954 = vdwg.mxu0
    %v1955 = vadd.f32 %v1890, %v1933
    %v1956 = vxor.u32 %v1955, 2147483648
    %v1957 = vmul.f32 %v1956, 1.442695
    %v1958 = vpow.pop %v1957
    %v1959 = vadd.f32 %v1958, 1.0
    %v1960 = vrcp.pop %v1959
    %v1961 = vmul.f32 %v1959, %v1960
    %v1962 = vsub.f32 1.0, %v1961
    %v1963 = vmul.f32 %v1960, %v1962
    %v1964 = vadd.f32 %v1960, %v1963
    %vm1965 = vweird.f32 %v1959
    %vm1966 = vweird.f32 %v1960
    %vm1967 = vmor %vm1965, %vm1966
    %v1968 = vsel %vm1967, %v1960, %v1964
    %v1969 = vand.u32 2147483647, %v1959
    %vm1970 = vcmp.eq.f32.partialorder %v1969, 8.507059e+37
    %v1971 = vand.u32 %v1959, 2147483648
    %v1972 = vor.u32 1.1754944e-38, %v1971
    %v1973 = vsel %vm1970, %v1972, %v1968
    %v1974 = vmul.f32 1.0, %v1973
    %v1975 = vadd.f32 %v1889, %v1913
    %v1976 = vxor.u32 %v1975, 2147483648
    %v1977 = vmul.f32 %v1976, 1.442695
    %v1978 = vpow.pop %v1977
    %v1979 = vadd.f32 %v1978, 1.0
    %v1980 = vrcp.pop %v1979
    %v1981 = vmul.f32 %v1979, %v1980
    %v1982 = vsub.f32 1.0, %v1981
    %v1983 = vmul.f32 %v1980, %v1982
    %v1984 = vadd.f32 %v1980, %v1983
    %vm1985 = vweird.f32 %v1979
    %vm1986 = vweird.f32 %v1980
    %vm1987 = vmor %vm1985, %vm1986
    %v1988 = vsel %vm1987, %v1980, %v1984
    %v1989 = vand.u32 2147483647, %v1979
    %vm1990 = vcmp.eq.f32.partialorder %v1989, 8.507059e+37
    %v1991 = vand.u32 %v1979, 2147483648
    %v1992 = vor.u32 1.1754944e-38, %v1991
    %v1993 = vsel %vm1990, %v1992, %v1988
    %v1994 = vmul.f32 1.0, %v1993
    %v1995 = vadd.f32 %v1953, %v86
    %v1996 = vmul.f32 %v1994, %v1995
    %v1997 = vadd.f32 %v1891, %v1996
    %v1998 = vtanh.pop %v1997
    %v1999 = vsub.f32 %v1887, %v1998
    %v2000 = vmul.f32 %v1974, %v1999
    %v2001 = vadd.f32 %v1998, %v2000
    %2002 = vst [vmem:[#allocation2 + $0x10] sm:$0xff] %v2001
    %v2003 = vld [vmem:[#allocation3 + $0x108] sm:$0xff]
    %v2004 = vld [vmem:[#allocation3 + $0x110] sm:$0xff]
    %v2005 = vld [vmem:[#allocation3 + $0x118] sm:$0xff]
    %v2007 = vsel %vm377, %v2001, 0
    %2009 = vmatpush.msra.mxu0 0.0
    %2010 = vmatpush.msra.mxu0 0.0
    %2011 = vmatpush.msra.mxu0 0.0
    %2012 = vmatpush.msra.mxu0 0.0
    %2013 = vmatpush.msra.mxu0 0.0
    %2014 = vmatpush.msra.mxu0 0.0
    %2015 = vmatpush.msra.mxu0 0.0
    %2016 = vmatpush.msra.mxu0 0.0
    %2017 = vmatpush.msra.mxu0 0.0
    %2018 = vmatpush.msra.mxu0 0.0
    %2019 = vmatpush.msra.mxu0 0.0
    %2020 = vmatpush.msra.mxu0 %v60
    %2021 = vmatpush.msra.mxu0 %v57
    %2022 = vmatpush.msra.mxu0 %v54
    %2023 = vmatpush.msra.mxu0 %v51
    %2024 = vmatpush.msra.mxu0 %v48
    %2025 = vmatmul.f32.gmra.mxu0 %v2007
    %v2026 = vpop.f32.mrf.mxu0
    %v2027 = vadd.f32 0.0, %v2026
    %2028 = vdwg.mxu0
    %2029 = vmatpush.msra.mxu0 0.0
    %2030 = vmatpush.msra.mxu0 0.0
    %2031 = vmatpush.msra.mxu0 0.0
    %2032 = vmatpush.msra.mxu0 0.0
    %2033 = vmatpush.msra.mxu0 0.0
    %2034 = vmatpush.msra.mxu0 0.0
    %2035 = vmatpush.msra.mxu0 0.0
    %2036 = vmatpush.msra.mxu0 0.0
    %2037 = vmatpush.msra.mxu0 0.0
    %2038 = vmatpush.msra.mxu0 0.0
    %2039 = vmatpush.msra.mxu0 0.0
    %2040 = vmatpush.msra.mxu0 %v61
    %2041 = vmatpush.msra.mxu0 %v58
    %2042 = vmatpush.msra.mxu0 %v55
    %2043 = vmatpush.msra.mxu0 %v52
    %2044 = vmatpush.msra.mxu0 %v49
    %2045 = vmatmul.f32.gmra.mxu0 %v2007
    %v2046 = vpop.f32.mrf.mxu0
    %v2047 = vadd.f32 0.0, %v2046
    %2048 = vdwg.mxu0
    %2049 = vmatpush.msra.mxu0 0.0
    %2050 = vmatpush.msra.mxu0 0.0
    %2051 = vmatpush.msra.mxu0 0.0
    %2052 = vmatpush.msra.mxu0 0.0
    %2053 = vmatpush.msra.mxu0 0.0
    %2054 = vmatpush.msra.mxu0 0.0
    %2055 = vmatpush.msra.mxu0 0.0
    %2056 = vmatpush.msra.mxu0 0.0
    %2057 = vmatpush.msra.mxu0 0.0
    %2058 = vmatpush.msra.mxu0 0.0
    %2059 = vmatpush.msra.mxu0 0.0
    %2060 = vmatpush.msra.mxu0 %v62
    %2061 = vmatpush.msra.mxu0 %v59
    %2062 = vmatpush.msra.mxu0 %v56
    %2063 = vmatpush.msra.mxu0 %v53
    %2064 = vmatpush.msra.mxu0 %v50
    %2065 = vmatmul.f32.gmra.mxu0 %v2007
    %v2066 = vpop.f32.mrf.mxu0
    %v2067 = vadd.f32 0.0, %v2066
    %2068 = vdwg.mxu0
    %v2069 = vadd.f32 %v2004, %v2047
    %v2070 = vxor.u32 %v2069, 2147483648
    %v2071 = vmul.f32 %v2070, 1.442695
    %v2072 = vpow.pop %v2071
    %v2073 = vadd.f32 %v2072, 1.0
    %v2074 = vrcp.pop %v2073
    %v2075 = vmul.f32 %v2073, %v2074
    %v2076 = vsub.f32 1.0, %v2075
    %v2077 = vmul.f32 %v2074, %v2076
    %v2078 = vadd.f32 %v2074, %v2077
    %vm2079 = vweird.f32 %v2073
    %vm2080 = vweird.f32 %v2074
    %vm2081 = vmor %vm2079, %vm2080
    %v2082 = vsel %vm2081, %v2074, %v2078
    %v2083 = vand.u32 2147483647, %v2073
    %vm2084 = vcmp.eq.f32.partialorder %v2083, 8.507059e+37
    %v2085 = vand.u32 %v2073, 2147483648
    %v2086 = vor.u32 1.1754944e-38, %v2085
    %v2087 = vsel %vm2084, %v2086, %v2082
    %v2088 = vmul.f32 1.0, %v2087
    %v2089 = vadd.f32 %v2003, %v2027
    %v2090 = vxor.u32 %v2089, 2147483648
    %v2091 = vmul.f32 %v2090, 1.442695
    %v2092 = vpow.pop %v2091
    %v2093 = vadd.f32 %v2092, 1.0
    %v2094 = vrcp.pop %v2093
    %v2095 = vmul.f32 %v2093, %v2094
    %v2096 = vsub.f32 1.0, %v2095
    %v2097 = vmul.f32 %v2094, %v2096
    %v2098 = vadd.f32 %v2094, %v2097
    %vm2099 = vweird.f32 %v2093
    %vm2100 = vweird.f32 %v2094
    %vm2101 = vmor %vm2099, %vm2100
    %v2102 = vsel %vm2101, %v2094, %v2098
    %v2103 = vand.u32 2147483647, %v2093
    %vm2104 = vcmp.eq.f32.partialorder %v2103, 8.507059e+37
    %v2105 = vand.u32 %v2093, 2147483648
    %v2106 = vor.u32 1.1754944e-38, %v2105
    %v2107 = vsel %vm2104, %v2106, %v2102
    %v2108 = vmul.f32 1.0, %v2107
    %v2109 = vadd.f32 %v2067, %v86
    %v2110 = vmul.f32 %v2108, %v2109
    %v2111 = vadd.f32 %v2005, %v2110
    %v2112 = vtanh.pop %v2111
    %v2113 = vsub.f32 %v2001, %v2112
    %v2114 = vmul.f32 %v2088, %v2113
    %v2115 = vadd.f32 %v2112, %v2114
    %2116 = vst [vmem:[#allocation2 + $0x18] sm:$0xff] %v2115
    %v2117 = vld [vmem:[#allocation3 + $0x120] sm:$0xff]
    %v2118 = vld [vmem:[#allocation3 + $0x128] sm:$0xff]
    %v2119 = vld [vmem:[#allocation3 + $0x130] sm:$0xff]
    %v2121 = vsel %vm377, %v2115, 0
    %2123 = vmatpush.msra.mxu0 0.0
    %2124 = vmatpush.msra.mxu0 0.0
    %2125 = vmatpush.msra.mxu0 0.0
    %2126 = vmatpush.msra.mxu0 0.0
    %2127 = vmatpush.msra.mxu0 0.0
    %2128 = vmatpush.msra.mxu0 0.0
    %2129 = vmatpush.msra.mxu0 0.0
    %2130 = vmatpush.msra.mxu0 0.0
    %2131 = vmatpush.msra.mxu0 0.0
    %2132 = vmatpush.msra.mxu0 0.0
    %2133 = vmatpush.msra.mxu0 0.0
    %2134 = vmatpush.msra.mxu0 %v60
    %2135 = vmatpush.msra.mxu0 %v57
    %2136 = vmatpush.msra.mxu0 %v54
    %2137 = vmatpush.msra.mxu0 %v51
    %2138 = vmatpush.msra.mxu0 %v48
    %2139 = vmatmul.f32.gmra.mxu0 %v2121
    %v2140 = vpop.f32.mrf.mxu0
    %v2141 = vadd.f32 0.0, %v2140
    %2142 = vdwg.mxu0
    %2143 = vmatpush.msra.mxu0 0.0
    %2144 = vmatpush.msra.mxu0 0.0
    %2145 = vmatpush.msra.mxu0 0.0
    %2146 = vmatpush.msra.mxu0 0.0
    %2147 = vmatpush.msra.mxu0 0.0
    %2148 = vmatpush.msra.mxu0 0.0
    %2149 = vmatpush.msra.mxu0 0.0
    %2150 = vmatpush.msra.mxu0 0.0
    %2151 = vmatpush.msra.mxu0 0.0
    %2152 = vmatpush.msra.mxu0 0.0
    %2153 = vmatpush.msra.mxu0 0.0
    %2154 = vmatpush.msra.mxu0 %v61
    %2155 = vmatpush.msra.mxu0 %v58
    %2156 = vmatpush.msra.mxu0 %v55
    %2157 = vmatpush.msra.mxu0 %v52
    %2158 = vmatpush.msra.mxu0 %v49
    %2159 = vmatmul.f32.gmra.mxu0 %v2121
    %v2160 = vpop.f32.mrf.mxu0
    %v2161 = vadd.f32 0.0, %v2160
    %2162 = vdwg.mxu0
    %2163 = vmatpush.msra.mxu0 0.0
    %2164 = vmatpush.msra.mxu0 0.0
    %2165 = vmatpush.msra.mxu0 0.0
    %2166 = vmatpush.msra.mxu0 0.0
    %2167 = vmatpush.msra.mxu0 0.0
    %2168 = vmatpush.msra.mxu0 0.0
    %2169 = vmatpush.msra.mxu0 0.0
    %2170 = vmatpush.msra.mxu0 0.0
    %2171 = vmatpush.msra.mxu0 0.0
    %2172 = vmatpush.msra.mxu0 0.0
    %2173 = vmatpush.msra.mxu0 0.0
    %2174 = vmatpush.msra.mxu0 %v62
    %2175 = vmatpush.msra.mxu0 %v59
    %2176 = vmatpush.msra.mxu0 %v56
    %2177 = vmatpush.msra.mxu0 %v53
    %2178 = vmatpush.msra.mxu0 %v50
    %2179 = vmatmul.f32.gmra.mxu0 %v2121
    %v2180 = vpop.f32.mrf.mxu0
    %v2181 = vadd.f32 0.0, %v2180
    %2182 = vdwg.mxu0
    %v2183 = vadd.f32 %v2118, %v2161
    %v2184 = vxor.u32 %v2183, 2147483648
    %v2185 = vmul.f32 %v2184, 1.442695
    %v2186 = vpow.pop %v2185
    %v2187 = vadd.f32 %v2186, 1.0
    %v2188 = vrcp.pop %v2187
    %v2189 = vmul.f32 %v2187, %v2188
    %v2190 = vsub.f32 1.0, %v2189
    %v2191 = vmul.f32 %v2188, %v2190
    %v2192 = vadd.f32 %v2188, %v2191
    %vm2193 = vweird.f32 %v2187
    %vm2194 = vweird.f32 %v2188
    %vm2195 = vmor %vm2193, %vm2194
    %v2196 = vsel %vm2195, %v2188, %v2192
    %v2197 = vand.u32 2147483647, %v2187
    %vm2198 = vcmp.eq.f32.partialorder %v2197, 8.507059e+37
    %v2199 = vand.u32 %v2187, 2147483648
    %v2200 = vor.u32 1.1754944e-38, %v2199
    %v2201 = vsel %vm2198, %v2200, %v2196
    %v2202 = vmul.f32 1.0, %v2201
    %v2203 = vadd.f32 %v2117, %v2141
    %v2204 = vxor.u32 %v2203, 2147483648
    %v2205 = vmul.f32 %v2204, 1.442695
    %v2206 = vpow.pop %v2205
    %v2207 = vadd.f32 %v2206, 1.0
    %v2208 = vrcp.pop %v2207
    %v2209 = vmul.f32 %v2207, %v2208
    %v2210 = vsub.f32 1.0, %v2209
    %v2211 = vmul.f32 %v2208, %v2210
    %v2212 = vadd.f32 %v2208, %v2211
    %vm2213 = vweird.f32 %v2207
    %vm2214 = vweird.f32 %v2208
    %vm2215 = vmor %vm2213, %vm2214
    %v2216 = vsel %vm2215, %v2208, %v2212
    %v2217 = vand.u32 2147483647, %v2207
    %vm2218 = vcmp.eq.f32.partialorder %v2217, 8.507059e+37
    %v2219 = vand.u32 %v2207, 2147483648
    %v2220 = vor.u32 1.1754944e-38, %v2219
    %v2221 = vsel %vm2218, %v2220, %v2216
    %v2222 = vmul.f32 1.0, %v2221
    %v2223 = vadd.f32 %v2181, %v86
    %v2224 = vmul.f32 %v2222, %v2223
    %v2225 = vadd.f32 %v2119, %v2224
    %v2226 = vtanh.pop %v2225
    %v2227 = vsub.f32 %v2115, %v2226
    %v2228 = vmul.f32 %v2202, %v2227
    %v2229 = vadd.f32 %v2226, %v2228
    %2230 = vst [vmem:[#allocation2 + $0x20] sm:$0xff] %v2229
    %v2231 = vld [vmem:[#allocation3 + $0x138] sm:$0xff]
    %v2232 = vld [vmem:[#allocation3 + $0x140] sm:$0xff]
    %v2233 = vld [vmem:[#allocation3 + $0x148] sm:$0xff]
    %v2235 = vsel %vm377, %v2229, 0
    %2237 = vmatpush.msra.mxu0 0.0
    %2238 = vmatpush.msra.mxu0 0.0
    %2239 = vmatpush.msra.mxu0 0.0
    %2240 = vmatpush.msra.mxu0 0.0
    %2241 = vmatpush.msra.mxu0 0.0
    %2242 = vmatpush.msra.mxu0 0.0
    %2243 = vmatpush.msra.mxu0 0.0
    %2244 = vmatpush.msra.mxu0 0.0
    %2245 = vmatpush.msra.mxu0 0.0
    %2246 = vmatpush.msra.mxu0 0.0
    %2247 = vmatpush.msra.mxu0 0.0
    %2248 = vmatpush.msra.mxu0 %v60
    %2249 = vmatpush.msra.mxu0 %v57
    %2250 = vmatpush.msra.mxu0 %v54
    %2251 = vmatpush.msra.mxu0 %v51
    %2252 = vmatpush.msra.mxu0 %v48
    %2253 = vmatmul.f32.gmra.mxu0 %v2235
    %v2254 = vpop.f32.mrf.mxu0
    %v2255 = vadd.f32 0.0, %v2254
    %2256 = vdwg.mxu0
    %2257 = vmatpush.msra.mxu0 0.0
    %2258 = vmatpush.msra.mxu0 0.0
    %2259 = vmatpush.msra.mxu0 0.0
    %2260 = vmatpush.msra.mxu0 0.0
    %2261 = vmatpush.msra.mxu0 0.0
    %2262 = vmatpush.msra.mxu0 0.0
    %2263 = vmatpush.msra.mxu0 0.0
    %2264 = vmatpush.msra.mxu0 0.0
    %2265 = vmatpush.msra.mxu0 0.0
    %2266 = vmatpush.msra.mxu0 0.0
    %2267 = vmatpush.msra.mxu0 0.0
    %2268 = vmatpush.msra.mxu0 %v61
    %2269 = vmatpush.msra.mxu0 %v58
    %2270 = vmatpush.msra.mxu0 %v55
    %2271 = vmatpush.msra.mxu0 %v52
    %2272 = vmatpush.msra.mxu0 %v49
    %2273 = vmatmul.f32.gmra.mxu0 %v2235
    %v2274 = vpop.f32.mrf.mxu0
    %v2275 = vadd.f32 0.0, %v2274
    %2276 = vdwg.mxu0
    %2277 = vmatpush.msra.mxu0 0.0
    %2278 = vmatpush.msra.mxu0 0.0
    %2279 = vmatpush.msra.mxu0 0.0
    %2280 = vmatpush.msra.mxu0 0.0
    %2281 = vmatpush.msra.mxu0 0.0
    %2282 = vmatpush.msra.mxu0 0.0
    %2283 = vmatpush.msra.mxu0 0.0
    %2284 = vmatpush.msra.mxu0 0.0
    %2285 = vmatpush.msra.mxu0 0.0
    %2286 = vmatpush.msra.mxu0 0.0
    %2287 = vmatpush.msra.mxu0 0.0
    %2288 = vmatpush.msra.mxu0 %v62
    %2289 = vmatpush.msra.mxu0 %v59
    %2290 = vmatpush.msra.mxu0 %v56
    %2291 = vmatpush.msra.mxu0 %v53
    %2292 = vmatpush.msra.mxu0 %v50
    %2293 = vmatmul.f32.gmra.mxu0 %v2235
    %v2294 = vpop.f32.mrf.mxu0
    %v2295 = vadd.f32 0.0, %v2294
    %2296 = vdwg.mxu0
    %v2297 = vadd.f32 %v2232, %v2275
    %v2298 = vxor.u32 %v2297, 2147483648
    %v2299 = vmul.f32 %v2298, 1.442695
    %v2300 = vpow.pop %v2299
    %v2301 = vadd.f32 %v2300, 1.0
    %v2302 = vrcp.pop %v2301
    %v2303 = vmul.f32 %v2301, %v2302
    %v2304 = vsub.f32 1.0, %v2303
    %v2305 = vmul.f32 %v2302, %v2304
    %v2306 = vadd.f32 %v2302, %v2305
    %vm2307 = vweird.f32 %v2301
    %vm2308 = vweird.f32 %v2302
    %vm2309 = vmor %vm2307, %vm2308
    %v2310 = vsel %vm2309, %v2302, %v2306
    %v2311 = vand.u32 2147483647, %v2301
    %vm2312 = vcmp.eq.f32.partialorder %v2311, 8.507059e+37
    %v2313 = vand.u32 %v2301, 2147483648
    %v2314 = vor.u32 1.1754944e-38, %v2313
    %v2315 = vsel %vm2312, %v2314, %v2310
    %v2316 = vmul.f32 1.0, %v2315
    %v2317 = vadd.f32 %v2231, %v2255
    %v2318 = vxor.u32 %v2317, 2147483648
    %v2319 = vmul.f32 %v2318, 1.442695
    %v2320 = vpow.pop %v2319
    %v2321 = vadd.f32 %v2320, 1.0
    %v2322 = vrcp.pop %v2321
    %v2323 = vmul.f32 %v2321, %v2322
    %v2324 = vsub.f32 1.0, %v2323
    %v2325 = vmul.f32 %v2322, %v2324
    %v2326 = vadd.f32 %v2322, %v2325
    %vm2327 = vweird.f32 %v2321
    %vm2328 = vweird.f32 %v2322
    %vm2329 = vmor %vm2327, %vm2328
    %v2330 = vsel %vm2329, %v2322, %v2326
    %v2331 = vand.u32 2147483647, %v2321
    %vm2332 = vcmp.eq.f32.partialorder %v2331, 8.507059e+37
    %v2333 = vand.u32 %v2321, 2147483648
    %v2334 = vor.u32 1.1754944e-38, %v2333
    %v2335 = vsel %vm2332, %v2334, %v2330
    %v2336 = vmul.f32 1.0, %v2335
    %v2337 = vadd.f32 %v2295, %v86
    %v2338 = vmul.f32 %v2336, %v2337
    %v2339 = vadd.f32 %v2233, %v2338
    %v2340 = vtanh.pop %v2339
    %v2341 = vsub.f32 %v2229, %v2340
    %v2342 = vmul.f32 %v2316, %v2341
    %v2343 = vadd.f32 %v2340, %v2342
    %2344 = vst [vmem:[#allocation2 + $0x28] sm:$0xff] %v2343
    %v2345 = vld [vmem:[#allocation3 + $0x150] sm:$0xff]
    %v2346 = vld [vmem:[#allocation3 + $0x158] sm:$0xff]
    %v2347 = vld [vmem:[#allocation3 + $0x160] sm:$0xff]
    %v2349 = vsel %vm377, %v2343, 0
    %2351 = vmatpush.msra.mxu0 0.0
    %2352 = vmatpush.msra.mxu0 0.0
    %2353 = vmatpush.msra.mxu0 0.0
    %2354 = vmatpush.msra.mxu0 0.0
    %2355 = vmatpush.msra.mxu0 0.0
    %2356 = vmatpush.msra.mxu0 0.0
    %2357 = vmatpush.msra.mxu0 0.0
    %2358 = vmatpush.msra.mxu0 0.0
    %2359 = vmatpush.msra.mxu0 0.0
    %2360 = vmatpush.msra.mxu0 0.0
    %2361 = vmatpush.msra.mxu0 0.0
    %2362 = vmatpush.msra.mxu0 %v60
    %2363 = vmatpush.msra.mxu0 %v57
    %2364 = vmatpush.msra.mxu0 %v54
    %2365 = vmatpush.msra.mxu0 %v51
    %2366 = vmatpush.msra.mxu0 %v48
    %2367 = vmatmul.f32.gmra.mxu0 %v2349
    %v2368 = vpop.f32.mrf.mxu0
    %v2369 = vadd.f32 0.0, %v2368
    %2370 = vdwg.mxu0
    %2371 = vmatpush.msra.mxu0 0.0
    %2372 = vmatpush.msra.mxu0 0.0
    %2373 = vmatpush.msra.mxu0 0.0
    %2374 = vmatpush.msra.mxu0 0.0
    %2375 = vmatpush.msra.mxu0 0.0
    %2376 = vmatpush.msra.mxu0 0.0
    %2377 = vmatpush.msra.mxu0 0.0
    %2378 = vmatpush.msra.mxu0 0.0
    %2379 = vmatpush.msra.mxu0 0.0
    %2380 = vmatpush.msra.mxu0 0.0
    %2381 = vmatpush.msra.mxu0 0.0
    %2382 = vmatpush.msra.mxu0 %v61
    %2383 = vmatpush.msra.mxu0 %v58
    %2384 = vmatpush.msra.mxu0 %v55
    %2385 = vmatpush.msra.mxu0 %v52
    %2386 = vmatpush.msra.mxu0 %v49
    %2387 = vmatmul.f32.gmra.mxu0 %v2349
    %v2388 = vpop.f32.mrf.mxu0
    %v2389 = vadd.f32 0.0, %v2388
    %2390 = vdwg.mxu0
    %2391 = vmatpush.msra.mxu0 0.0
    %2392 = vmatpush.msra.mxu0 0.0
    %2393 = vmatpush.msra.mxu0 0.0
    %2394 = vmatpush.msra.mxu0 0.0
    %2395 = vmatpush.msra.mxu0 0.0
    %2396 = vmatpush.msra.mxu0 0.0
    %2397 = vmatpush.msra.mxu0 0.0
    %2398 = vmatpush.msra.mxu0 0.0
    %2399 = vmatpush.msra.mxu0 0.0
    %2400 = vmatpush.msra.mxu0 0.0
    %2401 = vmatpush.msra.mxu0 0.0
    %2402 = vmatpush.msra.mxu0 %v62
    %2403 = vmatpush.msra.mxu0 %v59
    %2404 = vmatpush.msra.mxu0 %v56
    %2405 = vmatpush.msra.mxu0 %v53
    %2406 = vmatpush.msra.mxu0 %v50
    %2407 = vmatmul.f32.gmra.mxu0 %v2349
    %v2408 = vpop.f32.mrf.mxu0
    %v2409 = vadd.f32 0.0, %v2408
    %2410 = vdwg.mxu0
    %v2411 = vadd.f32 %v2346, %v2389
    %v2412 = vxor.u32 %v2411, 2147483648
    %v2413 = vmul.f32 %v2412, 1.442695
    %v2414 = vpow.pop %v2413
    %v2415 = vadd.f32 %v2414, 1.0
    %v2416 = vrcp.pop %v2415
    %v2417 = vmul.f32 %v2415, %v2416
    %v2418 = vsub.f32 1.0, %v2417
    %v2419 = vmul.f32 %v2416, %v2418
    %v2420 = vadd.f32 %v2416, %v2419
    %vm2421 = vweird.f32 %v2415
    %vm2422 = vweird.f32 %v2416
    %vm2423 = vmor %vm2421, %vm2422
    %v2424 = vsel %vm2423, %v2416, %v2420
    %v2425 = vand.u32 2147483647, %v2415
    %vm2426 = vcmp.eq.f32.partialorder %v2425, 8.507059e+37
    %v2427 = vand.u32 %v2415, 2147483648
    %v2428 = vor.u32 1.1754944e-38, %v2427
    %v2429 = vsel %vm2426, %v2428, %v2424
    %v2430 = vmul.f32 1.0, %v2429
    %v2431 = vadd.f32 %v2345, %v2369
    %v2432 = vxor.u32 %v2431, 2147483648
    %v2433 = vmul.f32 %v2432, 1.442695
    %v2434 = vpow.pop %v2433
    %v2435 = vadd.f32 %v2434, 1.0
    %v2436 = vrcp.pop %v2435
    %v2437 = vmul.f32 %v2435, %v2436
    %v2438 = vsub.f32 1.0, %v2437
    %v2439 = vmul.f32 %v2436, %v2438
    %v2440 = vadd.f32 %v2436, %v2439
    %vm2441 = vweird.f32 %v2435
    %vm2442 = vweird.f32 %v2436
    %vm2443 = vmor %vm2441, %vm2442
    %v2444 = vsel %vm2443, %v2436, %v2440
    %v2445 = vand.u32 2147483647, %v2435
    %vm2446 = vcmp.eq.f32.partialorder %v2445, 8.507059e+37
    %v2447 = vand.u32 %v2435, 2147483648
    %v2448 = vor.u32 1.1754944e-38, %v2447
    %v2449 = vsel %vm2446, %v2448, %v2444
    %v2450 = vmul.f32 1.0, %v2449
    %v2451 = vadd.f32 %v2409, %v86
    %v2452 = vmul.f32 %v2450, %v2451
    %v2453 = vadd.f32 %v2347, %v2452
    %v2454 = vtanh.pop %v2453
    %v2455 = vsub.f32 %v2343, %v2454
    %v2456 = vmul.f32 %v2430, %v2455
    %v2457 = vadd.f32 %v2454, %v2456
    %2458 = vst [vmem:[#allocation2 + $0x30] sm:$0xff] %v2457
    %v2459 = vld [vmem:[#allocation3 + $0x168] sm:$0xff]
    %v2460 = vld [vmem:[#allocation3 + $0x170] sm:$0xff]
    %v2461 = vld [vmem:[#allocation3 + $0x178] sm:$0xff]
    %v2463 = vsel %vm377, %v2457, 0
    %2465 = vmatpush.msra.mxu0 0.0
    %2466 = vmatpush.msra.mxu0 0.0
    %2467 = vmatpush.msra.mxu0 0.0
    %2468 = vmatpush.msra.mxu0 0.0
    %2469 = vmatpush.msra.mxu0 0.0
    %2470 = vmatpush.msra.mxu0 0.0
    %2471 = vmatpush.msra.mxu0 0.0
    %2472 = vmatpush.msra.mxu0 0.0
    %2473 = vmatpush.msra.mxu0 0.0
    %2474 = vmatpush.msra.mxu0 0.0
    %2475 = vmatpush.msra.mxu0 0.0
    %2476 = vmatpush.msra.mxu0 %v60
    %2477 = vmatpush.msra.mxu0 %v57
    %2478 = vmatpush.msra.mxu0 %v54
    %2479 = vmatpush.msra.mxu0 %v51
    %2480 = vmatpush.msra.mxu0 %v48
    %2481 = vmatmul.f32.gmra.mxu0 %v2463
    %v2482 = vpop.f32.mrf.mxu0
    %v2483 = vadd.f32 0.0, %v2482
    %2484 = vdwg.mxu0
    %2485 = vmatpush.msra.mxu0 0.0
    %2486 = vmatpush.msra.mxu0 0.0
    %2487 = vmatpush.msra.mxu0 0.0
    %2488 = vmatpush.msra.mxu0 0.0
    %2489 = vmatpush.msra.mxu0 0.0
    %2490 = vmatpush.msra.mxu0 0.0
    %2491 = vmatpush.msra.mxu0 0.0
    %2492 = vmatpush.msra.mxu0 0.0
    %2493 = vmatpush.msra.mxu0 0.0
    %2494 = vmatpush.msra.mxu0 0.0
    %2495 = vmatpush.msra.mxu0 0.0
    %2496 = vmatpush.msra.mxu0 %v61
    %2497 = vmatpush.msra.mxu0 %v58
    %2498 = vmatpush.msra.mxu0 %v55
    %2499 = vmatpush.msra.mxu0 %v52
    %2500 = vmatpush.msra.mxu0 %v49
    %2501 = vmatmul.f32.gmra.mxu0 %v2463
    %v2502 = vpop.f32.mrf.mxu0
    %v2503 = vadd.f32 0.0, %v2502
    %2504 = vdwg.mxu0
    %2505 = vmatpush.msra.mxu0 0.0
    %2506 = vmatpush.msra.mxu0 0.0
    %2507 = vmatpush.msra.mxu0 0.0
    %2508 = vmatpush.msra.mxu0 0.0
    %2509 = vmatpush.msra.mxu0 0.0
    %2510 = vmatpush.msra.mxu0 0.0
    %2511 = vmatpush.msra.mxu0 0.0
    %2512 = vmatpush.msra.mxu0 0.0
    %2513 = vmatpush.msra.mxu0 0.0
    %2514 = vmatpush.msra.mxu0 0.0
    %2515 = vmatpush.msra.mxu0 0.0
    %2516 = vmatpush.msra.mxu0 %v62
    %2517 = vmatpush.msra.mxu0 %v59
    %2518 = vmatpush.msra.mxu0 %v56
    %2519 = vmatpush.msra.mxu0 %v53
    %2520 = vmatpush.msra.mxu0 %v50
    %2521 = vmatmul.f32.gmra.mxu0 %v2463
    %v2522 = vpop.f32.mrf.mxu0
    %v2523 = vadd.f32 0.0, %v2522
    %2524 = vdwg.mxu0
    %v2525 = vadd.f32 %v2460, %v2503
    %v2526 = vxor.u32 %v2525, 2147483648
    %v2527 = vmul.f32 %v2526, 1.442695
    %v2528 = vpow.pop %v2527
    %v2529 = vadd.f32 %v2528, 1.0
    %v2530 = vrcp.pop %v2529
    %v2531 = vmul.f32 %v2529, %v2530
    %v2532 = vsub.f32 1.0, %v2531
    %v2533 = vmul.f32 %v2530, %v2532
    %v2534 = vadd.f32 %v2530, %v2533
    %vm2535 = vweird.f32 %v2529
    %vm2536 = vweird.f32 %v2530
    %vm2537 = vmor %vm2535, %vm2536
    %v2538 = vsel %vm2537, %v2530, %v2534
    %v2539 = vand.u32 2147483647, %v2529
    %vm2540 = vcmp.eq.f32.partialorder %v2539, 8.507059e+37
    %v2541 = vand.u32 %v2529, 2147483648
    %v2542 = vor.u32 1.1754944e-38, %v2541
    %v2543 = vsel %vm2540, %v2542, %v2538
    %v2544 = vmul.f32 1.0, %v2543
    %v2545 = vadd.f32 %v2459, %v2483
    %v2546 = vxor.u32 %v2545, 2147483648
    %v2547 = vmul.f32 %v2546, 1.442695
    %v2548 = vpow.pop %v2547
    %v2549 = vadd.f32 %v2548, 1.0
    %v2550 = vrcp.pop %v2549
    %v2551 = vmul.f32 %v2549, %v2550
    %v2552 = vsub.f32 1.0, %v2551
    %v2553 = vmul.f32 %v2550, %v2552
    %v2554 = vadd.f32 %v2550, %v2553
    %vm2555 = vweird.f32 %v2549
    %vm2556 = vweird.f32 %v2550
    %vm2557 = vmor %vm2555, %vm2556
    %v2558 = vsel %vm2557, %v2550, %v2554
    %v2559 = vand.u32 2147483647, %v2549
    %vm2560 = vcmp.eq.f32.partialorder %v2559, 8.507059e+37
    %v2561 = vand.u32 %v2549, 2147483648
    %v2562 = vor.u32 1.1754944e-38, %v2561
    %v2563 = vsel %vm2560, %v2562, %v2558
    %v2564 = vmul.f32 1.0, %v2563
    %v2565 = vadd.f32 %v2523, %v86
    %v2566 = vmul.f32 %v2564, %v2565
    %v2567 = vadd.f32 %v2461, %v2566
    %v2568 = vtanh.pop %v2567
    %v2569 = vsub.f32 %v2457, %v2568
    %v2570 = vmul.f32 %v2544, %v2569
    %v2571 = vadd.f32 %v2568, %v2570
    %2572 = vst [vmem:[#allocation2 + $0x38] sm:$0xff] %v2571
    %v2573 = vld [vmem:[#allocation2] sm:$0xff]
    %v2574 = vld [vmem:[#allocation2 + $0x8] sm:$0xff]
    %v2575 = vld [vmem:[#allocation2 + $0x10] sm:$0xff]
    %v2576 = vld [vmem:[#allocation2 + $0x18] sm:$0xff]
    %v2577 = vld [vmem:[#allocation2 + $0x20] sm:$0xff]
    %v2578 = vld [vmem:[#allocation2 + $0x28] sm:$0xff]
    %v2579 = vld [vmem:[#allocation2 + $0x30] sm:$0xff]
    %v2580 = vld [vmem:[#allocation2 + $0x38] sm:$0xff]
    %v2581 = vperm.slane %v107, 0
    %2582 = vmatpush.msra.mxu0 %v102
    %2583 = vmatpush.msra.mxu0 %v101
    %2584 = vmatpush.msra.mxu0 %v100
    %2585 = vmatpush.msra.mxu0 %v99
    %2586 = vmatpush.msra.mxu0 %v98
    %2587 = vmatpush.msra.mxu0 %v97
    %2588 = vmatpush.msra.mxu0 %v96
    %2589 = vmatpush.msra.mxu0 %v95
    %2590 = vmatpush.msra.mxu0 %v94
    %2591 = vmatpush.msra.mxu0 %v93
    %2592 = vmatpush.msra.mxu0 %v92
    %2593 = vmatpush.msra.mxu0 %v91
    %2594 = vmatpush.msra.mxu0 %v90
    %2595 = vmatpush.msra.mxu0 %v89
    %2596 = vmatpush.msra.mxu0 %v88
    %2597 = vmatpush.msra.mxu0 %v87
    %2598 = vmatmul.f32.gmra.mxu0 %v2573
    %v2599 = vpop.f32.mrf.mxu0
    %v2600 = vadd.f32 %v2581, %v2599
    %2601 = vmatmul.f32.gmra.mxu0 %v2574
    %v2602 = vpop.f32.mrf.mxu0
    %v2603 = vadd.f32 %v2581, %v2602
    %2604 = vmatmul.f32.gmra.mxu0 %v2575
    %v2605 = vpop.f32.mrf.mxu0
    %v2606 = vadd.f32 %v2581, %v2605
    %2607 = vmatmul.f32.gmra.mxu0 %v2576
    %v2608 = vpop.f32.mrf.mxu0
    %v2609 = vadd.f32 %v2581, %v2608
    %2610 = vmatmul.f32.gmra.mxu0 %v2577
    %v2611 = vpop.f32.mrf.mxu0
    %v2612 = vadd.f32 %v2581, %v2611
    %2613 = vmatmul.f32.gmra.mxu0 %v2578
    %v2614 = vpop.f32.mrf.mxu0
    %v2615 = vadd.f32 %v2581, %v2614
    %2616 = vmatmul.f32.gmra.mxu0 %v2579
    %v2617 = vpop.f32.mrf.mxu0
    %v2618 = vadd.f32 %v2581, %v2617
    %2619 = vmatmul.f32.gmra.mxu0 %v2580
    %v2620 = vpop.f32.mrf.mxu0
    %v2621 = vadd.f32 %v2581, %v2620
    %2622 = vdwg.mxu0
    %2623 = vst [vmem:[%s4] sm:$0xff] %v2600
    %2624 = vst [vmem:[%s4 + $0x8] sm:$0xff] %v2603
    %2625 = vst [vmem:[%s4 + $0x10] sm:$0xff] %v2606
    %2626 = vst [vmem:[%s4 + $0x18] sm:$0xff] %v2609
    %2627 = vst [vmem:[%s4 + $0x20] sm:$0xff] %v2612
    %2628 = vst [vmem:[%s4 + $0x28] sm:$0xff] %v2615
    %2629 = vst [vmem:[%s4 + $0x30] sm:$0xff] %v2618
    %2630 = vst [vmem:[%s4 + $0x38] sm:$0xff] %v2621
    // Predicated region
    $region22: #{deepar_forward.1} parent=1 // pred_check
      _
    $region23: #{deepar_forward.1} parent=1 // pred_check_branch
      %2632 = sbr.rel (0) target = $region25
    $region24: #{deepar_forward.1} parent=1 // pred_region
      _
    $region25: #{deepar_forward.1} parent=1 // pred_fallthru
      _
    // Predicated region
    $region26: #{deepar_forward.1} parent=1 // pred_check
      _
    $region27: #{deepar_forward.1} parent=1 // pred_check_branch
      %2634 = sbr.rel (0) target = $region29
    $region28: #{deepar_forward.1} parent=1 // pred_region
      _
    $region29: #{deepar_forward.1} parent=1 // pred_fallthru
      _
    %2635 = vsyncpa [#allocation5], 1

</llo_original>
